<compile_context>
chip_gen: v7x
topology: tpu7x:2x2x1
jax: 0.10.0
libtpu: 0.0.40
codegen_flags: <defaults>
</compile_context>

<pallas_src>
import math

import jax
import jax.numpy as jnp
from jax.experimental import pallas as pl
from jax.experimental.pallas import tpu as pltpu


_CONV_OPS = ("nor_conv_3x3", "nor_conv_1x1")
_VMEM_SPEC = pl.BlockSpec(memory_space=pltpu.MemorySpace.VMEM)

# Fixed NB201 cell DAG (matches the PyTorch forward):
#   c1 = op0(c0);  c2 = op1(c0) + op2(c1);  c3 = op3(c0) + op4(c1) + op5(c2)
_OP_SRC = (0, 0, 1, 0, 1, 2)


def _parse_structure(cell_structure):
    toks = cell_structure.split("|")
    op_types = [t[:-2] for t in toks if len(t) > 1]      # same parsing as PyTorch
    assert len(op_types) == 6, f"expected 6 operators, got {op_types}"
    return op_types


# ----------------------------- fused cell kernel -----------------------------

def _build_cell_kernel(op_types, groups, N, H, W, C, has_pad):
    """Build one fused Pallas kernel for the whole NB201 cell DAG.

    Kernel refs: x (N,H,W,C) f32, one packed bf16 weight (n_taps, C, n_convs*C)
    per conv *group* (group = all convs reading the same source tensor),
    o (N,H,W,C) f32, and optionally a shared f32 halo scratch (N,H+2,W+2,C).
    """
    NHW = N * H * W
    inv_nhw = 1.0 / float(NHW)
    n_groups = len(groups)

    def kernel(*refs):
        x_ref = refs[0]
        w_refs = refs[1:1 + n_groups]
        o_ref = refs[1 + n_groups]
        pad_scr = refs[2 + n_groups] if has_pad else None

        # Zero only the 1-pixel halo border; interiors are fully overwritten
        # before every use, so the border stays valid for every conv / pool.
        if has_pad:
            zrow = jnp.zeros((N, 1, W + 2, C), jnp.float32)
            pad_scr[:, 0:1, :, :] = zrow
            pad_scr[:, H + 1:H + 2, :, :] = zrow
            zcol = jnp.zeros((N, H + 2, 1, C), jnp.float32)
            pad_scr[:, :, 0:1, :] = zcol
            pad_scr[:, :, W + 1:W + 2, :] = zcol

        conv_out = {}   # op index -> (NHW, C) f32 normalized output

        def run_conv_group(src_val, group, w_ref):
            """ReLU -> fused conv(s) -> pseudoBatchNorm for all convs reading src."""
            ops = group["ops"]
            n_taps = group["n_taps"]
            n_out = len(ops) * C
            xr = jnp.maximum(src_val, 0.0)                         # (NHW, C) f32
            if n_taps == 1:                                        # only 1x1 convs
                acc = jnp.dot(xr.astype(jnp.bfloat16), w_ref[0],
                              preferred_element_type=jnp.float32)
            else:
                pad_scr[:, 1:H + 1, 1:W + 1, :] = xr.reshape(N, H, W, C)
                acc = jnp.zeros((NHW, n_out), jnp.float32)
                for dy in range(3):                 # tap-by-tap MXU accumulation
                    for dx in range(3):
                        t = dy * 3 + dx
                        patch = pad_scr[:, dy:dy + H, dx:dx + W, :]
                        patch = patch.reshape(NHW, C).astype(jnp.bfloat16)
                        acc = acc + jnp.dot(patch, w_ref[t],
                                            preferred_element_type=jnp.float32)
            # pseudoBatchNorm on all fused output channels at once: per-column
            # batch stats over the N*H*W samples, two-pass (no cancellation).
            mean = jnp.sum(acc, axis=0, keepdims=True) * inv_nhw
            d = acc - mean
            var = jnp.sum(d * d, axis=0, keepdims=True) * inv_nhw
            yn = d * jax.lax.rsqrt(var + 1e-5)
            if len(ops) == 1:
                conv_out[ops[0]] = yn
            else:
                for j, op_i in enumerate(ops):
                    conv_out[op_i] = yn[:, j * C:(j + 1) * C]

        def avg_pool(val):
            # AvgPool2d(3, stride=1, padding=1), count_include_pad (/9), f32.
            pad_scr[:, 1:H + 1, 1:W + 1, :] = val.reshape(N, H, W, C)
            acc = jnp.zeros((N, H, W, C), jnp.float32)
            for dy in range(3):
                for dx in range(3):
                    acc = acc + pad_scr[:, dy:dy + H, dx:dx + W, :]
            return (acc * (1.0 / 9.0)).reshape(NHW, C)

        def op_output(i, src_val):
            op = op_types[i]
            # None == exactly-zero tensor: every NB201 op maps zero to zero
            # (ReLU/conv/BN, avgpool, identity, zeroize), so prune at trace time.
            if src_val is None or op == "none":
                return None
            if op == "skip_connect":
                return src_val
            if op == "avg_pool_3x3":
                return avg_pool(src_val)
            return conv_out[i]          # already produced by run_conv_group(src)

        def add_all(vals):
            vals = [v for v in vals if v is not None]
            if not vals:
                return None
            out = vals[0]
            for v in vals[1:]:
                out = out + v
            return out

        node = [None, None, None, None]
        node[0] = x_ref[...].reshape(NHW, C)

        def run_groups_reading(src):
            for g, w_ref in zip(groups, w_refs):
                if g["src"] == src and node[src] is not None:
                    run_conv_group(node[src], g, w_ref)

        run_groups_reading(0)
        node[1] = op_output(0, node[0])
        run_groups_reading(1)
        node[2] = add_all([op_output(1, node[0]), op_output(2, node[1])])
        run_groups_reading(2)
        node[3] = add_all([op_output(3, node[0]), op_output(4, node[1]),
                           op_output(5, node[2])])

        if node[3] is None:
            o_ref[...] = jnp.zeros((N, H, W, C), jnp.float32)
        else:
            o_ref[...] = node[3].reshape(N, H, W, C)

    return kernel


# --------------------------------- wrapper -----------------------------------

class CellNB201Pallas:
    """JAX/Pallas equivalent of Cell_NB201. External layout: NCHW (like PyTorch)."""

    def __init__(self, cell_structure, n_features, key):
        op_types = _parse_structure(cell_structure)
        self.op_types = op_types
        self.n_features = n_features
        C = n_features

        # Per-op bf16 weights (kept for the pure-JAX reference) and per-source
        # packed bf16 weights feeding one wide MXU matmul per source tensor.
        self.conv_k = {}
        self.ref_weights = {}            # op index -> (k*k*C, C) bf16
        per_op_w = {}                    # op index -> (k*k, C, C) bf16
        keys = jax.random.split(key, 6)
        for i, op in enumerate(op_types):
            if op in _CONV_OPS:
                assert n_features in (16, 32, 64), \
                    "NB201 conv ops are only defined for n_features in {16, 32, 64}"
                k = 3 if op == "nor_conv_3x3" else 1
                std = math.sqrt(2.0 / (k * k * C))
                w = (std * jax.random.normal(keys[i], (k * k, C, C), jnp.float32)
                     ).astype(jnp.bfloat16)          # bf16: MXU-native, half VMEM
                self.conv_k[i] = k
                per_op_w[i] = w
                self.ref_weights[i] = w.reshape(k * k * C, C)

        # Fuse all convs that read the same source tensor into one matmul:
        # columns = concat of each conv's output channels, rows = tap-major /
        # cin-minor.  A 1x1 conv inside a 9-tap group only occupies the centre
        # tap (its other tap slabs are zero).
        self.groups = []                 # [{"src", "ops", "n_taps"}]
        self.group_weights = []          # packed (n_taps, C, len(ops)*C) bf16
        for src in (0, 1, 2):
            ops = [i for i in range(6)
                   if op_types[i] in _CONV_OPS and _OP_SRC[i] == src]
            if not ops:
                continue
            n_taps = 9 if any(self.conv_k[i] == 3 for i in ops) else 1
            taps = []
            for t in range(n_taps):
                cols = []
                for i in ops:
                    if self.conv_k[i] == 3:
                        cols.append(per_op_w[i][t])
                    elif n_taps == 1 or t == 4:          # centre tap of 3x3 grid
                        cols.append(per_op_w[i][0])
                    else:
                        cols.append(jnp.zeros((C, C), jnp.bfloat16))
                taps.append(jnp.concatenate(cols, axis=1))
            self.groups.append({"src": src, "ops": ops, "n_taps": n_taps})
            self.group_weights.append(jnp.stack(taps, axis=0))

        self._forward = jax.jit(self._forward_impl)

    def _forward_impl(self, x_nchw):
        N, C, H, W = x_nchw.shape
        assert C == self.n_features
        # TODO(synk): at realistic sizes keep activations NHWC end-to-end (and a
        # lane-dense (rows, W*C) kernel I/O layout) instead of paying this
        # NCHW<->NHWC HBM round trip; kept because the module interface is NCHW.
        x = jnp.transpose(x_nchw, (0, 2, 3, 1))                  # NCHW -> NHWC

        has_pad = ("avg_pool_3x3" in self.op_types
                   or any(g["n_taps"] == 9 for g in self.groups))
        kernel = _build_cell_kernel(self.op_types, self.groups, N, H, W, C, has_pad)
        scratch = ([pltpu.VMEM((N, H + 2, W + 2, C), jnp.float32)]
                   if has_pad else [])

        # One fused, un-gridded pallas_call for the whole cell: every
        # intermediate stays in VMEM/vregs and BN stats are exactly global.
        # TODO(synk): at realistic NB201 shapes (N=256, 32x32, C=64) this must
        # become a gridded two-pass kernel (row-block matmul partials over an
        # "arbitrary" reduction axis + a normalize pass), with a "parallel" row
        # axis for megacore and an explicit
        # pltpu.CompilerParams(vmem_limit_bytes=...) budget per chip generation.
        out = pl.pallas_call(
            kernel,
            out_shape=jax.ShapeDtypeStruct((N, H, W, C), jnp.float32),
            in_specs=[_VMEM_SPEC] * (1 + len(self.group_weights)),
            out_specs=_VMEM_SPEC,
            scratch_shapes=scratch,
        )(x, *self.group_weights)
        return jnp.transpose(out, (0, 3, 1, 2))                  # NHWC -> NCHW

    def __call__(self, x_nchw):
        return self._forward(x_nchw)


# ----------------------------- pure-JAX reference ----------------------------

def _ref_cell_nhwc(x_nhwc, op_types, conv_k, ref_weights):
    """Reference forward with identical bf16 weight / activation casts."""

    def conv_bn(v, w_flat_bf16, k):
        N, H, W, C = v.shape
        xr = jnp.maximum(v, 0.0).astype(jnp.bfloat16)
        p = k // 2
        xp = jnp.pad(xr, ((0, 0), (p, p), (p, p), (0, 0)))
        cols = [xp[:, dy:dy + H, dx:dx + W, :].reshape(N * H * W, C)
                for dy in range(k) for dx in range(k)]
        y = jnp.dot(jnp.concatenate(cols, axis=1), w_flat_bf16,
                    preferred_element_type=jnp.float32)
        mean = jnp.mean(y, axis=0, keepdims=True)
        d = y - mean
        var = jnp.mean(d * d, axis=0, keepdims=True)
        return (d * jax.lax.rsqrt(var + 1e-5)).reshape(N, H, W, C)

    def pool(v):
        N, H, W, C = v.shape
        xp = jnp.pad(v, ((0, 0), (1, 1), (1, 1), (0, 0)))
        acc = jnp.zeros_like(v)
        for dy in range(3):
            for dx in range(3):
                acc = acc + xp[:, dy:dy + H, dx:dx + W, :]
        return acc / 9.0

    def apply(i, v):
        op = op_types[i]
        if op == "none":
            return jnp.zeros_like(v)
        if op == "skip_connect":
            return v
        if op == "avg_pool_3x3":
            return pool(v)
        return conv_bn(v, ref_weights[i], conv_k[i])

    c0 = x_nhwc
    c1 = apply(0, c0)
    c2 = apply(1, c0) + apply(2, c1)
    c3 = apply(3, c0) + apply(4, c1) + apply(5, c2)
    return c3


# ----------------------------------- main -------------------------------------

if __name__ == "__main__":
    key = jax.random.PRNGKey(0)
    k_x, k_params = jax.random.split(key)

    # n_features must be one of {16, 32, 64} for the conv ops to exist.
    N, C, H, W = 2, 16, 8, 8
    x = jax.random.normal(k_x, (N, C, H, W), jnp.float32)   # NCHW, like PyTorch

    # Exercise every operator type (and the multi-conv fusion) in one cell.
    cell_structure = (
        "|nor_conv_3x3~0|+"
        "|nor_conv_1x1~0|avg_pool_3x3~1|+"
        "|skip_connect~0|none~1|nor_conv_3x3~2|"
    )

    cell = CellNB201Pallas(cell_structure, n_features=C, key=k_params)
    y = cell(x)
    jax.block_until_ready(y)

    assert y.shape == (N, C, H, W), y.shape
    assert y.dtype == jnp.float32

    # Sanity check against a pure-JAX reference that uses the same bf16 weights
    # and activation casts, so only accumulation-order noise remains.
    x_nhwc = jnp.transpose(x, (0, 2, 3, 1))
    y_ref = _ref_cell_nhwc(x_nhwc, cell.op_types, cell.conv_k, cell.ref_weights)
    y_ref = jnp.transpose(y_ref, (0, 3, 1, 2))
    max_err = float(jnp.max(jnp.abs(y - y_ref)))
    scale = float(jnp.max(jnp.abs(y_ref)))
    assert max_err <= 2e-3 * (1.0 + scale), (
        f"fused cell disagrees with reference: abs_err={max_err}, scale={scale}")

    print("KERNEL_OK")
</pallas_src>

<mosaic_0001>
module attributes {stable_mosaic.version = 11 : i64} {
  func.func @kernel(%arg0: memref<2x8x8x16xf32, #tpu.memory_space<vmem>>, %arg1: memref<9x16x32xbf16, #tpu.memory_space<vmem>>, %arg2: memref<9x16x16xbf16, #tpu.memory_space<vmem>>, %arg3: memref<2x8x8x16xf32, #tpu.memory_space<vmem>>, %arg4: memref<2x10x10x16xf32, #tpu.memory_space<vmem>>) attributes {dimension_semantics = [], scalar_prefetch = 0 : i64, scratch_operands = 1 : i64, tpu.core_type = #tpu.core_type<tc>} {
    %cst = arith.constant 0.000000e+00 : f32
    %0 = vector.broadcast %cst : f32 to vector<2x1x10x16xf32>
    %c0 = arith.constant 0 : index
    %c0_0 = arith.constant 0 : index
    %c0_1 = arith.constant 0 : index
    %c0_2 = arith.constant 0 : index
    %1 = vector.load %arg4[%c0, %c0_0, %c0_1, %c0_2] : memref<2x10x10x16xf32, #tpu.memory_space<vmem>>, vector<2x1x10x16xf32>
    tpu.vector_store %arg4[%c0, %c0_0, %c0_1, %c0_2], %0 {strides = array<i32>} : memref<2x10x10x16xf32, #tpu.memory_space<vmem>>, vector<2x1x10x16xf32>,
    %c0_3 = arith.constant 0 : index
    %c9 = arith.constant 9 : index
    %c0_4 = arith.constant 0 : index
    %c0_5 = arith.constant 0 : index
    %2 = vector.load %arg4[%c0_3, %c9, %c0_4, %c0_5] : memref<2x10x10x16xf32, #tpu.memory_space<vmem>>, vector<2x1x10x16xf32>
    tpu.vector_store %arg4[%c0_3, %c9, %c0_4, %c0_5], %0 {strides = array<i32>} : memref<2x10x10x16xf32, #tpu.memory_space<vmem>>, vector<2x1x10x16xf32>,
    %cst_6 = arith.constant 0.000000e+00 : f32
    %3 = vector.broadcast %cst_6 : f32 to vector<2x10x1x16xf32>
    %c0_7 = arith.constant 0 : index
    %c0_8 = arith.constant 0 : index
    %c0_9 = arith.constant 0 : index
    %c0_10 = arith.constant 0 : index
    %4 = vector.load %arg4[%c0_7, %c0_8, %c0_9, %c0_10] : memref<2x10x10x16xf32, #tpu.memory_space<vmem>>, vector<2x10x1x16xf32>
    tpu.vector_store %arg4[%c0_7, %c0_8, %c0_9, %c0_10], %3 {strides = array<i32>} : memref<2x10x10x16xf32, #tpu.memory_space<vmem>>, vector<2x10x1x16xf32>,
    %c0_11 = arith.constant 0 : index
    %c0_12 = arith.constant 0 : index
    %c9_13 = arith.constant 9 : index
    %c0_14 = arith.constant 0 : index
    %5 = vector.load %arg4[%c0_11, %c0_12, %c9_13, %c0_14] : memref<2x10x10x16xf32, #tpu.memory_space<vmem>>, vector<2x10x1x16xf32>
    tpu.vector_store %arg4[%c0_11, %c0_12, %c9_13, %c0_14], %3 {strides = array<i32>} : memref<2x10x10x16xf32, #tpu.memory_space<vmem>>, vector<2x10x1x16xf32>,
    %c0_15 = arith.constant 0 : index
    %c0_16 = arith.constant 0 : index
    %c0_17 = arith.constant 0 : index
    %c0_18 = arith.constant 0 : index
    %6 = vector.load %arg0[%c0_15, %c0_16, %c0_17, %c0_18] : memref<2x8x8x16xf32, #tpu.memory_space<vmem>>, vector<2x8x8x16xf32>
    %7 = vector.shape_cast %6 : vector<2x8x8x16xf32> to vector<128x16xf32>
    %cst_19 = arith.constant 0.000000e+00 : f32
    %8 = vector.broadcast %cst_19 : f32 to vector<128x16xf32>
    %9 = arith.maximumf %7, %8 : vector<128x16xf32>
    %10 = vector.shape_cast %9 : vector<128x16xf32> to vector<2x8x8x16xf32>
    %c0_20 = arith.constant 0 : index
    %c1 = arith.constant 1 : index
    %c1_21 = arith.constant 1 : index
    %c0_22 = arith.constant 0 : index
    %11 = vector.load %arg4[%c0_20, %c1, %c1_21, %c0_22] : memref<2x10x10x16xf32, #tpu.memory_space<vmem>>, vector<2x8x8x16xf32>
    tpu.vector_store %arg4[%c0_20, %c1, %c1_21, %c0_22], %10 {strides = array<i32>} : memref<2x10x10x16xf32, #tpu.memory_space<vmem>>, vector<2x8x8x16xf32>,
    %cst_23 = arith.constant 0.000000e+00 : f32
    %12 = vector.broadcast %cst_23 : f32 to vector<128x32xf32>
    %c0_24 = arith.constant 0 : index
    %c0_25 = arith.constant 0 : index
    %c0_26 = arith.constant 0 : index
    %c0_27 = arith.constant 0 : index
    %13 = vector.load %arg4[%c0_24, %c0_25, %c0_26, %c0_27] : memref<2x10x10x16xf32, #tpu.memory_space<vmem>>, vector<2x8x8x16xf32>
    %14 = vector.shape_cast %13 : vector<2x8x8x16xf32> to vector<128x16xf32>
    %15 = arith.truncf %14 : vector<128x16xf32> to vector<128x16xbf16>
    %c0_28 = arith.constant 0 : index
    %c0_29 = arith.constant 0 : index
    %c0_30 = arith.constant 0 : index
    %16 = vector.load %arg1[%c0_28, %c0_29, %c0_30] : memref<9x16x32xbf16, #tpu.memory_space<vmem>>, vector<1x16x32xbf16>
    %17 = vector.shape_cast %16 : vector<1x16x32xbf16> to vector<16x32xbf16>
    %cst_31 = arith.constant dense<0.000000e+00> : vector<128x32xf32>
    %18 = tpu.matmul %15, %17, %cst_31 {dimension_numbers = #tpu.dot_dimension_numbers<[1], [0], [0], [1], [0, 0, 1, 1], [], []>} : vector<128x16xbf16>, vector<16x32xbf16>, vector<128x32xf32> -> vector<128x32xf32>
    %19 = arith.addf %12, %18 : vector<128x32xf32>
    %c0_32 = arith.constant 0 : index
    %c0_33 = arith.constant 0 : index
    %c1_34 = arith.constant 1 : index
    %c0_35 = arith.constant 0 : index
    %20 = vector.load %arg4[%c0_32, %c0_33, %c1_34, %c0_35] : memref<2x10x10x16xf32, #tpu.memory_space<vmem>>, vector<2x8x8x16xf32>
    %21 = vector.shape_cast %20 : vector<2x8x8x16xf32> to vector<128x16xf32>
    %22 = arith.truncf %21 : vector<128x16xf32> to vector<128x16xbf16>
    %c1_36 = arith.constant 1 : index
    %c0_37 = arith.constant 0 : index
    %c0_38 = arith.constant 0 : index
    %23 = vector.load %arg1[%c1_36, %c0_37, %c0_38] : memref<9x16x32xbf16, #tpu.memory_space<vmem>>, vector<1x16x32xbf16>
    %24 = vector.shape_cast %23 : vector<1x16x32xbf16> to vector<16x32xbf16>
    %cst_39 = arith.constant dense<0.000000e+00> : vector<128x32xf32>
    %25 = tpu.matmul %22, %24, %cst_39 {dimension_numbers = #tpu.dot_dimension_numbers<[1], [0], [0], [1], [0, 0, 1, 1], [], []>} : vector<128x16xbf16>, vector<16x32xbf16>, vector<128x32xf32> -> vector<128x32xf32>
    %26 = arith.addf %19, %25 : vector<128x32xf32>
    %c0_40 = arith.constant 0 : index
    %c0_41 = arith.constant 0 : index
    %c2 = arith.constant 2 : index
    %c0_42 = arith.constant 0 : index
    %27 = vector.load %arg4[%c0_40, %c0_41, %c2, %c0_42] : memref<2x10x10x16xf32, #tpu.memory_space<vmem>>, vector<2x8x8x16xf32>
    %28 = vector.shape_cast %27 : vector<2x8x8x16xf32> to vector<128x16xf32>
    %29 = arith.truncf %28 : vector<128x16xf32> to vector<128x16xbf16>
    %c2_43 = arith.constant 2 : index
    %c0_44 = arith.constant 0 : index
    %c0_45 = arith.constant 0 : index
    %30 = vector.load %arg1[%c2_43, %c0_44, %c0_45] : memref<9x16x32xbf16, #tpu.memory_space<vmem>>, vector<1x16x32xbf16>
    %31 = vector.shape_cast %30 : vector<1x16x32xbf16> to vector<16x32xbf16>
    %cst_46 = arith.constant dense<0.000000e+00> : vector<128x32xf32>
    %32 = tpu.matmul %29, %31, %cst_46 {dimension_numbers = #tpu.dot_dimension_numbers<[1], [0], [0], [1], [0, 0, 1, 1], [], []>} : vector<128x16xbf16>, vector<16x32xbf16>, vector<128x32xf32> -> vector<128x32xf32>
    %33 = arith.addf %26, %32 : vector<128x32xf32>
    %c0_47 = arith.constant 0 : index
    %c1_48 = arith.constant 1 : index
    %c0_49 = arith.constant 0 : index
    %c0_50 = arith.constant 0 : index
    %34 = vector.load %arg4[%c0_47, %c1_48, %c0_49, %c0_50] : memref<2x10x10x16xf32, #tpu.memory_space<vmem>>, vector<2x8x8x16xf32>
    %35 = vector.shape_cast %34 : vector<2x8x8x16xf32> to vector<128x16xf32>
    %36 = arith.truncf %35 : vector<128x16xf32> to vector<128x16xbf16>
    %c3 = arith.constant 3 : index
    %c0_51 = arith.constant 0 : index
    %c0_52 = arith.constant 0 : index
    %37 = vector.load %arg1[%c3, %c0_51, %c0_52] : memref<9x16x32xbf16, #tpu.memory_space<vmem>>, vector<1x16x32xbf16>
    %38 = vector.shape_cast %37 : vector<1x16x32xbf16> to vector<16x32xbf16>
    %cst_53 = arith.constant dense<0.000000e+00> : vector<128x32xf32>
    %39 = tpu.matmul %36, %38, %cst_53 {dimension_numbers = #tpu.dot_dimension_numbers<[1], [0], [0], [1], [0, 0, 1, 1], [], []>} : vector<128x16xbf16>, vector<16x32xbf16>, vector<128x32xf32> -> vector<128x32xf32>
    %40 = arith.addf %33, %39 : vector<128x32xf32>
    %c0_54 = arith.constant 0 : index
    %c1_55 = arith.constant 1 : index
    %c1_56 = arith.constant 1 : index
    %c0_57 = arith.constant 0 : index
    %41 = vector.load %arg4[%c0_54, %c1_55, %c1_56, %c0_57] : memref<2x10x10x16xf32, #tpu.memory_space<vmem>>, vector<2x8x8x16xf32>
    %42 = vector.shape_cast %41 : vector<2x8x8x16xf32> to vector<128x16xf32>
    %43 = arith.truncf %42 : vector<128x16xf32> to vector<128x16xbf16>
    %c4 = arith.constant 4 : index
    %c0_58 = arith.constant 0 : index
    %c0_59 = arith.constant 0 : index
    %44 = vector.load %arg1[%c4, %c0_58, %c0_59] : memref<9x16x32xbf16, #tpu.memory_space<vmem>>, vector<1x16x32xbf16>
    %45 = vector.shape_cast %44 : vector<1x16x32xbf16> to vector<16x32xbf16>
    %cst_60 = arith.constant dense<0.000000e+00> : vector<128x32xf32>
    %46 = tpu.matmul %43, %45, %cst_60 {dimension_numbers = #tpu.dot_dimension_numbers<[1], [0], [0], [1], [0, 0, 1, 1], [], []>} : vector<128x16xbf16>, vector<16x32xbf16>, vector<128x32xf32> -> vector<128x32xf32>
    %47 = arith.addf %40, %46 : vector<128x32xf32>
    %c0_61 = arith.constant 0 : index
    %c1_62 = arith.constant 1 : index
    %c2_63 = arith.constant 2 : index
    %c0_64 = arith.constant 0 : index
    %48 = vector.load %arg4[%c0_61, %c1_62, %c2_63, %c0_64] : memref<2x10x10x16xf32, #tpu.memory_space<vmem>>, vector<2x8x8x16xf32>
    %49 = vector.shape_cast %48 : vector<2x8x8x16xf32> to vector<128x16xf32>
    %50 = arith.truncf %49 : vector<128x16xf32> to vector<128x16xbf16>
    %c5 = arith.constant 5 : index
    %c0_65 = arith.constant 0 : index
    %c0_66 = arith.constant 0 : index
    %51 = vector.load %arg1[%c5, %c0_65, %c0_66] : memref<9x16x32xbf16, #tpu.memory_space<vmem>>, vector<1x16x32xbf16>
    %52 = vector.shape_cast %51 : vector<1x16x32xbf16> to vector<16x32xbf16>
    %cst_67 = arith.constant dense<0.000000e+00> : vector<128x32xf32>
    %53 = tpu.matmul %50, %52, %cst_67 {dimension_numbers = #tpu.dot_dimension_numbers<[1], [0], [0], [1], [0, 0, 1, 1], [], []>} : vector<128x16xbf16>, vector<16x32xbf16>, vector<128x32xf32> -> vector<128x32xf32>
    %54 = arith.addf %47, %53 : vector<128x32xf32>
    %c0_68 = arith.constant 0 : index
    %c2_69 = arith.constant 2 : index
    %c0_70 = arith.constant 0 : index
    %c0_71 = arith.constant 0 : index
    %55 = vector.load %arg4[%c0_68, %c2_69, %c0_70, %c0_71] : memref<2x10x10x16xf32, #tpu.memory_space<vmem>>, vector<2x8x8x16xf32>
    %56 = vector.shape_cast %55 : vector<2x8x8x16xf32> to vector<128x16xf32>
    %57 = arith.truncf %56 : vector<128x16xf32> to vector<128x16xbf16>
    %c6 = arith.constant 6 : index
    %c0_72 = arith.constant 0 : index
    %c0_73 = arith.constant 0 : index
    %58 = vector.load %arg1[%c6, %c0_72, %c0_73] : memref<9x16x32xbf16, #tpu.memory_space<vmem>>, vector<1x16x32xbf16>
    %59 = vector.shape_cast %58 : vector<1x16x32xbf16> to vector<16x32xbf16>
    %cst_74 = arith.constant dense<0.000000e+00> : vector<128x32xf32>
    %60 = tpu.matmul %57, %59, %cst_74 {dimension_numbers = #tpu.dot_dimension_numbers<[1], [0], [0], [1], [0, 0, 1, 1], [], []>} : vector<128x16xbf16>, vector<16x32xbf16>, vector<128x32xf32> -> vector<128x32xf32>
    %61 = arith.addf %54, %60 : vector<128x32xf32>
    %c0_75 = arith.constant 0 : index
    %c2_76 = arith.constant 2 : index
    %c1_77 = arith.constant 1 : index
    %c0_78 = arith.constant 0 : index
    %62 = vector.load %arg4[%c0_75, %c2_76, %c1_77, %c0_78] : memref<2x10x10x16xf32, #tpu.memory_space<vmem>>, vector<2x8x8x16xf32>
    %63 = vector.shape_cast %62 : vector<2x8x8x16xf32> to vector<128x16xf32>
    %64 = arith.truncf %63 : vector<128x16xf32> to vector<128x16xbf16>
    %c7 = arith.constant 7 : index
    %c0_79 = arith.constant 0 : index
    %c0_80 = arith.constant 0 : index
    %65 = vector.load %arg1[%c7, %c0_79, %c0_80] : memref<9x16x32xbf16, #tpu.memory_space<vmem>>, vector<1x16x32xbf16>
    %66 = vector.shape_cast %65 : vector<1x16x32xbf16> to vector<16x32xbf16>
    %cst_81 = arith.constant dense<0.000000e+00> : vector<128x32xf32>
    %67 = tpu.matmul %64, %66, %cst_81 {dimension_numbers = #tpu.dot_dimension_numbers<[1], [0], [0], [1], [0, 0, 1, 1], [], []>} : vector<128x16xbf16>, vector<16x32xbf16>, vector<128x32xf32> -> vector<128x32xf32>
    %68 = arith.addf %61, %67 : vector<128x32xf32>
    %c0_82 = arith.constant 0 : index
    %c2_83 = arith.constant 2 : index
    %c2_84 = arith.constant 2 : index
    %c0_85 = arith.constant 0 : index
    %69 = vector.load %arg4[%c0_82, %c2_83, %c2_84, %c0_85] : memref<2x10x10x16xf32, #tpu.memory_space<vmem>>, vector<2x8x8x16xf32>
    %70 = vector.shape_cast %69 : vector<2x8x8x16xf32> to vector<128x16xf32>
    %71 = arith.truncf %70 : vector<128x16xf32> to vector<128x16xbf16>
    %c8 = arith.constant 8 : index
    %c0_86 = arith.constant 0 : index
    %c0_87 = arith.constant 0 : index
    %72 = vector.load %arg1[%c8, %c0_86, %c0_87] : memref<9x16x32xbf16, #tpu.memory_space<vmem>>, vector<1x16x32xbf16>
    %73 = vector.shape_cast %72 : vector<1x16x32xbf16> to vector<16x32xbf16>
    %cst_88 = arith.constant dense<0.000000e+00> : vector<128x32xf32>
    %74 = tpu.matmul %71, %73, %cst_88 {dimension_numbers = #tpu.dot_dimension_numbers<[1], [0], [0], [1], [0, 0, 1, 1], [], []>} : vector<128x16xbf16>, vector<16x32xbf16>, vector<128x32xf32> -> vector<128x32xf32>
    %75 = arith.addf %68, %74 : vector<128x32xf32>
    %cst_89 = arith.constant dense<0.000000e+00> : vector<32xf32>
    %76 = vector.multi_reduction <add>, %75, %cst_89 [0] : vector<128x32xf32> to vector<32xf32>
    %77 = vector.shape_cast %76 : vector<32xf32> to vector<1x32xf32>
    %cst_90 = arith.constant 7.812500e-03 : f32
    %78 = vector.broadcast %cst_90 : f32 to vector<1x32xf32>
    %79 = arith.mulf %77, %78 : vector<1x32xf32>
    %80 = vector.broadcast %79 : vector<1x32xf32> to vector<128x32xf32>
    %81 = arith.subf %75, %80 : vector<128x32xf32>
    %82 = arith.mulf %81, %81 : vector<128x32xf32>
    %cst_91 = arith.constant dense<0.000000e+00> : vector<32xf32>
    %83 = vector.multi_reduction <add>, %82, %cst_91 [0] : vector<128x32xf32> to vector<32xf32>
    %84 = vector.shape_cast %83 : vector<32xf32> to vector<1x32xf32>
    %cst_92 = arith.constant 7.812500e-03 : f32
    %85 = vector.broadcast %cst_92 : f32 to vector<1x32xf32>
    %86 = arith.mulf %84, %85 : vector<1x32xf32>
    %cst_93 = arith.constant 9.99999974E-6 : f32
    %87 = vector.broadcast %cst_93 : f32 to vector<1x32xf32>
    %88 = arith.addf %86, %87 : vector<1x32xf32>
    %89 = math.rsqrt %88 : vector<1x32xf32>
    %90 = vector.broadcast %89 : vector<1x32xf32> to vector<128x32xf32>
    %91 = arith.mulf %81, %90 : vector<128x32xf32>
    %92 = vector.extract_strided_slice %91 {offsets = [0, 0], sizes = [128, 16], strides = [1, 1]} : vector<128x32xf32> to vector<128x16xf32>
    %93 = vector.extract_strided_slice %91 {offsets = [0, 16], sizes = [128, 16], strides = [1, 1]} : vector<128x32xf32> to vector<128x16xf32>
    %94 = vector.shape_cast %92 : vector<128x16xf32> to vector<2x8x8x16xf32>
    %c0_94 = arith.constant 0 : index
    %c1_95 = arith.constant 1 : index
    %c1_96 = arith.constant 1 : index
    %c0_97 = arith.constant 0 : index
    %95 = vector.load %arg4[%c0_94, %c1_95, %c1_96, %c0_97] : memref<2x10x10x16xf32, #tpu.memory_space<vmem>>, vector<2x8x8x16xf32>
    tpu.vector_store %arg4[%c0_94, %c1_95, %c1_96, %c0_97], %94 {strides = array<i32>} : memref<2x10x10x16xf32, #tpu.memory_space<vmem>>, vector<2x8x8x16xf32>,
    %cst_98 = arith.constant 0.000000e+00 : f32
    %96 = vector.broadcast %cst_98 : f32 to vector<2x8x8x16xf32>
    %c0_99 = arith.constant 0 : index
    %c0_100 = arith.constant 0 : index
    %c0_101 = arith.constant 0 : index
    %c0_102 = arith.constant 0 : index
    %97 = vector.load %arg4[%c0_99, %c0_100, %c0_101, %c0_102] : memref<2x10x10x16xf32, #tpu.memory_space<vmem>>, vector<2x8x8x16xf32>
    %98 = arith.addf %96, %97 : vector<2x8x8x16xf32>
    %c0_103 = arith.constant 0 : index
    %c0_104 = arith.constant 0 : index
    %c1_105 = arith.constant 1 : index
    %c0_106 = arith.constant 0 : index
    %99 = vector.load %arg4[%c0_103, %c0_104, %c1_105, %c0_106] : memref<2x10x10x16xf32, #tpu.memory_space<vmem>>, vector<2x8x8x16xf32>
    %100 = arith.addf %98, %99 : vector<2x8x8x16xf32>
    %c0_107 = arith.constant 0 : index
    %c0_108 = arith.constant 0 : index
    %c2_109 = arith.constant 2 : index
    %c0_110 = arith.constant 0 : index
    %101 = vector.load %arg4[%c0_107, %c0_108, %c2_109, %c0_110] : memref<2x10x10x16xf32, #tpu.memory_space<vmem>>, vector<2x8x8x16xf32>
    %102 = arith.addf %100, %101 : vector<2x8x8x16xf32>
    %c0_111 = arith.constant 0 : index
    %c1_112 = arith.constant 1 : index
    %c0_113 = arith.constant 0 : index
    %c0_114 = arith.constant 0 : index
    %103 = vector.load %arg4[%c0_111, %c1_112, %c0_113, %c0_114] : memref<2x10x10x16xf32, #tpu.memory_space<vmem>>, vector<2x8x8x16xf32>
    %104 = arith.addf %102, %103 : vector<2x8x8x16xf32>
    %c0_115 = arith.constant 0 : index
    %c1_116 = arith.constant 1 : index
    %c1_117 = arith.constant 1 : index
    %c0_118 = arith.constant 0 : index
    %105 = vector.load %arg4[%c0_115, %c1_116, %c1_117, %c0_118] : memref<2x10x10x16xf32, #tpu.memory_space<vmem>>, vector<2x8x8x16xf32>
    %106 = arith.addf %104, %105 : vector<2x8x8x16xf32>
    %c0_119 = arith.constant 0 : index
    %c1_120 = arith.constant 1 : index
    %c2_121 = arith.constant 2 : index
    %c0_122 = arith.constant 0 : index
    %107 = vector.load %arg4[%c0_119, %c1_120, %c2_121, %c0_122] : memref<2x10x10x16xf32, #tpu.memory_space<vmem>>, vector<2x8x8x16xf32>
    %108 = arith.addf %106, %107 : vector<2x8x8x16xf32>
    %c0_123 = arith.constant 0 : index
    %c2_124 = arith.constant 2 : index
    %c0_125 = arith.constant 0 : index
    %c0_126 = arith.constant 0 : index
    %109 = vector.load %arg4[%c0_123, %c2_124, %c0_125, %c0_126] : memref<2x10x10x16xf32, #tpu.memory_space<vmem>>, vector<2x8x8x16xf32>
    %110 = arith.addf %108, %109 : vector<2x8x8x16xf32>
    %c0_127 = arith.constant 0 : index
    %c2_128 = arith.constant 2 : index
    %c1_129 = arith.constant 1 : index
    %c0_130 = arith.constant 0 : index
    %111 = vector.load %arg4[%c0_127, %c2_128, %c1_129, %c0_130] : memref<2x10x10x16xf32, #tpu.memory_space<vmem>>, vector<2x8x8x16xf32>
    %112 = arith.addf %110, %111 : vector<2x8x8x16xf32>
    %c0_131 = arith.constant 0 : index
    %c2_132 = arith.constant 2 : index
    %c2_133 = arith.constant 2 : index
    %c0_134 = arith.constant 0 : index
    %113 = vector.load %arg4[%c0_131, %c2_132, %c2_133, %c0_134] : memref<2x10x10x16xf32, #tpu.memory_space<vmem>>, vector<2x8x8x16xf32>
    %114 = arith.addf %112, %113 : vector<2x8x8x16xf32>
    %cst_135 = arith.constant 0.111111112 : f32
    %115 = vector.broadcast %cst_135 : f32 to vector<2x8x8x16xf32>
    %116 = arith.mulf %114, %115 : vector<2x8x8x16xf32>
    %117 = vector.shape_cast %116 : vector<2x8x8x16xf32> to vector<128x16xf32>
    %118 = arith.addf %93, %117 : vector<128x16xf32>
    %cst_136 = arith.constant 0.000000e+00 : f32
    %119 = vector.broadcast %cst_136 : f32 to vector<128x16xf32>
    %120 = arith.maximumf %118, %119 : vector<128x16xf32>
    %121 = vector.shape_cast %120 : vector<128x16xf32> to vector<2x8x8x16xf32>
    %c0_137 = arith.constant 0 : index
    %c1_138 = arith.constant 1 : index
    %c1_139 = arith.constant 1 : index
    %c0_140 = arith.constant 0 : index
    %122 = vector.load %arg4[%c0_137, %c1_138, %c1_139, %c0_140] : memref<2x10x10x16xf32, #tpu.memory_space<vmem>>, vector<2x8x8x16xf32>
    tpu.vector_store %arg4[%c0_137, %c1_138, %c1_139, %c0_140], %121 {strides = array<i32>} : memref<2x10x10x16xf32, #tpu.memory_space<vmem>>, vector<2x8x8x16xf32>,
    %cst_141 = arith.constant 0.000000e+00 : f32
    %123 = vector.broadcast %cst_141 : f32 to vector<128x16xf32>
    %c0_142 = arith.constant 0 : index
    %c0_143 = arith.constant 0 : index
    %c0_144 = arith.constant 0 : index
    %c0_145 = arith.constant 0 : index
    %124 = vector.load %arg4[%c0_142, %c0_143, %c0_144, %c0_145] : memref<2x10x10x16xf32, #tpu.memory_space<vmem>>, vector<2x8x8x16xf32>
    %125 = vector.shape_cast %124 : vector<2x8x8x16xf32> to vector<128x16xf32>
    %126 = arith.truncf %125 : vector<128x16xf32> to vector<128x16xbf16>
    %c0_146 = arith.constant 0 : index
    %c0_147 = arith.constant 0 : index
    %c0_148 = arith.constant 0 : index
    %127 = vector.load %arg2[%c0_146, %c0_147, %c0_148] : memref<9x16x16xbf16, #tpu.memory_space<vmem>>, vector<1x16x16xbf16>
    %128 = vector.shape_cast %127 : vector<1x16x16xbf16> to vector<16x16xbf16>
    %cst_149 = arith.constant dense<0.000000e+00> : vector<128x16xf32>
    %129 = tpu.matmul %126, %128, %cst_149 {dimension_numbers = #tpu.dot_dimension_numbers<[1], [0], [0], [1], [0, 0, 1, 1], [], []>} : vector<128x16xbf16>, vector<16x16xbf16>, vector<128x16xf32> -> vector<128x16xf32>
    %130 = arith.addf %123, %129 : vector<128x16xf32>
    %c0_150 = arith.constant 0 : index
    %c0_151 = arith.constant 0 : index
    %c1_152 = arith.constant 1 : index
    %c0_153 = arith.constant 0 : index
    %131 = vector.load %arg4[%c0_150, %c0_151, %c1_152, %c0_153] : memref<2x10x10x16xf32, #tpu.memory_space<vmem>>, vector<2x8x8x16xf32>
    %132 = vector.shape_cast %131 : vector<2x8x8x16xf32> to vector<128x16xf32>
    %133 = arith.truncf %132 : vector<128x16xf32> to vector<128x16xbf16>
    %c1_154 = arith.constant 1 : index
    %c0_155 = arith.constant 0 : index
    %c0_156 = arith.constant 0 : index
    %134 = vector.load %arg2[%c1_154, %c0_155, %c0_156] : memref<9x16x16xbf16, #tpu.memory_space<vmem>>, vector<1x16x16xbf16>
    %135 = vector.shape_cast %134 : vector<1x16x16xbf16> to vector<16x16xbf16>
    %cst_157 = arith.constant dense<0.000000e+00> : vector<128x16xf32>
    %136 = tpu.matmul %133, %135, %cst_157 {dimension_numbers = #tpu.dot_dimension_numbers<[1], [0], [0], [1], [0, 0, 1, 1], [], []>} : vector<128x16xbf16>, vector<16x16xbf16>, vector<128x16xf32> -> vector<128x16xf32>
    %137 = arith.addf %130, %136 : vector<128x16xf32>
    %c0_158 = arith.constant 0 : index
    %c0_159 = arith.constant 0 : index
    %c2_160 = arith.constant 2 : index
    %c0_161 = arith.constant 0 : index
    %138 = vector.load %arg4[%c0_158, %c0_159, %c2_160, %c0_161] : memref<2x10x10x16xf32, #tpu.memory_space<vmem>>, vector<2x8x8x16xf32>
    %139 = vector.shape_cast %138 : vector<2x8x8x16xf32> to vector<128x16xf32>
    %140 = arith.truncf %139 : vector<128x16xf32> to vector<128x16xbf16>
    %c2_162 = arith.constant 2 : index
    %c0_163 = arith.constant 0 : index
    %c0_164 = arith.constant 0 : index
    %141 = vector.load %arg2[%c2_162, %c0_163, %c0_164] : memref<9x16x16xbf16, #tpu.memory_space<vmem>>, vector<1x16x16xbf16>
    %142 = vector.shape_cast %141 : vector<1x16x16xbf16> to vector<16x16xbf16>
    %cst_165 = arith.constant dense<0.000000e+00> : vector<128x16xf32>
    %143 = tpu.matmul %140, %142, %cst_165 {dimension_numbers = #tpu.dot_dimension_numbers<[1], [0], [0], [1], [0, 0, 1, 1], [], []>} : vector<128x16xbf16>, vector<16x16xbf16>, vector<128x16xf32> -> vector<128x16xf32>
    %144 = arith.addf %137, %143 : vector<128x16xf32>
    %c0_166 = arith.constant 0 : index
    %c1_167 = arith.constant 1 : index
    %c0_168 = arith.constant 0 : index
    %c0_169 = arith.constant 0 : index
    %145 = vector.load %arg4[%c0_166, %c1_167, %c0_168, %c0_169] : memref<2x10x10x16xf32, #tpu.memory_space<vmem>>, vector<2x8x8x16xf32>
    %146 = vector.shape_cast %145 : vector<2x8x8x16xf32> to vector<128x16xf32>
    %147 = arith.truncf %146 : vector<128x16xf32> to vector<128x16xbf16>
    %c3_170 = arith.constant 3 : index
    %c0_171 = arith.constant 0 : index
    %c0_172 = arith.constant 0 : index
    %148 = vector.load %arg2[%c3_170, %c0_171, %c0_172] : memref<9x16x16xbf16, #tpu.memory_space<vmem>>, vector<1x16x16xbf16>
    %149 = vector.shape_cast %148 : vector<1x16x16xbf16> to vector<16x16xbf16>
    %cst_173 = arith.constant dense<0.000000e+00> : vector<128x16xf32>
    %150 = tpu.matmul %147, %149, %cst_173 {dimension_numbers = #tpu.dot_dimension_numbers<[1], [0], [0], [1], [0, 0, 1, 1], [], []>} : vector<128x16xbf16>, vector<16x16xbf16>, vector<128x16xf32> -> vector<128x16xf32>
    %151 = arith.addf %144, %150 : vector<128x16xf32>
    %c0_174 = arith.constant 0 : index
    %c1_175 = arith.constant 1 : index
    %c1_176 = arith.constant 1 : index
    %c0_177 = arith.constant 0 : index
    %152 = vector.load %arg4[%c0_174, %c1_175, %c1_176, %c0_177] : memref<2x10x10x16xf32, #tpu.memory_space<vmem>>, vector<2x8x8x16xf32>
    %153 = vector.shape_cast %152 : vector<2x8x8x16xf32> to vector<128x16xf32>
    %154 = arith.truncf %153 : vector<128x16xf32> to vector<128x16xbf16>
    %c4_178 = arith.constant 4 : index
    %c0_179 = arith.constant 0 : index
    %c0_180 = arith.constant 0 : index
    %155 = vector.load %arg2[%c4_178, %c0_179, %c0_180] : memref<9x16x16xbf16, #tpu.memory_space<vmem>>, vector<1x16x16xbf16>
    %156 = vector.shape_cast %155 : vector<1x16x16xbf16> to vector<16x16xbf16>
    %cst_181 = arith.constant dense<0.000000e+00> : vector<128x16xf32>
    %157 = tpu.matmul %154, %156, %cst_181 {dimension_numbers = #tpu.dot_dimension_numbers<[1], [0], [0], [1], [0, 0, 1, 1], [], []>} : vector<128x16xbf16>, vector<16x16xbf16>, vector<128x16xf32> -> vector<128x16xf32>
    %158 = arith.addf %151, %157 : vector<128x16xf32>
    %c0_182 = arith.constant 0 : index
    %c1_183 = arith.constant 1 : index
    %c2_184 = arith.constant 2 : index
    %c0_185 = arith.constant 0 : index
    %159 = vector.load %arg4[%c0_182, %c1_183, %c2_184, %c0_185] : memref<2x10x10x16xf32, #tpu.memory_space<vmem>>, vector<2x8x8x16xf32>
    %160 = vector.shape_cast %159 : vector<2x8x8x16xf32> to vector<128x16xf32>
    %161 = arith.truncf %160 : vector<128x16xf32> to vector<128x16xbf16>
    %c5_186 = arith.constant 5 : index
    %c0_187 = arith.constant 0 : index
    %c0_188 = arith.constant 0 : index
    %162 = vector.load %arg2[%c5_186, %c0_187, %c0_188] : memref<9x16x16xbf16, #tpu.memory_space<vmem>>, vector<1x16x16xbf16>
    %163 = vector.shape_cast %162 : vector<1x16x16xbf16> to vector<16x16xbf16>
    %cst_189 = arith.constant dense<0.000000e+00> : vector<128x16xf32>
    %164 = tpu.matmul %161, %163, %cst_189 {dimension_numbers = #tpu.dot_dimension_numbers<[1], [0], [0], [1], [0, 0, 1, 1], [], []>} : vector<128x16xbf16>, vector<16x16xbf16>, vector<128x16xf32> -> vector<128x16xf32>
    %165 = arith.addf %158, %164 : vector<128x16xf32>
    %c0_190 = arith.constant 0 : index
    %c2_191 = arith.constant 2 : index
    %c0_192 = arith.constant 0 : index
    %c0_193 = arith.constant 0 : index
    %166 = vector.load %arg4[%c0_190, %c2_191, %c0_192, %c0_193] : memref<2x10x10x16xf32, #tpu.memory_space<vmem>>, vector<2x8x8x16xf32>
    %167 = vector.shape_cast %166 : vector<2x8x8x16xf32> to vector<128x16xf32>
    %168 = arith.truncf %167 : vector<128x16xf32> to vector<128x16xbf16>
    %c6_194 = arith.constant 6 : index
    %c0_195 = arith.constant 0 : index
    %c0_196 = arith.constant 0 : index
    %169 = vector.load %arg2[%c6_194, %c0_195, %c0_196] : memref<9x16x16xbf16, #tpu.memory_space<vmem>>, vector<1x16x16xbf16>
    %170 = vector.shape_cast %169 : vector<1x16x16xbf16> to vector<16x16xbf16>
    %cst_197 = arith.constant dense<0.000000e+00> : vector<128x16xf32>
    %171 = tpu.matmul %168, %170, %cst_197 {dimension_numbers = #tpu.dot_dimension_numbers<[1], [0], [0], [1], [0, 0, 1, 1], [], []>} : vector<128x16xbf16>, vector<16x16xbf16>, vector<128x16xf32> -> vector<128x16xf32>
    %172 = arith.addf %165, %171 : vector<128x16xf32>
    %c0_198 = arith.constant 0 : index
    %c2_199 = arith.constant 2 : index
    %c1_200 = arith.constant 1 : index
    %c0_201 = arith.constant 0 : index
    %173 = vector.load %arg4[%c0_198, %c2_199, %c1_200, %c0_201] : memref<2x10x10x16xf32, #tpu.memory_space<vmem>>, vector<2x8x8x16xf32>
    %174 = vector.shape_cast %173 : vector<2x8x8x16xf32> to vector<128x16xf32>
    %175 = arith.truncf %174 : vector<128x16xf32> to vector<128x16xbf16>
    %c7_202 = arith.constant 7 : index
    %c0_203 = arith.constant 0 : index
    %c0_204 = arith.constant 0 : index
    %176 = vector.load %arg2[%c7_202, %c0_203, %c0_204] : memref<9x16x16xbf16, #tpu.memory_space<vmem>>, vector<1x16x16xbf16>
    %177 = vector.shape_cast %176 : vector<1x16x16xbf16> to vector<16x16xbf16>
    %cst_205 = arith.constant dense<0.000000e+00> : vector<128x16xf32>
    %178 = tpu.matmul %175, %177, %cst_205 {dimension_numbers = #tpu.dot_dimension_numbers<[1], [0], [0], [1], [0, 0, 1, 1], [], []>} : vector<128x16xbf16>, vector<16x16xbf16>, vector<128x16xf32> -> vector<128x16xf32>
    %179 = arith.addf %172, %178 : vector<128x16xf32>
    %c0_206 = arith.constant 0 : index
    %c2_207 = arith.constant 2 : index
    %c2_208 = arith.constant 2 : index
    %c0_209 = arith.constant 0 : index
    %180 = vector.load %arg4[%c0_206, %c2_207, %c2_208, %c0_209] : memref<2x10x10x16xf32, #tpu.memory_space<vmem>>, vector<2x8x8x16xf32>
    %181 = vector.shape_cast %180 : vector<2x8x8x16xf32> to vector<128x16xf32>
    %182 = arith.truncf %181 : vector<128x16xf32> to vector<128x16xbf16>
    %c8_210 = arith.constant 8 : index
    %c0_211 = arith.constant 0 : index
    %c0_212 = arith.constant 0 : index
    %183 = vector.load %arg2[%c8_210, %c0_211, %c0_212] : memref<9x16x16xbf16, #tpu.memory_space<vmem>>, vector<1x16x16xbf16>
    %184 = vector.shape_cast %183 : vector<1x16x16xbf16> to vector<16x16xbf16>
    %cst_213 = arith.constant dense<0.000000e+00> : vector<128x16xf32>
    %185 = tpu.matmul %182, %184, %cst_213 {dimension_numbers = #tpu.dot_dimension_numbers<[1], [0], [0], [1], [0, 0, 1, 1], [], []>} : vector<128x16xbf16>, vector<16x16xbf16>, vector<128x16xf32> -> vector<128x16xf32>
    %186 = arith.addf %179, %185 : vector<128x16xf32>
    %cst_214 = arith.constant dense<0.000000e+00> : vector<16xf32>
    %187 = vector.multi_reduction <add>, %186, %cst_214 [0] : vector<128x16xf32> to vector<16xf32>
    %188 = vector.shape_cast %187 : vector<16xf32> to vector<1x16xf32>
    %cst_215 = arith.constant 7.812500e-03 : f32
    %189 = vector.broadcast %cst_215 : f32 to vector<1x16xf32>
    %190 = arith.mulf %188, %189 : vector<1x16xf32>
    %191 = vector.broadcast %190 : vector<1x16xf32> to vector<128x16xf32>
    %192 = arith.subf %186, %191 : vector<128x16xf32>
    %193 = arith.mulf %192, %192 : vector<128x16xf32>
    %cst_216 = arith.constant dense<0.000000e+00> : vector<16xf32>
    %194 = vector.multi_reduction <add>, %193, %cst_216 [0] : vector<128x16xf32> to vector<16xf32>
    %195 = vector.shape_cast %194 : vector<16xf32> to vector<1x16xf32>
    %cst_217 = arith.constant 7.812500e-03 : f32
    %196 = vector.broadcast %cst_217 : f32 to vector<1x16xf32>
    %197 = arith.mulf %195, %196 : vector<1x16xf32>
    %cst_218 = arith.constant 9.99999974E-6 : f32
    %198 = vector.broadcast %cst_218 : f32 to vector<1x16xf32>
    %199 = arith.addf %197, %198 : vector<1x16xf32>
    %200 = math.rsqrt %199 : vector<1x16xf32>
    %201 = vector.broadcast %200 : vector<1x16xf32> to vector<128x16xf32>
    %202 = arith.mulf %192, %201 : vector<128x16xf32>
    %203 = arith.addf %7, %202 : vector<128x16xf32>
    %204 = vector.shape_cast %203 : vector<128x16xf32> to vector<2x8x8x16xf32>
    %c0_219 = arith.constant 0 : index
    %c0_220 = arith.constant 0 : index
    %c0_221 = arith.constant 0 : index
    %c0_222 = arith.constant 0 : index
    %205 = vector.load %arg3[%c0_219, %c0_220, %c0_221, %c0_222] : memref<2x8x8x16xf32, #tpu.memory_space<vmem>>, vector<2x8x8x16xf32>
    tpu.vector_store %arg3[%c0_219, %c0_220, %c0_221, %c0_222], %204 {strides = array<i32>} : memref<2x8x8x16xf32, #tpu.memory_space<vmem>>, vector<2x8x8x16xf32>,
    return
  }
}

</mosaic_0001>

<llo_original>
// kernel: _forward_impl.1
$region0: #{_forward_impl.1}
  #allocation0 [shape = 'u32[]', space=smem, size = 0x4, offset = 0x4, fixed_abs, tag = 'smem constant byte address 0x4 - core index']
  #allocation1 [shape = 'u32[144,128]{1,0:T(1,128)}', space=vmem, size = 0x12000, scoped, tag = 'internal scratch']
  #allocation2 [shape = 'f32[2,10,10,16]{3,2,1,0:T(8,128)}', space=vmem, size = 0x28000, scoped, tag = 'scratch operand']
  %s0 = inlined_call_operand.hbm [shape: f32[2,8,8,16], index: 0, kind: input, shape index: {}]
  %s1 = inlined_call_operand.hbm [shape: bf16[9,16,32], index: 1, kind: input, shape index: {}]
  %s2 = inlined_call_operand.hbm [shape: bf16[9,16,16], index: 2, kind: input, shape index: {}]
  %s3 = inlined_call_operand.hbm [shape: f32[2,8,8,16], index: 3, kind: output, shape index: {}]
  %s4 = sld [smem:[#allocation0]]
  $region34: #{_forward_impl.1} parent=0
    _
  %s6 = ssub.s32 1, %s4
  %s7 = scalar_select 0, %s6, %s4
  $region1: #{_forward_impl.1} parent=0
    #allocation3 [shape = 'u8[65536]{0}', space=vmem, size = 0x10000, scoped, tag = 'input window, operand 0, single buffered']
    #allocation4 [shape = 's32[1]{0}', space=sflag, size = 0x4, scoped, tag = 'scoped memory for _forward_impl.1']
    #allocation5 [shape = 's32[1]{0}', space=sflag, size = 0x4, scoped, tag = 'scoped memory for _forward_impl.1']
    #allocation6 [shape = 'u8[36864]{0}', space=vmem, size = 0x9000, scoped, tag = 'input window, operand 1, single buffered']
    #allocation7 [shape = 's32[1]{0}', space=sflag, size = 0x4, scoped, tag = 'scoped memory for _forward_impl.1']
    #allocation8 [shape = 'u8[36864]{0}', space=vmem, size = 0x9000, scoped, tag = 'input window, operand 2, single buffered']
    #allocation9 [shape = 'u8[65536]{0}', space=vmem, size = 0x10000, scoped, tag = 'output window, operand 0, single buffered']
    %8 = vsyncpa [#allocation4], 0
    %9 = vsyncpa [#allocation7], 0
    %10 = vsyncpa [#allocation5], 0
    // Predicated region
    $region2: #{_forward_impl.1} parent=1 // pred_check
      _
    $region3: #{_forward_impl.1} parent=1 // pred_check_branch
      %12 = sbr.rel (0) target = $region5
    $region4: #{_forward_impl.1} parent=1 // pred_region
      %s14 = ssub.s32 2048, 2048
      %15 = vsyncadd [#allocation4], %s14
      %s16 = sshll.u32 [#allocation3], 4
      %s17 = int_to_ptr.vmem [resolvable:$true] %s16
      %22 = dma.hbm_to_vmem [thread:$0]  %s0, 2048, %s17, [#allocation4], 128, 128, 8
    $region5: #{_forward_impl.1} parent=1 // pred_fallthru
      _
    // Predicated region
    $region6: #{_forward_impl.1} parent=1 // pred_check
      _
    $region7: #{_forward_impl.1} parent=1 // pred_check_branch
      %24 = sbr.rel (0) target = $region9
    $region8: #{_forward_impl.1} parent=1 // pred_region
      %s26 = ssub.s32 1152, 1152
      %27 = vsyncadd [#allocation7], %s26
      %s28 = sshll.u32 [#allocation6], 4
      %s29 = int_to_ptr.vmem [resolvable:$true] %s28
      %34 = dma.hbm_to_vmem [thread:$0]  %s1, 1152, %s29, [#allocation7], 64, 64, 4
    $region9: #{_forward_impl.1} parent=1 // pred_fallthru
      _
    // Predicated region
    $region10: #{_forward_impl.1} parent=1 // pred_check
      _
    $region11: #{_forward_impl.1} parent=1 // pred_check_branch
      %36 = sbr.rel (0) target = $region13
    $region12: #{_forward_impl.1} parent=1 // pred_region
      %s38 = ssub.s32 1152, 1152
      %39 = vsyncadd [#allocation7], %s38
      %s40 = sshll.u32 [#allocation8], 4
      %s41 = int_to_ptr.vmem [resolvable:$true] %s40
      %46 = dma.hbm_to_vmem [thread:$0]  %s2, 1152, %s41, [#allocation7], 64, 64, 4
    $region13: #{_forward_impl.1} parent=1 // pred_fallthru
      _
    // Predicated region
    $region14: #{_forward_impl.1} parent=1 // pred_check
      _
    $region15: #{_forward_impl.1} parent=1 // pred_check_branch
      %48 = sbr.rel (0) target = $region17
    $region16: #{_forward_impl.1} parent=1 // pred_region
      %49 = dma.done [#allocation4], 2048
    $region17: #{_forward_impl.1} parent=1 // pred_fallthru
      _
    // Predicated region
    $region18: #{_forward_impl.1} parent=1 // pred_check
      _
    $region19: #{_forward_impl.1} parent=1 // pred_check_branch
      %51 = sbr.rel (0) target = $region21
    $region20: #{_forward_impl.1} parent=1 // pred_region
      %52 = dma.done [#allocation7], 1152
    $region21: #{_forward_impl.1} parent=1 // pred_fallthru
      _
    // Predicated region
    $region22: #{_forward_impl.1} parent=1 // pred_check
      _
    $region23: #{_forward_impl.1} parent=1 // pred_check_branch
      %54 = sbr.rel (0) target = $region25
    $region24: #{_forward_impl.1} parent=1 // pred_region
      %55 = dma.done [#allocation7], 1152
    $region25: #{_forward_impl.1} parent=1 // pred_fallthru
      _
    %vm57 = vcmask 130048
    %58 = vst.msk [vmem:[#allocation2] sm:$0xff] %vm57, 0.0
    %vm59 = vcmask 123904
    %60 = vst.msk [vmem:[#allocation2 + $0x8] sm:$0x3] %vm59, 0.0
    %61 = vst.msk [vmem:[#allocation2 + $0xa0] sm:$0xff] %vm57, 0.0
    %62 = vst.msk [vmem:[#allocation2 + $0xa8] sm:$0x3] %vm59, 0.0
    %s63 = scalar_lea.vmem [#allocation2], 144
    %64 = vst.msk [vmem:[%s63] sm:$0xff] %vm57, 0.0
    %65 = vst.msk [vmem:[%s63 + $0x8] sm:$0x3] %vm59, 0.0
    %66 = vst.msk [vmem:[%s63 + $0xa0] sm:$0xff] %vm57, 0.0
    %67 = vst.msk [vmem:[%s63 + $0xa8] sm:$0x3] %vm59, 0.0
    %vm68 = vcmask 122880
    %69 = vst.msk [vmem:[#allocation2] sm:$0x1] %vm68, 0.0
    %70 = vst.msk [vmem:[#allocation2 + $0x10] sm:$0x1] %vm68, 0.0
    %71 = vst.msk [vmem:[#allocation2 + $0x20] sm:$0x1] %vm68, 0.0
    %72 = vst.msk [vmem:[#allocation2 + $0x30] sm:$0x1] %vm68, 0.0
    %73 = vst.msk [vmem:[#allocation2 + $0x40] sm:$0x1] %vm68, 0.0
    %74 = vst.msk [vmem:[#allocation2 + $0x50] sm:$0x1] %vm68, 0.0
    %75 = vst.msk [vmem:[#allocation2 + $0x60] sm:$0x1] %vm68, 0.0
    %76 = vst.msk [vmem:[#allocation2 + $0x70] sm:$0x1] %vm68, 0.0
    %77 = vst.msk [vmem:[#allocation2 + $0x80] sm:$0x1] %vm68, 0.0
    %78 = vst.msk [vmem:[#allocation2 + $0x90] sm:$0x1] %vm68, 0.0
    %79 = vst.msk [vmem:[#allocation2 + $0xa0] sm:$0x1] %vm68, 0.0
    %80 = vst.msk [vmem:[#allocation2 + $0xb0] sm:$0x1] %vm68, 0.0
    %81 = vst.msk [vmem:[#allocation2 + $0xc0] sm:$0x1] %vm68, 0.0
    %82 = vst.msk [vmem:[#allocation2 + $0xd0] sm:$0x1] %vm68, 0.0
    %83 = vst.msk [vmem:[#allocation2 + $0xe0] sm:$0x1] %vm68, 0.0
    %84 = vst.msk [vmem:[#allocation2 + $0xf0] sm:$0x1] %vm68, 0.0
    %85 = vst.msk [vmem:[#allocation2 + $0x100] sm:$0x1] %vm68, 0.0
    %86 = vst.msk [vmem:[#allocation2 + $0x110] sm:$0x1] %vm68, 0.0
    %87 = vst.msk [vmem:[#allocation2 + $0x120] sm:$0x1] %vm68, 0.0
    %88 = vst.msk [vmem:[#allocation2 + $0x130] sm:$0x1] %vm68, 0.0
    %89 = vst.msk [vmem:[#allocation2 + $0x9] sm:$0x1] %vm68, 0.0
    %90 = vst.msk [vmem:[#allocation2 + $0x19] sm:$0x1] %vm68, 0.0
    %91 = vst.msk [vmem:[#allocation2 + $0x29] sm:$0x1] %vm68, 0.0
    %92 = vst.msk [vmem:[#allocation2 + $0x39] sm:$0x1] %vm68, 0.0
    %93 = vst.msk [vmem:[#allocation2 + $0x49] sm:$0x1] %vm68, 0.0
    %94 = vst.msk [vmem:[#allocation2 + $0x59] sm:$0x1] %vm68, 0.0
    %95 = vst.msk [vmem:[#allocation2 + $0x69] sm:$0x1] %vm68, 0.0
    %96 = vst.msk [vmem:[#allocation2 + $0x79] sm:$0x1] %vm68, 0.0
    %97 = vst.msk [vmem:[#allocation2 + $0x89] sm:$0x1] %vm68, 0.0
    %98 = vst.msk [vmem:[#allocation2 + $0x99] sm:$0x1] %vm68, 0.0
    %99 = vst.msk [vmem:[#allocation2 + $0xa9] sm:$0x1] %vm68, 0.0
    %100 = vst.msk [vmem:[#allocation2 + $0xb9] sm:$0x1] %vm68, 0.0
    %101 = vst.msk [vmem:[#allocation2 + $0xc9] sm:$0x1] %vm68, 0.0
    %102 = vst.msk [vmem:[#allocation2 + $0xd9] sm:$0x1] %vm68, 0.0
    %103 = vst.msk [vmem:[#allocation2 + $0xe9] sm:$0x1] %vm68, 0.0
    %104 = vst.msk [vmem:[#allocation2 + $0xf9] sm:$0x1] %vm68, 0.0
    %105 = vst.msk [vmem:[#allocation2 + $0x109] sm:$0x1] %vm68, 0.0
    %106 = vst.msk [vmem:[#allocation2 + $0x119] sm:$0x1] %vm68, 0.0
    %107 = vst.msk [vmem:[#allocation2 + $0x129] sm:$0x1] %vm68, 0.0
    %108 = vst.msk [vmem:[#allocation2 + $0x139] sm:$0x1] %vm68, 0.0
    %v109 = vld [vmem:[#allocation3] sm:$0xff]
    %v110 = vld [vmem:[#allocation3 + $0x8] sm:$0xff]
    %v111 = vld [vmem:[#allocation3 + $0x10] sm:$0xff]
    %v112 = vld [vmem:[#allocation3 + $0x18] sm:$0xff]
    %v113 = vld [vmem:[#allocation3 + $0x20] sm:$0xff]
    %v114 = vld [vmem:[#allocation3 + $0x28] sm:$0xff]
    %v115 = vld [vmem:[#allocation3 + $0x30] sm:$0xff]
    %v116 = vld [vmem:[#allocation3 + $0x38] sm:$0xff]
    %v117 = vld [vmem:[#allocation3 + $0x40] sm:$0xff]
    %v118 = vld [vmem:[#allocation3 + $0x48] sm:$0xff]
    %v119 = vld [vmem:[#allocation3 + $0x50] sm:$0xff]
    %v120 = vld [vmem:[#allocation3 + $0x58] sm:$0xff]
    %v121 = vld [vmem:[#allocation3 + $0x60] sm:$0xff]
    %v122 = vld [vmem:[#allocation3 + $0x68] sm:$0xff]
    %v123 = vld [vmem:[#allocation3 + $0x70] sm:$0xff]
    %v124 = vld [vmem:[#allocation3 + $0x78] sm:$0xff]
    %v125 = vmax.f32 %v109, 0.0
    %v126 = vmax.f32 %v110, 0.0
    %v127 = vmax.f32 %v111, 0.0
    %v128 = vmax.f32 %v112, 0.0
    %v129 = vmax.f32 %v113, 0.0
    %v130 = vmax.f32 %v114, 0.0
    %v131 = vmax.f32 %v115, 0.0
    %v132 = vmax.f32 %v116, 0.0
    %v133 = vmax.f32 %v117, 0.0
    %v134 = vmax.f32 %v118, 0.0
    %v135 = vmax.f32 %v119, 0.0
    %v136 = vmax.f32 %v120, 0.0
    %v137 = vmax.f32 %v121, 0.0
    %v138 = vmax.f32 %v122, 0.0
    %v139 = vmax.f32 %v123, 0.0
    %v140 = vmax.f32 %v124, 0.0
    %s141 = scalar_lea.vmem [#allocation2], 16
    %142 = vst.msk [vmem:[%s141 + $0x1] sm:$0xff] %vm57, %v125
    %143 = vst.msk [vmem:[%s141 + $0x11] sm:$0xff] %vm57, %v126
    %144 = vst.msk [vmem:[%s141 + $0x21] sm:$0xff] %vm57, %v127
    %145 = vst.msk [vmem:[%s141 + $0x31] sm:$0xff] %vm57, %v128
    %146 = vst.msk [vmem:[%s141 + $0x41] sm:$0xff] %vm57, %v129
    %147 = vst.msk [vmem:[%s141 + $0x51] sm:$0xff] %vm57, %v130
    %148 = vst.msk [vmem:[%s141 + $0x61] sm:$0xff] %vm57, %v131
    %149 = vst.msk [vmem:[%s141 + $0x71] sm:$0xff] %vm57, %v132
    %150 = vst.msk [vmem:[%s141 + $0xa1] sm:$0xff] %vm57, %v133
    %151 = vst.msk [vmem:[%s141 + $0xb1] sm:$0xff] %vm57, %v134
    %152 = vst.msk [vmem:[%s141 + $0xc1] sm:$0xff] %vm57, %v135
    %153 = vst.msk [vmem:[%s141 + $0xd1] sm:$0xff] %vm57, %v136
    %154 = vst.msk [vmem:[%s141 + $0xe1] sm:$0xff] %vm57, %v137
    %155 = vst.msk [vmem:[%s141 + $0xf1] sm:$0xff] %vm57, %v138
    %156 = vst.msk [vmem:[%s141 + $0x101] sm:$0xff] %vm57, %v139
    %157 = vst.msk [vmem:[%s141 + $0x111] sm:$0xff] %vm57, %v140
    %v158 = vld [vmem:[#allocation2] sm:$0xff]
    %v159 = vld [vmem:[#allocation2 + $0x10] sm:$0xff]
    %v160 = vld [vmem:[#allocation2 + $0x20] sm:$0xff]
    %v161 = vld [vmem:[#allocation2 + $0x30] sm:$0xff]
    %v162 = vld [vmem:[#allocation2 + $0x40] sm:$0xff]
    %v163 = vld [vmem:[#allocation2 + $0x50] sm:$0xff]
    %v164 = vld [vmem:[#allocation2 + $0x60] sm:$0xff]
    %v165 = vld [vmem:[#allocation2 + $0x70] sm:$0xff]
    %v166 = vld [vmem:[#allocation2 + $0xa0] sm:$0xff]
    %v167 = vld [vmem:[#allocation2 + $0xb0] sm:$0xff]
    %v168 = vld [vmem:[#allocation2 + $0xc0] sm:$0xff]
    %v169 = vld [vmem:[#allocation2 + $0xd0] sm:$0xff]
    %v170 = vld [vmem:[#allocation2 + $0xe0] sm:$0xff]
    %v171 = vld [vmem:[#allocation2 + $0xf0] sm:$0xff]
    %v172 = vld [vmem:[#allocation2 + $0x100] sm:$0xff]
    %v173 = vld [vmem:[#allocation2 + $0x110] sm:$0xff]
    %v174 = vpack.c.bf16 %v159, %v158
    %v175 = vpack.c.bf16 %v161, %v160
    %v176 = vpack.c.bf16 %v163, %v162
    %v177 = vpack.c.bf16 %v165, %v164
    %v178 = vpack.c.bf16 %v167, %v166
    %v179 = vpack.c.bf16 %v169, %v168
    %v180 = vpack.c.bf16 %v171, %v170
    %v181 = vpack.c.bf16 %v173, %v172
    %v182 = vld [vmem:[#allocation6] sm:$0xf]
    %v183 = vld [vmem:[#allocation6 + $0x4] sm:$0xf]
    %v184 = vld [vmem:[#allocation2 + $0x1] sm:$0xff]
    %v185 = vld [vmem:[#allocation2 + $0x11] sm:$0xff]
    %v186 = vld [vmem:[#allocation2 + $0x21] sm:$0xff]
    %v187 = vld [vmem:[#allocation2 + $0x31] sm:$0xff]
    %v188 = vld [vmem:[#allocation2 + $0x41] sm:$0xff]
    %v189 = vld [vmem:[#allocation2 + $0x51] sm:$0xff]
    %v190 = vld [vmem:[#allocation2 + $0x61] sm:$0xff]
    %v191 = vld [vmem:[#allocation2 + $0x71] sm:$0xff]
    %v192 = vld [vmem:[#allocation2 + $0xa1] sm:$0xff]
    %v193 = vld [vmem:[#allocation2 + $0xb1] sm:$0xff]
    %v194 = vld [vmem:[#allocation2 + $0xc1] sm:$0xff]
    %v195 = vld [vmem:[#allocation2 + $0xd1] sm:$0xff]
    %v196 = vld [vmem:[#allocation2 + $0xe1] sm:$0xff]
    %v197 = vld [vmem:[#allocation2 + $0xf1] sm:$0xff]
    %v198 = vld [vmem:[#allocation2 + $0x101] sm:$0xff]
    %v199 = vld [vmem:[#allocation2 + $0x111] sm:$0xff]
    %v200 = vpack.c.bf16 %v185, %v184
    %v201 = vpack.c.bf16 %v187, %v186
    %v202 = vpack.c.bf16 %v189, %v188
    %v203 = vpack.c.bf16 %v191, %v190
    %v204 = vpack.c.bf16 %v193, %v192
    %v205 = vpack.c.bf16 %v195, %v194
    %v206 = vpack.c.bf16 %v197, %v196
    %v207 = vpack.c.bf16 %v199, %v198
    %s208 = scalar_lea.vmem [#allocation6], 8
    %v209 = vld [vmem:[%s208] sm:$0xf]
    %v210 = vld [vmem:[%s208 + $0x4] sm:$0xf]
    %v213 = vunpack.c.l.b16 %v209
    %v214 = vunpack.c.l.b16 %v210
    %v215 = vpack.c.b16 %v214, %v213
    %v218 = vsel %vm57, %v200, 0
    %v221 = vsel %vm57, %v201, 0
    %v224 = vsel %vm57, %v202, 0
    %v227 = vsel %vm57, %v203, 0
    %v230 = vsel %vm57, %v204, 0
    %v233 = vsel %vm57, %v205, 0
    %v236 = vsel %vm57, %v206, 0
    %v239 = vsel %vm57, %v207, 0
    %241 = vmatprep.subr.bf16.mxu0 0
    %242 = vmatpush1.bf16.msra.mxu0 %v215
    %243 = vmatprep.subr.bf16.mxu0 0
    %244 = vmatpush1.bf16.msra.mxu0 0
    %245 = vmatprep.subr.bf16.mxu0 0
    %246 = vmatpush1.bf16.msra.mxu0 0
    %247 = vmatprep.subr.bf16.mxu0 0
    %248 = vmatpush1.bf16.msra.mxu0 0
    %249 = vmatprep.subr.bf16.mxu0 0
    %250 = vmatpush1.bf16.msra.mxu0 0
    %251 = vmatprep.subr.bf16.mxu0 0
    %252 = vmatpush1.bf16.msra.mxu0 0
    %253 = vmatprep.subr.bf16.mxu0 0
    %254 = vmatpush1.bf16.msra.mxu0 0
    %255 = vmatprep.subr.bf16.mxu0 0
    %256 = vmatpush1.bf16.msra.mxu0 0
    %257 = vmatprep.subr.bf16.mxu0 0
    %258 = vmatpush1.bf16.msra.mxu0 0
    %259 = vmatprep.subr.bf16.mxu0 0
    %260 = vmatpush1.bf16.msra.mxu0 0
    %261 = vmatprep.subr.bf16.mxu0 0
    %262 = vmatpush1.bf16.msra.mxu0 0
    %263 = vmatprep.subr.bf16.mxu0 0
    %264 = vmatpush1.bf16.msra.mxu0 0
    %265 = vmatprep.subr.bf16.mxu0 0
    %266 = vmatpush1.bf16.msra.mxu0 0
    %267 = vmatprep.subr.bf16.mxu0 0
    %268 = vmatpush1.bf16.msra.mxu0 0
    %269 = vmatprep.subr.bf16.mxu0 0
    %270 = vmatpush1.bf16.msra.mxu0 0
    %271 = vmatprep.subr.bf16.mxu0 0
    %272 = vmatpush1.bf16.msra.mxu0 0
    %273 = vmatprep.mubr.bf16.mxu0 0
    %274 = vmatmul.mubr.bf16.gmra.mrb[0].mxu0 %v218
    %v275 = vpop.f32.mrb[0].mxu0
    %v276 = vadd.f32 0.0, %v275
    %v277 = vpop.f32.mrb[0].mxu0
    %v278 = vpop.f32.mrb[0].mxu0
    %v279 = vadd.f32 0.0, %v278
    %v280 = vpop.f32.mrb[0].mxu0
    %281 = vmatprep.mubr.bf16.mxu0 0
    %282 = vmatmul.mubr.bf16.gmra.mrb[0].mxu0 %v221
    %v283 = vpop.f32.mrb[0].mxu0
    %v284 = vadd.f32 0.0, %v283
    %v285 = vpop.f32.mrb[0].mxu0
    %v286 = vpop.f32.mrb[0].mxu0
    %v287 = vadd.f32 0.0, %v286
    %v288 = vpop.f32.mrb[0].mxu0
    %289 = vmatprep.mubr.bf16.mxu0 0
    %290 = vmatmul.mubr.bf16.gmra.mrb[0].mxu0 %v224
    %v291 = vpop.f32.mrb[0].mxu0
    %v292 = vadd.f32 0.0, %v291
    %v293 = vpop.f32.mrb[0].mxu0
    %v294 = vpop.f32.mrb[0].mxu0
    %v295 = vadd.f32 0.0, %v294
    %v296 = vpop.f32.mrb[0].mxu0
    %297 = vmatprep.mubr.bf16.mxu0 0
    %298 = vmatmul.mubr.bf16.gmra.mrb[0].mxu0 %v227
    %v299 = vpop.f32.mrb[0].mxu0
    %v300 = vadd.f32 0.0, %v299
    %v301 = vpop.f32.mrb[0].mxu0
    %v302 = vpop.f32.mrb[0].mxu0
    %v303 = vadd.f32 0.0, %v302
    %v304 = vpop.f32.mrb[0].mxu0
    %305 = vmatprep.mubr.bf16.mxu0 0
    %306 = vmatmul.mubr.bf16.gmra.mrb[0].mxu0 %v230
    %v307 = vpop.f32.mrb[0].mxu0
    %v308 = vadd.f32 0.0, %v307
    %v309 = vpop.f32.mrb[0].mxu0
    %v310 = vpop.f32.mrb[0].mxu0
    %v311 = vadd.f32 0.0, %v310
    %v312 = vpop.f32.mrb[0].mxu0
    %313 = vmatprep.mubr.bf16.mxu0 0
    %314 = vmatmul.mubr.bf16.gmra.mrb[0].mxu0 %v233
    %v315 = vpop.f32.mrb[0].mxu0
    %v316 = vadd.f32 0.0, %v315
    %v317 = vpop.f32.mrb[0].mxu0
    %v318 = vpop.f32.mrb[0].mxu0
    %v319 = vadd.f32 0.0, %v318
    %v320 = vpop.f32.mrb[0].mxu0
    %321 = vmatprep.mubr.bf16.mxu0 0
    %322 = vmatmul.mubr.bf16.gmra.mrb[0].mxu0 %v236
    %v323 = vpop.f32.mrb[0].mxu0
    %v324 = vadd.f32 0.0, %v323
    %v325 = vpop.f32.mrb[0].mxu0
    %v326 = vpop.f32.mrb[0].mxu0
    %v327 = vadd.f32 0.0, %v326
    %v328 = vpop.f32.mrb[0].mxu0
    %329 = vmatprep.mubr.bf16.mxu0 0
    %330 = vmatmul.mubr.bf16.gmra.mrb[0].mxu0 %v239
    %v331 = vpop.f32.mrb[0].mxu0
    %v332 = vadd.f32 0.0, %v331
    %v333 = vpop.f32.mrb[0].mxu0
    %v334 = vpop.f32.mrb[0].mxu0
    %v335 = vadd.f32 0.0, %v334
    %v336 = vpop.f32.mrb[0].mxu0
    %337 = vdwg.mxu0
    %v340 = vunpack.c.l.b16 %v182
    %v341 = vunpack.c.l.b16 %v183
    %v342 = vpack.c.b16 %v341, %v340
    %v345 = vsel %vm57, %v174, 0
    %v348 = vsel %vm57, %v175, 0
    %v351 = vsel %vm57, %v176, 0
    %v354 = vsel %vm57, %v177, 0
    %v357 = vsel %vm57, %v178, 0
    %v360 = vsel %vm57, %v179, 0
    %v363 = vsel %vm57, %v180, 0
    %v366 = vsel %vm57, %v181, 0
    %368 = vmatprep.subr.bf16.mxu0 0
    %369 = vmatpush1.bf16.msra.mxu0 %v342
    %370 = vmatprep.subr.bf16.mxu0 0
    %371 = vmatpush1.bf16.msra.mxu0 0
    %372 = vmatprep.subr.bf16.mxu0 0
    %373 = vmatpush1.bf16.msra.mxu0 0
    %374 = vmatprep.subr.bf16.mxu0 0
    %375 = vmatpush1.bf16.msra.mxu0 0
    %376 = vmatprep.subr.bf16.mxu0 0
    %377 = vmatpush1.bf16.msra.mxu0 0
    %378 = vmatprep.subr.bf16.mxu0 0
    %379 = vmatpush1.bf16.msra.mxu0 0
    %380 = vmatprep.subr.bf16.mxu0 0
    %381 = vmatpush1.bf16.msra.mxu0 0
    %382 = vmatprep.subr.bf16.mxu0 0
    %383 = vmatpush1.bf16.msra.mxu0 0
    %384 = vmatprep.subr.bf16.mxu0 0
    %385 = vmatpush1.bf16.msra.mxu0 0
    %386 = vmatprep.subr.bf16.mxu0 0
    %387 = vmatpush1.bf16.msra.mxu0 0
    %388 = vmatprep.subr.bf16.mxu0 0
    %389 = vmatpush1.bf16.msra.mxu0 0
    %390 = vmatprep.subr.bf16.mxu0 0
    %391 = vmatpush1.bf16.msra.mxu0 0
    %392 = vmatprep.subr.bf16.mxu0 0
    %393 = vmatpush1.bf16.msra.mxu0 0
    %394 = vmatprep.subr.bf16.mxu0 0
    %395 = vmatpush1.bf16.msra.mxu0 0
    %396 = vmatprep.subr.bf16.mxu0 0
    %397 = vmatpush1.bf16.msra.mxu0 0
    %398 = vmatprep.subr.bf16.mxu0 0
    %399 = vmatpush1.bf16.msra.mxu0 0
    %400 = vmatprep.mubr.bf16.mxu0 0
    %401 = vmatmul.mubr.bf16.gmra.mrb[0].mxu0 %v345
    %v402 = vpop.f32.mrb[0].mxu0
    %v403 = vadd.f32 %v276, %v402
    %v404 = vpop.f32.mrb[0].mxu0
    %v405 = vpop.f32.mrb[0].mxu0
    %v406 = vadd.f32 %v279, %v405
    %v407 = vpop.f32.mrb[0].mxu0
    %408 = vmatprep.mubr.bf16.mxu0 0
    %409 = vmatmul.mubr.bf16.gmra.mrb[0].mxu0 %v348
    %v410 = vpop.f32.mrb[0].mxu0
    %v411 = vadd.f32 %v284, %v410
    %v412 = vpop.f32.mrb[0].mxu0
    %v413 = vpop.f32.mrb[0].mxu0
    %v414 = vadd.f32 %v287, %v413
    %v415 = vpop.f32.mrb[0].mxu0
    %416 = vmatprep.mubr.bf16.mxu0 0
    %417 = vmatmul.mubr.bf16.gmra.mrb[0].mxu0 %v351
    %v418 = vpop.f32.mrb[0].mxu0
    %v419 = vadd.f32 %v292, %v418
    %v420 = vpop.f32.mrb[0].mxu0
    %v421 = vpop.f32.mrb[0].mxu0
    %v422 = vadd.f32 %v295, %v421
    %v423 = vpop.f32.mrb[0].mxu0
    %424 = vmatprep.mubr.bf16.mxu0 0
    %425 = vmatmul.mubr.bf16.gmra.mrb[0].mxu0 %v354
    %v426 = vpop.f32.mrb[0].mxu0
    %v427 = vadd.f32 %v300, %v426
    %v428 = vpop.f32.mrb[0].mxu0
    %v429 = vpop.f32.mrb[0].mxu0
    %v430 = vadd.f32 %v303, %v429
    %v431 = vpop.f32.mrb[0].mxu0
    %432 = vmatprep.mubr.bf16.mxu0 0
    %433 = vmatmul.mubr.bf16.gmra.mrb[0].mxu0 %v357
    %v434 = vpop.f32.mrb[0].mxu0
    %v435 = vadd.f32 %v308, %v434
    %v436 = vpop.f32.mrb[0].mxu0
    %v437 = vpop.f32.mrb[0].mxu0
    %v438 = vadd.f32 %v311, %v437
    %v439 = vpop.f32.mrb[0].mxu0
    %440 = vmatprep.mubr.bf16.mxu0 0
    %441 = vmatmul.mubr.bf16.gmra.mrb[0].mxu0 %v360
    %v442 = vpop.f32.mrb[0].mxu0
    %v443 = vadd.f32 %v316, %v442
    %v444 = vpop.f32.mrb[0].mxu0
    %v445 = vpop.f32.mrb[0].mxu0
    %v446 = vadd.f32 %v319, %v445
    %v447 = vpop.f32.mrb[0].mxu0
    %448 = vmatprep.mubr.bf16.mxu0 0
    %449 = vmatmul.mubr.bf16.gmra.mrb[0].mxu0 %v363
    %v450 = vpop.f32.mrb[0].mxu0
    %v451 = vadd.f32 %v324, %v450
    %v452 = vpop.f32.mrb[0].mxu0
    %v453 = vpop.f32.mrb[0].mxu0
    %v454 = vadd.f32 %v327, %v453
    %v455 = vpop.f32.mrb[0].mxu0
    %456 = vmatprep.mubr.bf16.mxu0 0
    %457 = vmatmul.mubr.bf16.gmra.mrb[0].mxu0 %v366
    %v458 = vpop.f32.mrb[0].mxu0
    %v459 = vadd.f32 %v332, %v458
    %v460 = vpop.f32.mrb[0].mxu0
    %v461 = vpop.f32.mrb[0].mxu0
    %v462 = vadd.f32 %v335, %v461
    %v463 = vpop.f32.mrb[0].mxu0
    %464 = vdwg.mxu0
    %v465 = vld [vmem:[#allocation2 + $0x2] sm:$0xff]
    %v466 = vld [vmem:[#allocation2 + $0x12] sm:$0xff]
    %v467 = vld [vmem:[#allocation2 + $0x22] sm:$0xff]
    %v468 = vld [vmem:[#allocation2 + $0x32] sm:$0xff]
    %v469 = vld [vmem:[#allocation2 + $0x42] sm:$0xff]
    %v470 = vld [vmem:[#allocation2 + $0x52] sm:$0xff]
    %v471 = vld [vmem:[#allocation2 + $0x62] sm:$0xff]
    %v472 = vld [vmem:[#allocation2 + $0x72] sm:$0xff]
    %v473 = vld [vmem:[#allocation2 + $0xa2] sm:$0xff]
    %v474 = vld [vmem:[#allocation2 + $0xb2] sm:$0xff]
    %v475 = vld [vmem:[#allocation2 + $0xc2] sm:$0xff]
    %v476 = vld [vmem:[#allocation2 + $0xd2] sm:$0xff]
    %v477 = vld [vmem:[#allocation2 + $0xe2] sm:$0xff]
    %v478 = vld [vmem:[#allocation2 + $0xf2] sm:$0xff]
    %v479 = vld [vmem:[#allocation2 + $0x102] sm:$0xff]
    %v480 = vld [vmem:[#allocation2 + $0x112] sm:$0xff]
    %v481 = vpack.c.bf16 %v466, %v465
    %v482 = vpack.c.bf16 %v468, %v467
    %v483 = vpack.c.bf16 %v470, %v469
    %v484 = vpack.c.bf16 %v472, %v471
    %v485 = vpack.c.bf16 %v474, %v473
    %v486 = vpack.c.bf16 %v476, %v475
    %v487 = vpack.c.bf16 %v478, %v477
    %v488 = vpack.c.bf16 %v480, %v479
    %s489 = scalar_lea.vmem [#allocation6], 16
    %v490 = vld [vmem:[%s489] sm:$0xf]
    %v491 = vld [vmem:[%s489 + $0x4] sm:$0xf]
    %v494 = vunpack.c.l.b16 %v490
    %v495 = vunpack.c.l.b16 %v491
    %v496 = vpack.c.b16 %v495, %v494
    %v499 = vsel %vm57, %v481, 0
    %v502 = vsel %vm57, %v482, 0
    %v505 = vsel %vm57, %v483, 0
    %v508 = vsel %vm57, %v484, 0
    %v511 = vsel %vm57, %v485, 0
    %v514 = vsel %vm57, %v486, 0
    %v517 = vsel %vm57, %v487, 0
    %v520 = vsel %vm57, %v488, 0
    %522 = vmatprep.subr.bf16.mxu0 0
    %523 = vmatpush1.bf16.msra.mxu0 %v496
    %524 = vmatprep.subr.bf16.mxu0 0
    %525 = vmatpush1.bf16.msra.mxu0 0
    %526 = vmatprep.subr.bf16.mxu0 0
    %527 = vmatpush1.bf16.msra.mxu0 0
    %528 = vmatprep.subr.bf16.mxu0 0
    %529 = vmatpush1.bf16.msra.mxu0 0
    %530 = vmatprep.subr.bf16.mxu0 0
    %531 = vmatpush1.bf16.msra.mxu0 0
    %532 = vmatprep.subr.bf16.mxu0 0
    %533 = vmatpush1.bf16.msra.mxu0 0
    %534 = vmatprep.subr.bf16.mxu0 0
    %535 = vmatpush1.bf16.msra.mxu0 0
    %536 = vmatprep.subr.bf16.mxu0 0
    %537 = vmatpush1.bf16.msra.mxu0 0
    %538 = vmatprep.subr.bf16.mxu0 0
    %539 = vmatpush1.bf16.msra.mxu0 0
    %540 = vmatprep.subr.bf16.mxu0 0
    %541 = vmatpush1.bf16.msra.mxu0 0
    %542 = vmatprep.subr.bf16.mxu0 0
    %543 = vmatpush1.bf16.msra.mxu0 0
    %544 = vmatprep.subr.bf16.mxu0 0
    %545 = vmatpush1.bf16.msra.mxu0 0
    %546 = vmatprep.subr.bf16.mxu0 0
    %547 = vmatpush1.bf16.msra.mxu0 0
    %548 = vmatprep.subr.bf16.mxu0 0
    %549 = vmatpush1.bf16.msra.mxu0 0
    %550 = vmatprep.subr.bf16.mxu0 0
    %551 = vmatpush1.bf16.msra.mxu0 0
    %552 = vmatprep.subr.bf16.mxu0 0
    %553 = vmatpush1.bf16.msra.mxu0 0
    %554 = vmatprep.mubr.bf16.mxu0 0
    %555 = vmatmul.mubr.bf16.gmra.mrb[0].mxu0 %v499
    %v556 = vpop.f32.mrb[0].mxu0
    %v557 = vadd.f32 0.0, %v556
    %v558 = vpop.f32.mrb[0].mxu0
    %v559 = vpop.f32.mrb[0].mxu0
    %v560 = vadd.f32 0.0, %v559
    %v561 = vpop.f32.mrb[0].mxu0
    %562 = vmatprep.mubr.bf16.mxu0 0
    %563 = vmatmul.mubr.bf16.gmra.mrb[0].mxu0 %v502
    %v564 = vpop.f32.mrb[0].mxu0
    %v565 = vadd.f32 0.0, %v564
    %v566 = vpop.f32.mrb[0].mxu0
    %v567 = vpop.f32.mrb[0].mxu0
    %v568 = vadd.f32 0.0, %v567
    %v569 = vpop.f32.mrb[0].mxu0
    %570 = vmatprep.mubr.bf16.mxu0 0
    %571 = vmatmul.mubr.bf16.gmra.mrb[0].mxu0 %v505
    %v572 = vpop.f32.mrb[0].mxu0
    %v573 = vadd.f32 0.0, %v572
    %v574 = vpop.f32.mrb[0].mxu0
    %v575 = vpop.f32.mrb[0].mxu0
    %v576 = vadd.f32 0.0, %v575
    %v577 = vpop.f32.mrb[0].mxu0
    %578 = vmatprep.mubr.bf16.mxu0 0
    %579 = vmatmul.mubr.bf16.gmra.mrb[0].mxu0 %v508
    %v580 = vpop.f32.mrb[0].mxu0
    %v581 = vadd.f32 0.0, %v580
    %v582 = vpop.f32.mrb[0].mxu0
    %v583 = vpop.f32.mrb[0].mxu0
    %v584 = vadd.f32 0.0, %v583
    %v585 = vpop.f32.mrb[0].mxu0
    %586 = vmatprep.mubr.bf16.mxu0 0
    %587 = vmatmul.mubr.bf16.gmra.mrb[0].mxu0 %v511
    %v588 = vpop.f32.mrb[0].mxu0
    %v589 = vadd.f32 0.0, %v588
    %v590 = vpop.f32.mrb[0].mxu0
    %v591 = vpop.f32.mrb[0].mxu0
    %v592 = vadd.f32 0.0, %v591
    %v593 = vpop.f32.mrb[0].mxu0
    %594 = vmatprep.mubr.bf16.mxu0 0
    %595 = vmatmul.mubr.bf16.gmra.mrb[0].mxu0 %v514
    %v596 = vpop.f32.mrb[0].mxu0
    %v597 = vadd.f32 0.0, %v596
    %v598 = vpop.f32.mrb[0].mxu0
    %v599 = vpop.f32.mrb[0].mxu0
    %v600 = vadd.f32 0.0, %v599
    %v601 = vpop.f32.mrb[0].mxu0
    %602 = vmatprep.mubr.bf16.mxu0 0
    %603 = vmatmul.mubr.bf16.gmra.mrb[0].mxu0 %v517
    %v604 = vpop.f32.mrb[0].mxu0
    %v605 = vadd.f32 0.0, %v604
    %v606 = vpop.f32.mrb[0].mxu0
    %v607 = vpop.f32.mrb[0].mxu0
    %v608 = vadd.f32 0.0, %v607
    %v609 = vpop.f32.mrb[0].mxu0
    %610 = vmatprep.mubr.bf16.mxu0 0
    %611 = vmatmul.mubr.bf16.gmra.mrb[0].mxu0 %v520
    %v612 = vpop.f32.mrb[0].mxu0
    %v613 = vadd.f32 0.0, %v612
    %v614 = vpop.f32.mrb[0].mxu0
    %v615 = vpop.f32.mrb[0].mxu0
    %v616 = vadd.f32 0.0, %v615
    %v617 = vpop.f32.mrb[0].mxu0
    %618 = vdwg.mxu0
    %v619 = vadd.f32 %v403, %v557
    %v620 = vadd.f32 %v406, %v560
    %v621 = vadd.f32 %v411, %v565
    %v622 = vadd.f32 %v414, %v568
    %v623 = vadd.f32 %v419, %v573
    %v624 = vadd.f32 %v422, %v576
    %v625 = vadd.f32 %v427, %v581
    %v626 = vadd.f32 %v430, %v584
    %v627 = vadd.f32 %v435, %v589
    %v628 = vadd.f32 %v438, %v592
    %v629 = vadd.f32 %v443, %v597
    %v630 = vadd.f32 %v446, %v600
    %v631 = vadd.f32 %v451, %v605
    %v632 = vadd.f32 %v454, %v608
    %v633 = vadd.f32 %v459, %v613
    %v634 = vadd.f32 %v462, %v616
    %v635 = vld [vmem:[%s141] sm:$0xff]
    %v636 = vld [vmem:[%s141 + $0x10] sm:$0xff]
    %v637 = vld [vmem:[%s141 + $0x20] sm:$0xff]
    %v638 = vld [vmem:[%s141 + $0x30] sm:$0xff]
    %v639 = vld [vmem:[%s141 + $0x40] sm:$0xff]
    %v640 = vld [vmem:[%s141 + $0x50] sm:$0xff]
    %v641 = vld [vmem:[%s141 + $0x60] sm:$0xff]
    %v642 = vld [vmem:[%s141 + $0x70] sm:$0xff]
    %v643 = vld [vmem:[%s141 + $0xa0] sm:$0xff]
    %v644 = vld [vmem:[%s141 + $0xb0] sm:$0xff]
    %v645 = vld [vmem:[%s141 + $0xc0] sm:$0xff]
    %v646 = vld [vmem:[%s141 + $0xd0] sm:$0xff]
    %v647 = vld [vmem:[%s141 + $0xe0] sm:$0xff]
    %v648 = vld [vmem:[%s141 + $0xf0] sm:$0xff]
    %v649 = vld [vmem:[%s141 + $0x100] sm:$0xff]
    %v650 = vld [vmem:[%s141 + $0x110] sm:$0xff]
    %v651 = vpack.c.bf16 %v636, %v635
    %v652 = vpack.c.bf16 %v638, %v637
    %v653 = vpack.c.bf16 %v640, %v639
    %v654 = vpack.c.bf16 %v642, %v641
    %v655 = vpack.c.bf16 %v644, %v643
    %v656 = vpack.c.bf16 %v646, %v645
    %v657 = vpack.c.bf16 %v648, %v647
    %v658 = vpack.c.bf16 %v650, %v649
    %s659 = scalar_lea.vmem [#allocation6], 24
    %v660 = vld [vmem:[%s659] sm:$0xf]
    %v661 = vld [vmem:[%s659 + $0x4] sm:$0xf]
    %v664 = vunpack.c.l.b16 %v660
    %v665 = vunpack.c.l.b16 %v661
    %v666 = vpack.c.b16 %v665, %v664
    %v669 = vsel %vm57, %v651, 0
    %v672 = vsel %vm57, %v652, 0
    %v675 = vsel %vm57, %v653, 0
    %v678 = vsel %vm57, %v654, 0
    %v681 = vsel %vm57, %v655, 0
    %v684 = vsel %vm57, %v656, 0
    %v687 = vsel %vm57, %v657, 0
    %v690 = vsel %vm57, %v658, 0
    %692 = vmatprep.subr.bf16.mxu0 0
    %693 = vmatpush1.bf16.msra.mxu0 %v666
    %694 = vmatprep.subr.bf16.mxu0 0
    %695 = vmatpush1.bf16.msra.mxu0 0
    %696 = vmatprep.subr.bf16.mxu0 0
    %697 = vmatpush1.bf16.msra.mxu0 0
    %698 = vmatprep.subr.bf16.mxu0 0
    %699 = vmatpush1.bf16.msra.mxu0 0
    %700 = vmatprep.subr.bf16.mxu0 0
    %701 = vmatpush1.bf16.msra.mxu0 0
    %702 = vmatprep.subr.bf16.mxu0 0
    %703 = vmatpush1.bf16.msra.mxu0 0
    %704 = vmatprep.subr.bf16.mxu0 0
    %705 = vmatpush1.bf16.msra.mxu0 0
    %706 = vmatprep.subr.bf16.mxu0 0
    %707 = vmatpush1.bf16.msra.mxu0 0
    %708 = vmatprep.subr.bf16.mxu0 0
    %709 = vmatpush1.bf16.msra.mxu0 0
    %710 = vmatprep.subr.bf16.mxu0 0
    %711 = vmatpush1.bf16.msra.mxu0 0
    %712 = vmatprep.subr.bf16.mxu0 0
    %713 = vmatpush1.bf16.msra.mxu0 0
    %714 = vmatprep.subr.bf16.mxu0 0
    %715 = vmatpush1.bf16.msra.mxu0 0
    %716 = vmatprep.subr.bf16.mxu0 0
    %717 = vmatpush1.bf16.msra.mxu0 0
    %718 = vmatprep.subr.bf16.mxu0 0
    %719 = vmatpush1.bf16.msra.mxu0 0
    %720 = vmatprep.subr.bf16.mxu0 0
    %721 = vmatpush1.bf16.msra.mxu0 0
    %722 = vmatprep.subr.bf16.mxu0 0
    %723 = vmatpush1.bf16.msra.mxu0 0
    %724 = vmatprep.mubr.bf16.mxu0 0
    %725 = vmatmul.mubr.bf16.gmra.mrb[0].mxu0 %v669
    %v726 = vpop.f32.mrb[0].mxu0
    %v727 = vadd.f32 0.0, %v726
    %v728 = vpop.f32.mrb[0].mxu0
    %v729 = vpop.f32.mrb[0].mxu0
    %v730 = vadd.f32 0.0, %v729
    %v731 = vpop.f32.mrb[0].mxu0
    %732 = vmatprep.mubr.bf16.mxu0 0
    %733 = vmatmul.mubr.bf16.gmra.mrb[0].mxu0 %v672
    %v734 = vpop.f32.mrb[0].mxu0
    %v735 = vadd.f32 0.0, %v734
    %v736 = vpop.f32.mrb[0].mxu0
    %v737 = vpop.f32.mrb[0].mxu0
    %v738 = vadd.f32 0.0, %v737
    %v739 = vpop.f32.mrb[0].mxu0
    %740 = vmatprep.mubr.bf16.mxu0 0
    %741 = vmatmul.mubr.bf16.gmra.mrb[0].mxu0 %v675
    %v742 = vpop.f32.mrb[0].mxu0
    %v743 = vadd.f32 0.0, %v742
    %v744 = vpop.f32.mrb[0].mxu0
    %v745 = vpop.f32.mrb[0].mxu0
    %v746 = vadd.f32 0.0, %v745
    %v747 = vpop.f32.mrb[0].mxu0
    %748 = vmatprep.mubr.bf16.mxu0 0
    %749 = vmatmul.mubr.bf16.gmra.mrb[0].mxu0 %v678
    %v750 = vpop.f32.mrb[0].mxu0
    %v751 = vadd.f32 0.0, %v750
    %v752 = vpop.f32.mrb[0].mxu0
    %v753 = vpop.f32.mrb[0].mxu0
    %v754 = vadd.f32 0.0, %v753
    %v755 = vpop.f32.mrb[0].mxu0
    %756 = vmatprep.mubr.bf16.mxu0 0
    %757 = vmatmul.mubr.bf16.gmra.mrb[0].mxu0 %v681
    %v758 = vpop.f32.mrb[0].mxu0
    %v759 = vadd.f32 0.0, %v758
    %v760 = vpop.f32.mrb[0].mxu0
    %v761 = vpop.f32.mrb[0].mxu0
    %v762 = vadd.f32 0.0, %v761
    %v763 = vpop.f32.mrb[0].mxu0
    %764 = vmatprep.mubr.bf16.mxu0 0
    %765 = vmatmul.mubr.bf16.gmra.mrb[0].mxu0 %v684
    %v766 = vpop.f32.mrb[0].mxu0
    %v767 = vadd.f32 0.0, %v766
    %v768 = vpop.f32.mrb[0].mxu0
    %v769 = vpop.f32.mrb[0].mxu0
    %v770 = vadd.f32 0.0, %v769
    %v771 = vpop.f32.mrb[0].mxu0
    %772 = vmatprep.mubr.bf16.mxu0 0
    %773 = vmatmul.mubr.bf16.gmra.mrb[0].mxu0 %v687
    %v774 = vpop.f32.mrb[0].mxu0
    %v775 = vadd.f32 0.0, %v774
    %v776 = vpop.f32.mrb[0].mxu0
    %v777 = vpop.f32.mrb[0].mxu0
    %v778 = vadd.f32 0.0, %v777
    %v779 = vpop.f32.mrb[0].mxu0
    %780 = vmatprep.mubr.bf16.mxu0 0
    %781 = vmatmul.mubr.bf16.gmra.mrb[0].mxu0 %v690
    %v782 = vpop.f32.mrb[0].mxu0
    %v783 = vadd.f32 0.0, %v782
    %v784 = vpop.f32.mrb[0].mxu0
    %v785 = vpop.f32.mrb[0].mxu0
    %v786 = vadd.f32 0.0, %v785
    %v787 = vpop.f32.mrb[0].mxu0
    %788 = vdwg.mxu0
    %v789 = vadd.f32 %v619, %v727
    %v790 = vadd.f32 %v620, %v730
    %v791 = vadd.f32 %v621, %v735
    %v792 = vadd.f32 %v622, %v738
    %v793 = vadd.f32 %v623, %v743
    %v794 = vadd.f32 %v624, %v746
    %v795 = vadd.f32 %v625, %v751
    %v796 = vadd.f32 %v626, %v754
    %v797 = vadd.f32 %v627, %v759
    %v798 = vadd.f32 %v628, %v762
    %v799 = vadd.f32 %v629, %v767
    %v800 = vadd.f32 %v630, %v770
    %v801 = vadd.f32 %v631, %v775
    %v802 = vadd.f32 %v632, %v778
    %v803 = vadd.f32 %v633, %v783
    %v804 = vadd.f32 %v634, %v786
    %v805 = vld [vmem:[%s141 + $0x1] sm:$0xff]
    %v806 = vld [vmem:[%s141 + $0x11] sm:$0xff]
    %v807 = vld [vmem:[%s141 + $0x21] sm:$0xff]
    %v808 = vld [vmem:[%s141 + $0x31] sm:$0xff]
    %v809 = vld [vmem:[%s141 + $0x41] sm:$0xff]
    %v810 = vld [vmem:[%s141 + $0x51] sm:$0xff]
    %v811 = vld [vmem:[%s141 + $0x61] sm:$0xff]
    %v812 = vld [vmem:[%s141 + $0x71] sm:$0xff]
    %v813 = vld [vmem:[%s141 + $0xa1] sm:$0xff]
    %v814 = vld [vmem:[%s141 + $0xb1] sm:$0xff]
    %v815 = vld [vmem:[%s141 + $0xc1] sm:$0xff]
    %v816 = vld [vmem:[%s141 + $0xd1] sm:$0xff]
    %v817 = vld [vmem:[%s141 + $0xe1] sm:$0xff]
    %v818 = vld [vmem:[%s141 + $0xf1] sm:$0xff]
    %v819 = vld [vmem:[%s141 + $0x101] sm:$0xff]
    %v820 = vld [vmem:[%s141 + $0x111] sm:$0xff]
    %v821 = vpack.c.bf16 %v806, %v805
    %v822 = vpack.c.bf16 %v808, %v807
    %v823 = vpack.c.bf16 %v810, %v809
    %v824 = vpack.c.bf16 %v812, %v811
    %v825 = vpack.c.bf16 %v814, %v813
    %v826 = vpack.c.bf16 %v816, %v815
    %v827 = vpack.c.bf16 %v818, %v817
    %v828 = vpack.c.bf16 %v820, %v819
    %s829 = scalar_lea.vmem [#allocation6], 32
    %v830 = vld [vmem:[%s829] sm:$0xf]
    %v831 = vld [vmem:[%s829 + $0x4] sm:$0xf]
    %v834 = vunpack.c.l.b16 %v830
    %v835 = vunpack.c.l.b16 %v831
    %v836 = vpack.c.b16 %v835, %v834
    %v839 = vsel %vm57, %v821, 0
    %v842 = vsel %vm57, %v822, 0
    %v845 = vsel %vm57, %v823, 0
    %v848 = vsel %vm57, %v824, 0
    %v851 = vsel %vm57, %v825, 0
    %v854 = vsel %vm57, %v826, 0
    %v857 = vsel %vm57, %v827, 0
    %v860 = vsel %vm57, %v828, 0
    %862 = vmatprep.subr.bf16.mxu0 0
    %863 = vmatpush1.bf16.msra.mxu0 %v836
    %864 = vmatprep.subr.bf16.mxu0 0
    %865 = vmatpush1.bf16.msra.mxu0 0
    %866 = vmatprep.subr.bf16.mxu0 0
    %867 = vmatpush1.bf16.msra.mxu0 0
    %868 = vmatprep.subr.bf16.mxu0 0
    %869 = vmatpush1.bf16.msra.mxu0 0
    %870 = vmatprep.subr.bf16.mxu0 0
    %871 = vmatpush1.bf16.msra.mxu0 0
    %872 = vmatprep.subr.bf16.mxu0 0
    %873 = vmatpush1.bf16.msra.mxu0 0
    %874 = vmatprep.subr.bf16.mxu0 0
    %875 = vmatpush1.bf16.msra.mxu0 0
    %876 = vmatprep.subr.bf16.mxu0 0
    %877 = vmatpush1.bf16.msra.mxu0 0
    %878 = vmatprep.subr.bf16.mxu0 0
    %879 = vmatpush1.bf16.msra.mxu0 0
    %880 = vmatprep.subr.bf16.mxu0 0
    %881 = vmatpush1.bf16.msra.mxu0 0
    %882 = vmatprep.subr.bf16.mxu0 0
    %883 = vmatpush1.bf16.msra.mxu0 0
    %884 = vmatprep.subr.bf16.mxu0 0
    %885 = vmatpush1.bf16.msra.mxu0 0
    %886 = vmatprep.subr.bf16.mxu0 0
    %887 = vmatpush1.bf16.msra.mxu0 0
    %888 = vmatprep.subr.bf16.mxu0 0
    %889 = vmatpush1.bf16.msra.mxu0 0
    %890 = vmatprep.subr.bf16.mxu0 0
    %891 = vmatpush1.bf16.msra.mxu0 0
    %892 = vmatprep.subr.bf16.mxu0 0
    %893 = vmatpush1.bf16.msra.mxu0 0
    %894 = vmatprep.mubr.bf16.mxu0 0
    %895 = vmatmul.mubr.bf16.gmra.mrb[0].mxu0 %v839
    %v896 = vpop.f32.mrb[0].mxu0
    %v897 = vadd.f32 0.0, %v896
    %v898 = vpop.f32.mrb[0].mxu0
    %v899 = vpop.f32.mrb[0].mxu0
    %v900 = vadd.f32 0.0, %v899
    %v901 = vpop.f32.mrb[0].mxu0
    %902 = vmatprep.mubr.bf16.mxu0 0
    %903 = vmatmul.mubr.bf16.gmra.mrb[0].mxu0 %v842
    %v904 = vpop.f32.mrb[0].mxu0
    %v905 = vadd.f32 0.0, %v904
    %v906 = vpop.f32.mrb[0].mxu0
    %v907 = vpop.f32.mrb[0].mxu0
    %v908 = vadd.f32 0.0, %v907
    %v909 = vpop.f32.mrb[0].mxu0
    %910 = vmatprep.mubr.bf16.mxu0 0
    %911 = vmatmul.mubr.bf16.gmra.mrb[0].mxu0 %v845
    %v912 = vpop.f32.mrb[0].mxu0
    %v913 = vadd.f32 0.0, %v912
    %v914 = vpop.f32.mrb[0].mxu0
    %v915 = vpop.f32.mrb[0].mxu0
    %v916 = vadd.f32 0.0, %v915
    %v917 = vpop.f32.mrb[0].mxu0
    %918 = vmatprep.mubr.bf16.mxu0 0
    %919 = vmatmul.mubr.bf16.gmra.mrb[0].mxu0 %v848
    %v920 = vpop.f32.mrb[0].mxu0
    %v921 = vadd.f32 0.0, %v920
    %v922 = vpop.f32.mrb[0].mxu0
    %v923 = vpop.f32.mrb[0].mxu0
    %v924 = vadd.f32 0.0, %v923
    %v925 = vpop.f32.mrb[0].mxu0
    %926 = vmatprep.mubr.bf16.mxu0 0
    %927 = vmatmul.mubr.bf16.gmra.mrb[0].mxu0 %v851
    %v928 = vpop.f32.mrb[0].mxu0
    %v929 = vadd.f32 0.0, %v928
    %v930 = vpop.f32.mrb[0].mxu0
    %v931 = vpop.f32.mrb[0].mxu0
    %v932 = vadd.f32 0.0, %v931
    %v933 = vpop.f32.mrb[0].mxu0
    %934 = vmatprep.mubr.bf16.mxu0 0
    %935 = vmatmul.mubr.bf16.gmra.mrb[0].mxu0 %v854
    %v936 = vpop.f32.mrb[0].mxu0
    %v937 = vadd.f32 0.0, %v936
    %v938 = vpop.f32.mrb[0].mxu0
    %v939 = vpop.f32.mrb[0].mxu0
    %v940 = vadd.f32 0.0, %v939
    %v941 = vpop.f32.mrb[0].mxu0
    %942 = vmatprep.mubr.bf16.mxu0 0
    %943 = vmatmul.mubr.bf16.gmra.mrb[0].mxu0 %v857
    %v944 = vpop.f32.mrb[0].mxu0
    %v945 = vadd.f32 0.0, %v944
    %v946 = vpop.f32.mrb[0].mxu0
    %v947 = vpop.f32.mrb[0].mxu0
    %v948 = vadd.f32 0.0, %v947
    %v949 = vpop.f32.mrb[0].mxu0
    %950 = vmatprep.mubr.bf16.mxu0 0
    %951 = vmatmul.mubr.bf16.gmra.mrb[0].mxu0 %v860
    %v952 = vpop.f32.mrb[0].mxu0
    %v953 = vadd.f32 0.0, %v952
    %v954 = vpop.f32.mrb[0].mxu0
    %v955 = vpop.f32.mrb[0].mxu0
    %v956 = vadd.f32 0.0, %v955
    %v957 = vpop.f32.mrb[0].mxu0
    %958 = vdwg.mxu0
    %v959 = vadd.f32 %v789, %v897
    %v960 = vadd.f32 %v790, %v900
    %v961 = vadd.f32 %v791, %v905
    %v962 = vadd.f32 %v792, %v908
    %v963 = vadd.f32 %v793, %v913
    %v964 = vadd.f32 %v794, %v916
    %v965 = vadd.f32 %v795, %v921
    %v966 = vadd.f32 %v796, %v924
    %v967 = vadd.f32 %v797, %v929
    %v968 = vadd.f32 %v798, %v932
    %v969 = vadd.f32 %v799, %v937
    %v970 = vadd.f32 %v800, %v940
    %v971 = vadd.f32 %v801, %v945
    %v972 = vadd.f32 %v802, %v948
    %v973 = vadd.f32 %v803, %v953
    %v974 = vadd.f32 %v804, %v956
    %v975 = vld [vmem:[%s141 + $0x2] sm:$0xff]
    %v976 = vld [vmem:[%s141 + $0x12] sm:$0xff]
    %v977 = vld [vmem:[%s141 + $0x22] sm:$0xff]
    %v978 = vld [vmem:[%s141 + $0x32] sm:$0xff]
    %v979 = vld [vmem:[%s141 + $0x42] sm:$0xff]
    %v980 = vld [vmem:[%s141 + $0x52] sm:$0xff]
    %v981 = vld [vmem:[%s141 + $0x62] sm:$0xff]
    %v982 = vld [vmem:[%s141 + $0x72] sm:$0xff]
    %v983 = vld [vmem:[%s141 + $0xa2] sm:$0xff]
    %v984 = vld [vmem:[%s141 + $0xb2] sm:$0xff]
    %v985 = vld [vmem:[%s141 + $0xc2] sm:$0xff]
    %v986 = vld [vmem:[%s141 + $0xd2] sm:$0xff]
    %v987 = vld [vmem:[%s141 + $0xe2] sm:$0xff]
    %v988 = vld [vmem:[%s141 + $0xf2] sm:$0xff]
    %v989 = vld [vmem:[%s141 + $0x102] sm:$0xff]
    %v990 = vld [vmem:[%s141 + $0x112] sm:$0xff]
    %v991 = vpack.c.bf16 %v976, %v975
    %v992 = vpack.c.bf16 %v978, %v977
    %v993 = vpack.c.bf16 %v980, %v979
    %v994 = vpack.c.bf16 %v982, %v981
    %v995 = vpack.c.bf16 %v984, %v983
    %v996 = vpack.c.bf16 %v986, %v985
    %v997 = vpack.c.bf16 %v988, %v987
    %v998 = vpack.c.bf16 %v990, %v989
    %s999 = scalar_lea.vmem [#allocation6], 40
    %v1000 = vld [vmem:[%s999] sm:$0xf]
    %v1001 = vld [vmem:[%s999 + $0x4] sm:$0xf]
    %v1004 = vunpack.c.l.b16 %v1000
    %v1005 = vunpack.c.l.b16 %v1001
    %v1006 = vpack.c.b16 %v1005, %v1004
    %v1009 = vsel %vm57, %v991, 0
    %v1012 = vsel %vm57, %v992, 0
    %v1015 = vsel %vm57, %v993, 0
    %v1018 = vsel %vm57, %v994, 0
    %v1021 = vsel %vm57, %v995, 0
    %v1024 = vsel %vm57, %v996, 0
    %v1027 = vsel %vm57, %v997, 0
    %v1030 = vsel %vm57, %v998, 0
    %1032 = vmatprep.subr.bf16.mxu0 0
    %1033 = vmatpush1.bf16.msra.mxu0 %v1006
    %1034 = vmatprep.subr.bf16.mxu0 0
    %1035 = vmatpush1.bf16.msra.mxu0 0
    %1036 = vmatprep.subr.bf16.mxu0 0
    %1037 = vmatpush1.bf16.msra.mxu0 0
    %1038 = vmatprep.subr.bf16.mxu0 0
    %1039 = vmatpush1.bf16.msra.mxu0 0
    %1040 = vmatprep.subr.bf16.mxu0 0
    %1041 = vmatpush1.bf16.msra.mxu0 0
    %1042 = vmatprep.subr.bf16.mxu0 0
    %1043 = vmatpush1.bf16.msra.mxu0 0
    %1044 = vmatprep.subr.bf16.mxu0 0
    %1045 = vmatpush1.bf16.msra.mxu0 0
    %1046 = vmatprep.subr.bf16.mxu0 0
    %1047 = vmatpush1.bf16.msra.mxu0 0
    %1048 = vmatprep.subr.bf16.mxu0 0
    %1049 = vmatpush1.bf16.msra.mxu0 0
    %1050 = vmatprep.subr.bf16.mxu0 0
    %1051 = vmatpush1.bf16.msra.mxu0 0
    %1052 = vmatprep.subr.bf16.mxu0 0
    %1053 = vmatpush1.bf16.msra.mxu0 0
    %1054 = vmatprep.subr.bf16.mxu0 0
    %1055 = vmatpush1.bf16.msra.mxu0 0
    %1056 = vmatprep.subr.bf16.mxu0 0
    %1057 = vmatpush1.bf16.msra.mxu0 0
    %1058 = vmatprep.subr.bf16.mxu0 0
    %1059 = vmatpush1.bf16.msra.mxu0 0
    %1060 = vmatprep.subr.bf16.mxu0 0
    %1061 = vmatpush1.bf16.msra.mxu0 0
    %1062 = vmatprep.subr.bf16.mxu0 0
    %1063 = vmatpush1.bf16.msra.mxu0 0
    %1064 = vmatprep.mubr.bf16.mxu0 0
    %1065 = vmatmul.mubr.bf16.gmra.mrb[0].mxu0 %v1009
    %v1066 = vpop.f32.mrb[0].mxu0
    %v1067 = vadd.f32 0.0, %v1066
    %v1068 = vpop.f32.mrb[0].mxu0
    %v1069 = vpop.f32.mrb[0].mxu0
    %v1070 = vadd.f32 0.0, %v1069
    %v1071 = vpop.f32.mrb[0].mxu0
    %1072 = vmatprep.mubr.bf16.mxu0 0
    %1073 = vmatmul.mubr.bf16.gmra.mrb[0].mxu0 %v1012
    %v1074 = vpop.f32.mrb[0].mxu0
    %v1075 = vadd.f32 0.0, %v1074
    %v1076 = vpop.f32.mrb[0].mxu0
    %v1077 = vpop.f32.mrb[0].mxu0
    %v1078 = vadd.f32 0.0, %v1077
    %v1079 = vpop.f32.mrb[0].mxu0
    %1080 = vmatprep.mubr.bf16.mxu0 0
    %1081 = vmatmul.mubr.bf16.gmra.mrb[0].mxu0 %v1015
    %v1082 = vpop.f32.mrb[0].mxu0
    %v1083 = vadd.f32 0.0, %v1082
    %v1084 = vpop.f32.mrb[0].mxu0
    %v1085 = vpop.f32.mrb[0].mxu0
    %v1086 = vadd.f32 0.0, %v1085
    %v1087 = vpop.f32.mrb[0].mxu0
    %1088 = vmatprep.mubr.bf16.mxu0 0
    %1089 = vmatmul.mubr.bf16.gmra.mrb[0].mxu0 %v1018
    %v1090 = vpop.f32.mrb[0].mxu0
    %v1091 = vadd.f32 0.0, %v1090
    %v1092 = vpop.f32.mrb[0].mxu0
    %v1093 = vpop.f32.mrb[0].mxu0
    %v1094 = vadd.f32 0.0, %v1093
    %v1095 = vpop.f32.mrb[0].mxu0
    %1096 = vmatprep.mubr.bf16.mxu0 0
    %1097 = vmatmul.mubr.bf16.gmra.mrb[0].mxu0 %v1021
    %v1098 = vpop.f32.mrb[0].mxu0
    %v1099 = vadd.f32 0.0, %v1098
    %v1100 = vpop.f32.mrb[0].mxu0
    %v1101 = vpop.f32.mrb[0].mxu0
    %v1102 = vadd.f32 0.0, %v1101
    %v1103 = vpop.f32.mrb[0].mxu0
    %1104 = vmatprep.mubr.bf16.mxu0 0
    %1105 = vmatmul.mubr.bf16.gmra.mrb[0].mxu0 %v1024
    %v1106 = vpop.f32.mrb[0].mxu0
    %v1107 = vadd.f32 0.0, %v1106
    %v1108 = vpop.f32.mrb[0].mxu0
    %v1109 = vpop.f32.mrb[0].mxu0
    %v1110 = vadd.f32 0.0, %v1109
    %v1111 = vpop.f32.mrb[0].mxu0
    %1112 = vmatprep.mubr.bf16.mxu0 0
    %1113 = vmatmul.mubr.bf16.gmra.mrb[0].mxu0 %v1027
    %v1114 = vpop.f32.mrb[0].mxu0
    %v1115 = vadd.f32 0.0, %v1114
    %v1116 = vpop.f32.mrb[0].mxu0
    %v1117 = vpop.f32.mrb[0].mxu0
    %v1118 = vadd.f32 0.0, %v1117
    %v1119 = vpop.f32.mrb[0].mxu0
    %1120 = vmatprep.mubr.bf16.mxu0 0
    %1121 = vmatmul.mubr.bf16.gmra.mrb[0].mxu0 %v1030
    %v1122 = vpop.f32.mrb[0].mxu0
    %v1123 = vadd.f32 0.0, %v1122
    %v1124 = vpop.f32.mrb[0].mxu0
    %v1125 = vpop.f32.mrb[0].mxu0
    %v1126 = vadd.f32 0.0, %v1125
    %v1127 = vpop.f32.mrb[0].mxu0
    %1128 = vdwg.mxu0
    %v1129 = vadd.f32 %v959, %v1067
    %v1130 = vadd.f32 %v960, %v1070
    %v1131 = vadd.f32 %v961, %v1075
    %v1132 = vadd.f32 %v962, %v1078
    %v1133 = vadd.f32 %v963, %v1083
    %v1134 = vadd.f32 %v964, %v1086
    %v1135 = vadd.f32 %v965, %v1091
    %v1136 = vadd.f32 %v966, %v1094
    %v1137 = vadd.f32 %v967, %v1099
    %v1138 = vadd.f32 %v968, %v1102
    %v1139 = vadd.f32 %v969, %v1107
    %v1140 = vadd.f32 %v970, %v1110
    %v1141 = vadd.f32 %v971, %v1115
    %v1142 = vadd.f32 %v972, %v1118
    %v1143 = vadd.f32 %v973, %v1123
    %v1144 = vadd.f32 %v974, %v1126
    %s1145 = scalar_lea.vmem [#allocation2], 32
    %v1146 = vld [vmem:[%s1145] sm:$0xff]
    %v1147 = vld [vmem:[%s1145 + $0x10] sm:$0xff]
    %v1148 = vld [vmem:[%s1145 + $0x20] sm:$0xff]
    %v1149 = vld [vmem:[%s1145 + $0x30] sm:$0xff]
    %v1150 = vld [vmem:[%s1145 + $0x40] sm:$0xff]
    %v1151 = vld [vmem:[%s1145 + $0x50] sm:$0xff]
    %v1152 = vld [vmem:[%s1145 + $0x60] sm:$0xff]
    %v1153 = vld [vmem:[%s1145 + $0x70] sm:$0xff]
    %v1154 = vld [vmem:[%s1145 + $0xa0] sm:$0xff]
    %v1155 = vld [vmem:[%s1145 + $0xb0] sm:$0xff]
    %v1156 = vld [vmem:[%s1145 + $0xc0] sm:$0xff]
    %v1157 = vld [vmem:[%s1145 + $0xd0] sm:$0xff]
    %v1158 = vld [vmem:[%s1145 + $0xe0] sm:$0xff]
    %v1159 = vld [vmem:[%s1145 + $0xf0] sm:$0xff]
    %v1160 = vld [vmem:[%s1145 + $0x100] sm:$0xff]
    %v1161 = vld [vmem:[%s1145 + $0x110] sm:$0xff]
    %v1162 = vpack.c.bf16 %v1147, %v1146
    %v1163 = vpack.c.bf16 %v1149, %v1148
    %v1164 = vpack.c.bf16 %v1151, %v1150
    %v1165 = vpack.c.bf16 %v1153, %v1152
    %v1166 = vpack.c.bf16 %v1155, %v1154
    %v1167 = vpack.c.bf16 %v1157, %v1156
    %v1168 = vpack.c.bf16 %v1159, %v1158
    %v1169 = vpack.c.bf16 %v1161, %v1160
    %s1170 = scalar_lea.vmem [#allocation6], 48
    %v1171 = vld [vmem:[%s1170] sm:$0xf]
    %v1172 = vld [vmem:[%s1170 + $0x4] sm:$0xf]
    %v1175 = vunpack.c.l.b16 %v1171
    %v1176 = vunpack.c.l.b16 %v1172
    %v1177 = vpack.c.b16 %v1176, %v1175
    %v1180 = vsel %vm57, %v1162, 0
    %v1183 = vsel %vm57, %v1163, 0
    %v1186 = vsel %vm57, %v1164, 0
    %v1189 = vsel %vm57, %v1165, 0
    %v1192 = vsel %vm57, %v1166, 0
    %v1195 = vsel %vm57, %v1167, 0
    %v1198 = vsel %vm57, %v1168, 0
    %v1201 = vsel %vm57, %v1169, 0
    %1203 = vmatprep.subr.bf16.mxu0 0
    %1204 = vmatpush1.bf16.msra.mxu0 %v1177
    %1205 = vmatprep.subr.bf16.mxu0 0
    %1206 = vmatpush1.bf16.msra.mxu0 0
    %1207 = vmatprep.subr.bf16.mxu0 0
    %1208 = vmatpush1.bf16.msra.mxu0 0
    %1209 = vmatprep.subr.bf16.mxu0 0
    %1210 = vmatpush1.bf16.msra.mxu0 0
    %1211 = vmatprep.subr.bf16.mxu0 0
    %1212 = vmatpush1.bf16.msra.mxu0 0
    %1213 = vmatprep.subr.bf16.mxu0 0
    %1214 = vmatpush1.bf16.msra.mxu0 0
    %1215 = vmatprep.subr.bf16.mxu0 0
    %1216 = vmatpush1.bf16.msra.mxu0 0
    %1217 = vmatprep.subr.bf16.mxu0 0
    %1218 = vmatpush1.bf16.msra.mxu0 0
    %1219 = vmatprep.subr.bf16.mxu0 0
    %1220 = vmatpush1.bf16.msra.mxu0 0
    %1221 = vmatprep.subr.bf16.mxu0 0
    %1222 = vmatpush1.bf16.msra.mxu0 0
    %1223 = vmatprep.subr.bf16.mxu0 0
    %1224 = vmatpush1.bf16.msra.mxu0 0
    %1225 = vmatprep.subr.bf16.mxu0 0
    %1226 = vmatpush1.bf16.msra.mxu0 0
    %1227 = vmatprep.subr.bf16.mxu0 0
    %1228 = vmatpush1.bf16.msra.mxu0 0
    %1229 = vmatprep.subr.bf16.mxu0 0
    %1230 = vmatpush1.bf16.msra.mxu0 0
    %1231 = vmatprep.subr.bf16.mxu0 0
    %1232 = vmatpush1.bf16.msra.mxu0 0
    %1233 = vmatprep.subr.bf16.mxu0 0
    %1234 = vmatpush1.bf16.msra.mxu0 0
    %1235 = vmatprep.mubr.bf16.mxu0 0
    %1236 = vmatmul.mubr.bf16.gmra.mrb[0].mxu0 %v1180
    %v1237 = vpop.f32.mrb[0].mxu0
    %v1238 = vadd.f32 0.0, %v1237
    %v1239 = vpop.f32.mrb[0].mxu0
    %v1240 = vpop.f32.mrb[0].mxu0
    %v1241 = vadd.f32 0.0, %v1240
    %v1242 = vpop.f32.mrb[0].mxu0
    %1243 = vmatprep.mubr.bf16.mxu0 0
    %1244 = vmatmul.mubr.bf16.gmra.mrb[0].mxu0 %v1183
    %v1245 = vpop.f32.mrb[0].mxu0
    %v1246 = vadd.f32 0.0, %v1245
    %v1247 = vpop.f32.mrb[0].mxu0
    %v1248 = vpop.f32.mrb[0].mxu0
    %v1249 = vadd.f32 0.0, %v1248
    %v1250 = vpop.f32.mrb[0].mxu0
    %1251 = vmatprep.mubr.bf16.mxu0 0
    %1252 = vmatmul.mubr.bf16.gmra.mrb[0].mxu0 %v1186
    %v1253 = vpop.f32.mrb[0].mxu0
    %v1254 = vadd.f32 0.0, %v1253
    %v1255 = vpop.f32.mrb[0].mxu0
    %v1256 = vpop.f32.mrb[0].mxu0
    %v1257 = vadd.f32 0.0, %v1256
    %v1258 = vpop.f32.mrb[0].mxu0
    %1259 = vmatprep.mubr.bf16.mxu0 0
    %1260 = vmatmul.mubr.bf16.gmra.mrb[0].mxu0 %v1189
    %v1261 = vpop.f32.mrb[0].mxu0
    %v1262 = vadd.f32 0.0, %v1261
    %v1263 = vpop.f32.mrb[0].mxu0
    %v1264 = vpop.f32.mrb[0].mxu0
    %v1265 = vadd.f32 0.0, %v1264
    %v1266 = vpop.f32.mrb[0].mxu0
    %1267 = vmatprep.mubr.bf16.mxu0 0
    %1268 = vmatmul.mubr.bf16.gmra.mrb[0].mxu0 %v1192
    %v1269 = vpop.f32.mrb[0].mxu0
    %v1270 = vadd.f32 0.0, %v1269
    %v1271 = vpop.f32.mrb[0].mxu0
    %v1272 = vpop.f32.mrb[0].mxu0
    %v1273 = vadd.f32 0.0, %v1272
    %v1274 = vpop.f32.mrb[0].mxu0
    %1275 = vmatprep.mubr.bf16.mxu0 0
    %1276 = vmatmul.mubr.bf16.gmra.mrb[0].mxu0 %v1195
    %v1277 = vpop.f32.mrb[0].mxu0
    %v1278 = vadd.f32 0.0, %v1277
    %v1279 = vpop.f32.mrb[0].mxu0
    %v1280 = vpop.f32.mrb[0].mxu0
    %v1281 = vadd.f32 0.0, %v1280
    %v1282 = vpop.f32.mrb[0].mxu0
    %1283 = vmatprep.mubr.bf16.mxu0 0
    %1284 = vmatmul.mubr.bf16.gmra.mrb[0].mxu0 %v1198
    %v1285 = vpop.f32.mrb[0].mxu0
    %v1286 = vadd.f32 0.0, %v1285
    %v1287 = vpop.f32.mrb[0].mxu0
    %v1288 = vpop.f32.mrb[0].mxu0
    %v1289 = vadd.f32 0.0, %v1288
    %v1290 = vpop.f32.mrb[0].mxu0
    %1291 = vmatprep.mubr.bf16.mxu0 0
    %1292 = vmatmul.mubr.bf16.gmra.mrb[0].mxu0 %v1201
    %v1293 = vpop.f32.mrb[0].mxu0
    %v1294 = vadd.f32 0.0, %v1293
    %v1295 = vpop.f32.mrb[0].mxu0
    %v1296 = vpop.f32.mrb[0].mxu0
    %v1297 = vadd.f32 0.0, %v1296
    %v1298 = vpop.f32.mrb[0].mxu0
    %1299 = vdwg.mxu0
    %v1300 = vadd.f32 %v1129, %v1238
    %v1301 = vadd.f32 %v1130, %v1241
    %v1302 = vadd.f32 %v1131, %v1246
    %v1303 = vadd.f32 %v1132, %v1249
    %v1304 = vadd.f32 %v1133, %v1254
    %v1305 = vadd.f32 %v1134, %v1257
    %v1306 = vadd.f32 %v1135, %v1262
    %v1307 = vadd.f32 %v1136, %v1265
    %v1308 = vadd.f32 %v1137, %v1270
    %v1309 = vadd.f32 %v1138, %v1273
    %v1310 = vadd.f32 %v1139, %v1278
    %v1311 = vadd.f32 %v1140, %v1281
    %v1312 = vadd.f32 %v1141, %v1286
    %v1313 = vadd.f32 %v1142, %v1289
    %v1314 = vadd.f32 %v1143, %v1294
    %v1315 = vadd.f32 %v1144, %v1297
    %v1316 = vld [vmem:[%s1145 + $0x1] sm:$0xff]
    %v1317 = vld [vmem:[%s1145 + $0x11] sm:$0xff]
    %v1318 = vld [vmem:[%s1145 + $0x21] sm:$0xff]
    %v1319 = vld [vmem:[%s1145 + $0x31] sm:$0xff]
    %v1320 = vld [vmem:[%s1145 + $0x41] sm:$0xff]
    %v1321 = vld [vmem:[%s1145 + $0x51] sm:$0xff]
    %v1322 = vld [vmem:[%s1145 + $0x61] sm:$0xff]
    %v1323 = vld [vmem:[%s1145 + $0x71] sm:$0xff]
    %v1324 = vld [vmem:[%s1145 + $0xa1] sm:$0xff]
    %v1325 = vld [vmem:[%s1145 + $0xb1] sm:$0xff]
    %v1326 = vld [vmem:[%s1145 + $0xc1] sm:$0xff]
    %v1327 = vld [vmem:[%s1145 + $0xd1] sm:$0xff]
    %v1328 = vld [vmem:[%s1145 + $0xe1] sm:$0xff]
    %v1329 = vld [vmem:[%s1145 + $0xf1] sm:$0xff]
    %v1330 = vld [vmem:[%s1145 + $0x101] sm:$0xff]
    %v1331 = vld [vmem:[%s1145 + $0x111] sm:$0xff]
    %v1332 = vpack.c.bf16 %v1317, %v1316
    %v1333 = vpack.c.bf16 %v1319, %v1318
    %v1334 = vpack.c.bf16 %v1321, %v1320
    %v1335 = vpack.c.bf16 %v1323, %v1322
    %v1336 = vpack.c.bf16 %v1325, %v1324
    %v1337 = vpack.c.bf16 %v1327, %v1326
    %v1338 = vpack.c.bf16 %v1329, %v1328
    %v1339 = vpack.c.bf16 %v1331, %v1330
    %s1340 = scalar_lea.vmem [#allocation6], 56
    %v1341 = vld [vmem:[%s1340] sm:$0xf]
    %v1342 = vld [vmem:[%s1340 + $0x4] sm:$0xf]
    %v1345 = vunpack.c.l.b16 %v1341
    %v1346 = vunpack.c.l.b16 %v1342
    %v1347 = vpack.c.b16 %v1346, %v1345
    %v1350 = vsel %vm57, %v1332, 0
    %v1353 = vsel %vm57, %v1333, 0
    %v1356 = vsel %vm57, %v1334, 0
    %v1359 = vsel %vm57, %v1335, 0
    %v1362 = vsel %vm57, %v1336, 0
    %v1365 = vsel %vm57, %v1337, 0
    %v1368 = vsel %vm57, %v1338, 0
    %v1371 = vsel %vm57, %v1339, 0
    %1373 = vmatprep.subr.bf16.mxu0 0
    %1374 = vmatpush1.bf16.msra.mxu0 %v1347
    %1375 = vmatprep.subr.bf16.mxu0 0
    %1376 = vmatpush1.bf16.msra.mxu0 0
    %1377 = vmatprep.subr.bf16.mxu0 0
    %1378 = vmatpush1.bf16.msra.mxu0 0
    %1379 = vmatprep.subr.bf16.mxu0 0
    %1380 = vmatpush1.bf16.msra.mxu0 0
    %1381 = vmatprep.subr.bf16.mxu0 0
    %1382 = vmatpush1.bf16.msra.mxu0 0
    %1383 = vmatprep.subr.bf16.mxu0 0
    %1384 = vmatpush1.bf16.msra.mxu0 0
    %1385 = vmatprep.subr.bf16.mxu0 0
    %1386 = vmatpush1.bf16.msra.mxu0 0
    %1387 = vmatprep.subr.bf16.mxu0 0
    %1388 = vmatpush1.bf16.msra.mxu0 0
    %1389 = vmatprep.subr.bf16.mxu0 0
    %1390 = vmatpush1.bf16.msra.mxu0 0
    %1391 = vmatprep.subr.bf16.mxu0 0
    %1392 = vmatpush1.bf16.msra.mxu0 0
    %1393 = vmatprep.subr.bf16.mxu0 0
    %1394 = vmatpush1.bf16.msra.mxu0 0
    %1395 = vmatprep.subr.bf16.mxu0 0
    %1396 = vmatpush1.bf16.msra.mxu0 0
    %1397 = vmatprep.subr.bf16.mxu0 0
    %1398 = vmatpush1.bf16.msra.mxu0 0
    %1399 = vmatprep.subr.bf16.mxu0 0
    %1400 = vmatpush1.bf16.msra.mxu0 0
    %1401 = vmatprep.subr.bf16.mxu0 0
    %1402 = vmatpush1.bf16.msra.mxu0 0
    %1403 = vmatprep.subr.bf16.mxu0 0
    %1404 = vmatpush1.bf16.msra.mxu0 0
    %1405 = vmatprep.mubr.bf16.mxu0 0
    %1406 = vmatmul.mubr.bf16.gmra.mrb[0].mxu0 %v1350
    %v1407 = vpop.f32.mrb[0].mxu0
    %v1408 = vadd.f32 0.0, %v1407
    %v1409 = vpop.f32.mrb[0].mxu0
    %v1410 = vpop.f32.mrb[0].mxu0
    %v1411 = vadd.f32 0.0, %v1410
    %v1412 = vpop.f32.mrb[0].mxu0
    %1413 = vmatprep.mubr.bf16.mxu0 0
    %1414 = vmatmul.mubr.bf16.gmra.mrb[0].mxu0 %v1353
    %v1415 = vpop.f32.mrb[0].mxu0
    %v1416 = vadd.f32 0.0, %v1415
    %v1417 = vpop.f32.mrb[0].mxu0
    %v1418 = vpop.f32.mrb[0].mxu0
    %v1419 = vadd.f32 0.0, %v1418
    %v1420 = vpop.f32.mrb[0].mxu0
    %1421 = vmatprep.mubr.bf16.mxu0 0
    %1422 = vmatmul.mubr.bf16.gmra.mrb[0].mxu0 %v1356
    %v1423 = vpop.f32.mrb[0].mxu0
    %v1424 = vadd.f32 0.0, %v1423
    %v1425 = vpop.f32.mrb[0].mxu0
    %v1426 = vpop.f32.mrb[0].mxu0
    %v1427 = vadd.f32 0.0, %v1426
    %v1428 = vpop.f32.mrb[0].mxu0
    %1429 = vmatprep.mubr.bf16.mxu0 0
    %1430 = vmatmul.mubr.bf16.gmra.mrb[0].mxu0 %v1359
    %v1431 = vpop.f32.mrb[0].mxu0
    %v1432 = vadd.f32 0.0, %v1431
    %v1433 = vpop.f32.mrb[0].mxu0
    %v1434 = vpop.f32.mrb[0].mxu0
    %v1435 = vadd.f32 0.0, %v1434
    %v1436 = vpop.f32.mrb[0].mxu0
    %1437 = vmatprep.mubr.bf16.mxu0 0
    %1438 = vmatmul.mubr.bf16.gmra.mrb[0].mxu0 %v1362
    %v1439 = vpop.f32.mrb[0].mxu0
    %v1440 = vadd.f32 0.0, %v1439
    %v1441 = vpop.f32.mrb[0].mxu0
    %v1442 = vpop.f32.mrb[0].mxu0
    %v1443 = vadd.f32 0.0, %v1442
    %v1444 = vpop.f32.mrb[0].mxu0
    %1445 = vmatprep.mubr.bf16.mxu0 0
    %1446 = vmatmul.mubr.bf16.gmra.mrb[0].mxu0 %v1365
    %v1447 = vpop.f32.mrb[0].mxu0
    %v1448 = vadd.f32 0.0, %v1447
    %v1449 = vpop.f32.mrb[0].mxu0
    %v1450 = vpop.f32.mrb[0].mxu0
    %v1451 = vadd.f32 0.0, %v1450
    %v1452 = vpop.f32.mrb[0].mxu0
    %1453 = vmatprep.mubr.bf16.mxu0 0
    %1454 = vmatmul.mubr.bf16.gmra.mrb[0].mxu0 %v1368
    %v1455 = vpop.f32.mrb[0].mxu0
    %v1456 = vadd.f32 0.0, %v1455
    %v1457 = vpop.f32.mrb[0].mxu0
    %v1458 = vpop.f32.mrb[0].mxu0
    %v1459 = vadd.f32 0.0, %v1458
    %v1460 = vpop.f32.mrb[0].mxu0
    %1461 = vmatprep.mubr.bf16.mxu0 0
    %1462 = vmatmul.mubr.bf16.gmra.mrb[0].mxu0 %v1371
    %v1463 = vpop.f32.mrb[0].mxu0
    %v1464 = vadd.f32 0.0, %v1463
    %v1465 = vpop.f32.mrb[0].mxu0
    %v1466 = vpop.f32.mrb[0].mxu0
    %v1467 = vadd.f32 0.0, %v1466
    %v1468 = vpop.f32.mrb[0].mxu0
    %1469 = vdwg.mxu0
    %v1470 = vadd.f32 %v1300, %v1408
    %v1471 = vadd.f32 %v1301, %v1411
    %v1472 = vadd.f32 %v1302, %v1416
    %v1473 = vadd.f32 %v1303, %v1419
    %v1474 = vadd.f32 %v1304, %v1424
    %v1475 = vadd.f32 %v1305, %v1427
    %v1476 = vadd.f32 %v1306, %v1432
    %v1477 = vadd.f32 %v1307, %v1435
    %v1478 = vadd.f32 %v1308, %v1440
    %v1479 = vadd.f32 %v1309, %v1443
    %v1480 = vadd.f32 %v1310, %v1448
    %v1481 = vadd.f32 %v1311, %v1451
    %v1482 = vadd.f32 %v1312, %v1456
    %v1483 = vadd.f32 %v1313, %v1459
    %v1484 = vadd.f32 %v1314, %v1464
    %v1485 = vadd.f32 %v1315, %v1467
    %v1486 = vld [vmem:[%s1145 + $0x2] sm:$0xff]
    %v1487 = vld [vmem:[%s1145 + $0x12] sm:$0xff]
    %v1488 = vld [vmem:[%s1145 + $0x22] sm:$0xff]
    %v1489 = vld [vmem:[%s1145 + $0x32] sm:$0xff]
    %v1490 = vld [vmem:[%s1145 + $0x42] sm:$0xff]
    %v1491 = vld [vmem:[%s1145 + $0x52] sm:$0xff]
    %v1492 = vld [vmem:[%s1145 + $0x62] sm:$0xff]
    %v1493 = vld [vmem:[%s1145 + $0x72] sm:$0xff]
    %v1494 = vld [vmem:[%s1145 + $0xa2] sm:$0xff]
    %v1495 = vld [vmem:[%s1145 + $0xb2] sm:$0xff]
    %v1496 = vld [vmem:[%s1145 + $0xc2] sm:$0xff]
    %v1497 = vld [vmem:[%s1145 + $0xd2] sm:$0xff]
    %v1498 = vld [vmem:[%s1145 + $0xe2] sm:$0xff]
    %v1499 = vld [vmem:[%s1145 + $0xf2] sm:$0xff]
    %v1500 = vld [vmem:[%s1145 + $0x102] sm:$0xff]
    %v1501 = vld [vmem:[%s1145 + $0x112] sm:$0xff]
    %v1502 = vpack.c.bf16 %v1487, %v1486
    %v1503 = vpack.c.bf16 %v1489, %v1488
    %v1504 = vpack.c.bf16 %v1491, %v1490
    %v1505 = vpack.c.bf16 %v1493, %v1492
    %v1506 = vpack.c.bf16 %v1495, %v1494
    %v1507 = vpack.c.bf16 %v1497, %v1496
    %v1508 = vpack.c.bf16 %v1499, %v1498
    %v1509 = vpack.c.bf16 %v1501, %v1500
    %s1510 = scalar_lea.vmem [#allocation6], 64
    %v1511 = vld [vmem:[%s1510] sm:$0xf]
    %v1512 = vld [vmem:[%s1510 + $0x4] sm:$0xf]
    %v1515 = vunpack.c.l.b16 %v1511
    %v1516 = vunpack.c.l.b16 %v1512
    %v1517 = vpack.c.b16 %v1516, %v1515
    %v1520 = vsel %vm57, %v1502, 0
    %v1523 = vsel %vm57, %v1503, 0
    %v1526 = vsel %vm57, %v1504, 0
    %v1529 = vsel %vm57, %v1505, 0
    %v1532 = vsel %vm57, %v1506, 0
    %v1535 = vsel %vm57, %v1507, 0
    %v1538 = vsel %vm57, %v1508, 0
    %v1541 = vsel %vm57, %v1509, 0
    %1543 = vmatprep.subr.bf16.mxu0 0
    %1544 = vmatpush1.bf16.msra.mxu0 %v1517
    %1545 = vmatprep.subr.bf16.mxu0 0
    %1546 = vmatpush1.bf16.msra.mxu0 0
    %1547 = vmatprep.subr.bf16.mxu0 0
    %1548 = vmatpush1.bf16.msra.mxu0 0
    %1549 = vmatprep.subr.bf16.mxu0 0
    %1550 = vmatpush1.bf16.msra.mxu0 0
    %1551 = vmatprep.subr.bf16.mxu0 0
    %1552 = vmatpush1.bf16.msra.mxu0 0
    %1553 = vmatprep.subr.bf16.mxu0 0
    %1554 = vmatpush1.bf16.msra.mxu0 0
    %1555 = vmatprep.subr.bf16.mxu0 0
    %1556 = vmatpush1.bf16.msra.mxu0 0
    %1557 = vmatprep.subr.bf16.mxu0 0
    %1558 = vmatpush1.bf16.msra.mxu0 0
    %1559 = vmatprep.subr.bf16.mxu0 0
    %1560 = vmatpush1.bf16.msra.mxu0 0
    %1561 = vmatprep.subr.bf16.mxu0 0
    %1562 = vmatpush1.bf16.msra.mxu0 0
    %1563 = vmatprep.subr.bf16.mxu0 0
    %1564 = vmatpush1.bf16.msra.mxu0 0
    %1565 = vmatprep.subr.bf16.mxu0 0
    %1566 = vmatpush1.bf16.msra.mxu0 0
    %1567 = vmatprep.subr.bf16.mxu0 0
    %1568 = vmatpush1.bf16.msra.mxu0 0
    %1569 = vmatprep.subr.bf16.mxu0 0
    %1570 = vmatpush1.bf16.msra.mxu0 0
    %1571 = vmatprep.subr.bf16.mxu0 0
    %1572 = vmatpush1.bf16.msra.mxu0 0
    %1573 = vmatprep.subr.bf16.mxu0 0
    %1574 = vmatpush1.bf16.msra.mxu0 0
    %1575 = vmatprep.mubr.bf16.mxu0 0
    %1576 = vmatmul.mubr.bf16.gmra.mrb[0].mxu0 %v1520
    %v1577 = vpop.f32.mrb[0].mxu0
    %v1578 = vadd.f32 0.0, %v1577
    %v1579 = vpop.f32.mrb[0].mxu0
    %v1580 = vpop.f32.mrb[0].mxu0
    %v1581 = vadd.f32 0.0, %v1580
    %v1582 = vpop.f32.mrb[0].mxu0
    %1583 = vmatprep.mubr.bf16.mxu0 0
    %1584 = vmatmul.mubr.bf16.gmra.mrb[0].mxu0 %v1523
    %v1585 = vpop.f32.mrb[0].mxu0
    %v1586 = vadd.f32 0.0, %v1585
    %v1587 = vpop.f32.mrb[0].mxu0
    %v1588 = vpop.f32.mrb[0].mxu0
    %v1589 = vadd.f32 0.0, %v1588
    %v1590 = vpop.f32.mrb[0].mxu0
    %1591 = vmatprep.mubr.bf16.mxu0 0
    %1592 = vmatmul.mubr.bf16.gmra.mrb[0].mxu0 %v1526
    %v1593 = vpop.f32.mrb[0].mxu0
    %v1594 = vadd.f32 0.0, %v1593
    %v1595 = vpop.f32.mrb[0].mxu0
    %v1596 = vpop.f32.mrb[0].mxu0
    %v1597 = vadd.f32 0.0, %v1596
    %v1598 = vpop.f32.mrb[0].mxu0
    %1599 = vmatprep.mubr.bf16.mxu0 0
    %1600 = vmatmul.mubr.bf16.gmra.mrb[0].mxu0 %v1529
    %v1601 = vpop.f32.mrb[0].mxu0
    %v1602 = vadd.f32 0.0, %v1601
    %v1603 = vpop.f32.mrb[0].mxu0
    %v1604 = vpop.f32.mrb[0].mxu0
    %v1605 = vadd.f32 0.0, %v1604
    %v1606 = vpop.f32.mrb[0].mxu0
    %1607 = vmatprep.mubr.bf16.mxu0 0
    %1608 = vmatmul.mubr.bf16.gmra.mrb[0].mxu0 %v1532
    %v1609 = vpop.f32.mrb[0].mxu0
    %v1610 = vadd.f32 0.0, %v1609
    %v1611 = vpop.f32.mrb[0].mxu0
    %v1612 = vpop.f32.mrb[0].mxu0
    %v1613 = vadd.f32 0.0, %v1612
    %v1614 = vpop.f32.mrb[0].mxu0
    %1615 = vmatprep.mubr.bf16.mxu0 0
    %1616 = vmatmul.mubr.bf16.gmra.mrb[0].mxu0 %v1535
    %v1617 = vpop.f32.mrb[0].mxu0
    %v1618 = vadd.f32 0.0, %v1617
    %v1619 = vpop.f32.mrb[0].mxu0
    %v1620 = vpop.f32.mrb[0].mxu0
    %v1621 = vadd.f32 0.0, %v1620
    %v1622 = vpop.f32.mrb[0].mxu0
    %1623 = vmatprep.mubr.bf16.mxu0 0
    %1624 = vmatmul.mubr.bf16.gmra.mrb[0].mxu0 %v1538
    %v1625 = vpop.f32.mrb[0].mxu0
    %v1626 = vadd.f32 0.0, %v1625
    %v1627 = vpop.f32.mrb[0].mxu0
    %v1628 = vpop.f32.mrb[0].mxu0
    %v1629 = vadd.f32 0.0, %v1628
    %v1630 = vpop.f32.mrb[0].mxu0
    %1631 = vmatprep.mubr.bf16.mxu0 0
    %1632 = vmatmul.mubr.bf16.gmra.mrb[0].mxu0 %v1541
    %v1633 = vpop.f32.mrb[0].mxu0
    %v1634 = vadd.f32 0.0, %v1633
    %v1635 = vpop.f32.mrb[0].mxu0
    %v1636 = vpop.f32.mrb[0].mxu0
    %v1637 = vadd.f32 0.0, %v1636
    %v1638 = vpop.f32.mrb[0].mxu0
    %1639 = vdwg.mxu0
    %v1640 = vadd.f32 %v1470, %v1578
    %v1641 = vadd.f32 %v1471, %v1581
    %v1642 = vadd.f32 %v1472, %v1586
    %v1643 = vadd.f32 %v1473, %v1589
    %v1644 = vadd.f32 %v1474, %v1594
    %v1645 = vadd.f32 %v1475, %v1597
    %v1646 = vadd.f32 %v1476, %v1602
    %v1647 = vadd.f32 %v1477, %v1605
    %v1648 = vadd.f32 %v1478, %v1610
    %v1649 = vadd.f32 %v1479, %v1613
    %v1650 = vadd.f32 %v1480, %v1618
    %v1651 = vadd.f32 %v1481, %v1621
    %v1652 = vadd.f32 %v1482, %v1626
    %v1653 = vadd.f32 %v1483, %v1629
    %v1654 = vadd.f32 %v1484, %v1634
    %v1655 = vadd.f32 %v1485, %v1637
    %vm1656 = vcmask 261120
    %v1657 = vsel %vm1656, %v1640, 0.0
    %v1658 = vsel %vm1656, %v1641, 0.0
    %v1659 = vadd.f32 %v1657, %v1658
    %v1660 = vsel %vm1656, %v1642, 0.0
    %v1661 = vadd.f32 %v1659, %v1660
    %v1662 = vsel %vm1656, %v1643, 0.0
    %v1663 = vadd.f32 %v1661, %v1662
    %v1664 = vsel %vm1656, %v1644, 0.0
    %v1665 = vadd.f32 %v1663, %v1664
    %v1666 = vsel %vm1656, %v1645, 0.0
    %v1667 = vadd.f32 %v1665, %v1666
    %v1668 = vsel %vm1656, %v1646, 0.0
    %v1669 = vadd.f32 %v1667, %v1668
    %v1670 = vsel %vm1656, %v1647, 0.0
    %v1671 = vadd.f32 %v1669, %v1670
    %v1672 = vsel %vm1656, %v1648, 0.0
    %v1673 = vadd.f32 %v1671, %v1672
    %v1674 = vsel %vm1656, %v1649, 0.0
    %v1675 = vadd.f32 %v1673, %v1674
    %v1676 = vsel %vm1656, %v1650, 0.0
    %v1677 = vadd.f32 %v1675, %v1676
    %v1678 = vsel %vm1656, %v1651, 0.0
    %v1679 = vadd.f32 %v1677, %v1678
    %v1680 = vsel %vm1656, %v1652, 0.0
    %v1681 = vadd.f32 %v1679, %v1680
    %v1682 = vsel %vm1656, %v1653, 0.0
    %v1683 = vadd.f32 %v1681, %v1682
    %v1684 = vsel %vm1656, %v1654, 0.0
    %v1685 = vadd.f32 %v1683, %v1684
    %v1686 = vsel %vm1656, %v1655, 0.0
    %v1687 = vadd.f32 %v1685, %v1686
    %v1688 = vrot.slane %v1687, 4
    %v1689 = vadd.f32 %v1687, %v1688
    %v1690 = vrot.slane %v1689, 2
    %v1691 = vadd.f32 %v1689, %v1690
    %v1692 = vrot.slane %v1691, 1
    %v1693 = vadd.f32 %v1691, %v1692
    %v1694 = vmul.f32 %v1693, 0.0078125
    %v1695 = vsub.f32 %v1640, %v1694
    %v1696 = vsub.f32 %v1641, %v1694
    %v1697 = vsub.f32 %v1642, %v1694
    %v1698 = vsub.f32 %v1643, %v1694
    %v1699 = vsub.f32 %v1644, %v1694
    %v1700 = vsub.f32 %v1645, %v1694
    %v1701 = vsub.f32 %v1646, %v1694
    %v1702 = vsub.f32 %v1647, %v1694
    %v1703 = vsub.f32 %v1648, %v1694
    %v1704 = vsub.f32 %v1649, %v1694
    %v1705 = vsub.f32 %v1650, %v1694
    %v1706 = vsub.f32 %v1651, %v1694
    %v1707 = vsub.f32 %v1652, %v1694
    %v1708 = vsub.f32 %v1653, %v1694
    %v1709 = vsub.f32 %v1654, %v1694
    %v1710 = vsub.f32 %v1655, %v1694
    %v1711 = vmul.f32 %v1695, %v1695
    %v1712 = vmul.f32 %v1696, %v1696
    %v1713 = vmul.f32 %v1697, %v1697
    %v1714 = vmul.f32 %v1698, %v1698
    %v1715 = vmul.f32 %v1699, %v1699
    %v1716 = vmul.f32 %v1700, %v1700
    %v1717 = vmul.f32 %v1701, %v1701
    %v1718 = vmul.f32 %v1702, %v1702
    %v1719 = vmul.f32 %v1703, %v1703
    %v1720 = vmul.f32 %v1704, %v1704
    %v1721 = vmul.f32 %v1705, %v1705
    %v1722 = vmul.f32 %v1706, %v1706
    %v1723 = vmul.f32 %v1707, %v1707
    %v1724 = vmul.f32 %v1708, %v1708
    %v1725 = vmul.f32 %v1709, %v1709
    %v1726 = vmul.f32 %v1710, %v1710
    %v1727 = vsel %vm1656, %v1711, 0.0
    %v1728 = vsel %vm1656, %v1712, 0.0
    %v1729 = vadd.f32 %v1727, %v1728
    %v1730 = vsel %vm1656, %v1713, 0.0
    %v1731 = vadd.f32 %v1729, %v1730
    %v1732 = vsel %vm1656, %v1714, 0.0
    %v1733 = vadd.f32 %v1731, %v1732
    %v1734 = vsel %vm1656, %v1715, 0.0
    %v1735 = vadd.f32 %v1733, %v1734
    %v1736 = vsel %vm1656, %v1716, 0.0
    %v1737 = vadd.f32 %v1735, %v1736
    %v1738 = vsel %vm1656, %v1717, 0.0
    %v1739 = vadd.f32 %v1737, %v1738
    %v1740 = vsel %vm1656, %v1718, 0.0
    %v1741 = vadd.f32 %v1739, %v1740
    %v1742 = vsel %vm1656, %v1719, 0.0
    %v1743 = vadd.f32 %v1741, %v1742
    %v1744 = vsel %vm1656, %v1720, 0.0
    %v1745 = vadd.f32 %v1743, %v1744
    %v1746 = vsel %vm1656, %v1721, 0.0
    %v1747 = vadd.f32 %v1745, %v1746
    %v1748 = vsel %vm1656, %v1722, 0.0
    %v1749 = vadd.f32 %v1747, %v1748
    %v1750 = vsel %vm1656, %v1723, 0.0
    %v1751 = vadd.f32 %v1749, %v1750
    %v1752 = vsel %vm1656, %v1724, 0.0
    %v1753 = vadd.f32 %v1751, %v1752
    %v1754 = vsel %vm1656, %v1725, 0.0
    %v1755 = vadd.f32 %v1753, %v1754
    %v1756 = vsel %vm1656, %v1726, 0.0
    %v1757 = vadd.f32 %v1755, %v1756
    %v1758 = vrot.slane %v1757, 4
    %v1759 = vadd.f32 %v1757, %v1758
    %v1760 = vrot.slane %v1759, 2
    %v1761 = vadd.f32 %v1759, %v1760
    %v1762 = vrot.slane %v1761, 1
    %v1763 = vadd.f32 %v1761, %v1762
    %v1764 = vmul.f32 %v1763, 0.0078125
    %v1765 = vadd.f32 %v1764, 1e-05
    %v1766 = vrsqrt.pop %v1765
    %v1767 = vmul.f32 %v1695, %v1766
    %v1768 = vmul.f32 %v1696, %v1766
    %v1769 = vmul.f32 %v1697, %v1766
    %v1770 = vmul.f32 %v1698, %v1766
    %v1771 = vmul.f32 %v1699, %v1766
    %v1772 = vmul.f32 %v1700, %v1766
    %v1773 = vmul.f32 %v1701, %v1766
    %v1774 = vmul.f32 %v1702, %v1766
    %v1775 = vmul.f32 %v1703, %v1766
    %v1776 = vmul.f32 %v1704, %v1766
    %v1777 = vmul.f32 %v1705, %v1766
    %v1778 = vmul.f32 %v1706, %v1766
    %v1779 = vmul.f32 %v1707, %v1766
    %v1780 = vmul.f32 %v1708, %v1766
    %v1781 = vmul.f32 %v1709, %v1766
    %v1782 = vmul.f32 %v1710, %v1766
    %1783 = vst.msk [vmem:[%s141 + $0x1] sm:$0xff] %vm57, %v1767
    %1784 = vst.msk [vmem:[%s141 + $0x11] sm:$0xff] %vm57, %v1768
    %1785 = vst.msk [vmem:[%s141 + $0x21] sm:$0xff] %vm57, %v1769
    %1786 = vst.msk [vmem:[%s141 + $0x31] sm:$0xff] %vm57, %v1770
    %1787 = vst.msk [vmem:[%s141 + $0x41] sm:$0xff] %vm57, %v1771
    %1788 = vst.msk [vmem:[%s141 + $0x51] sm:$0xff] %vm57, %v1772
    %1789 = vst.msk [vmem:[%s141 + $0x61] sm:$0xff] %vm57, %v1773
    %1790 = vst.msk [vmem:[%s141 + $0x71] sm:$0xff] %vm57, %v1774
    %1791 = vst.msk [vmem:[%s141 + $0xa1] sm:$0xff] %vm57, %v1775
    %1792 = vst.msk [vmem:[%s141 + $0xb1] sm:$0xff] %vm57, %v1776
    %1793 = vst.msk [vmem:[%s141 + $0xc1] sm:$0xff] %vm57, %v1777
    %1794 = vst.msk [vmem:[%s141 + $0xd1] sm:$0xff] %vm57, %v1778
    %1795 = vst.msk [vmem:[%s141 + $0xe1] sm:$0xff] %vm57, %v1779
    %1796 = vst.msk [vmem:[%s141 + $0xf1] sm:$0xff] %vm57, %v1780
    %1797 = vst.msk [vmem:[%s141 + $0x101] sm:$0xff] %vm57, %v1781
    %1798 = vst.msk [vmem:[%s141 + $0x111] sm:$0xff] %vm57, %v1782
    %v1799 = vld [vmem:[#allocation2] sm:$0xff]
    %v1800 = vld [vmem:[#allocation2 + $0x10] sm:$0xff]
    %v1801 = vld [vmem:[#allocation2 + $0x20] sm:$0xff]
    %v1802 = vld [vmem:[#allocation2 + $0x30] sm:$0xff]
    %v1803 = vld [vmem:[#allocation2 + $0x40] sm:$0xff]
    %v1804 = vld [vmem:[#allocation2 + $0x50] sm:$0xff]
    %v1805 = vld [vmem:[#allocation2 + $0x60] sm:$0xff]
    %v1806 = vld [vmem:[#allocation2 + $0x70] sm:$0xff]
    %v1807 = vld [vmem:[#allocation2 + $0xa0] sm:$0xff]
    %v1808 = vld [vmem:[#allocation2 + $0xb0] sm:$0xff]
    %v1809 = vld [vmem:[#allocation2 + $0xc0] sm:$0xff]
    %v1810 = vld [vmem:[#allocation2 + $0xd0] sm:$0xff]
    %v1811 = vld [vmem:[#allocation2 + $0xe0] sm:$0xff]
    %v1812 = vld [vmem:[#allocation2 + $0xf0] sm:$0xff]
    %v1813 = vld [vmem:[#allocation2 + $0x100] sm:$0xff]
    %v1814 = vld [vmem:[#allocation2 + $0x110] sm:$0xff]
    %v1815 = vadd.f32 %v1799, 0.0
    %v1816 = vadd.f32 %v1800, 0.0
    %v1817 = vadd.f32 %v1801, 0.0
    %v1818 = vadd.f32 %v1802, 0.0
    %v1819 = vadd.f32 %v1803, 0.0
    %v1820 = vadd.f32 %v1804, 0.0
    %v1821 = vadd.f32 %v1805, 0.0
    %v1822 = vadd.f32 %v1806, 0.0
    %v1823 = vadd.f32 %v1807, 0.0
    %v1824 = vadd.f32 %v1808, 0.0
    %v1825 = vadd.f32 %v1809, 0.0
    %v1826 = vadd.f32 %v1810, 0.0
    %v1827 = vadd.f32 %v1811, 0.0
    %v1828 = vadd.f32 %v1812, 0.0
    %v1829 = vadd.f32 %v1813, 0.0
    %v1830 = vadd.f32 %v1814, 0.0
    %v1831 = vld [vmem:[#allocation2 + $0x1] sm:$0xff]
    %v1832 = vld [vmem:[#allocation2 + $0x11] sm:$0xff]
    %v1833 = vld [vmem:[#allocation2 + $0x21] sm:$0xff]
    %v1834 = vld [vmem:[#allocation2 + $0x31] sm:$0xff]
    %v1835 = vld [vmem:[#allocation2 + $0x41] sm:$0xff]
    %v1836 = vld [vmem:[#allocation2 + $0x51] sm:$0xff]
    %v1837 = vld [vmem:[#allocation2 + $0x61] sm:$0xff]
    %v1838 = vld [vmem:[#allocation2 + $0x71] sm:$0xff]
    %v1839 = vld [vmem:[#allocation2 + $0xa1] sm:$0xff]
    %v1840 = vld [vmem:[#allocation2 + $0xb1] sm:$0xff]
    %v1841 = vld [vmem:[#allocation2 + $0xc1] sm:$0xff]
    %v1842 = vld [vmem:[#allocation2 + $0xd1] sm:$0xff]
    %v1843 = vld [vmem:[#allocation2 + $0xe1] sm:$0xff]
    %v1844 = vld [vmem:[#allocation2 + $0xf1] sm:$0xff]
    %v1845 = vld [vmem:[#allocation2 + $0x101] sm:$0xff]
    %v1846 = vld [vmem:[#allocation2 + $0x111] sm:$0xff]
    %v1847 = vadd.f32 %v1815, %v1831
    %v1848 = vadd.f32 %v1816, %v1832
    %v1849 = vadd.f32 %v1817, %v1833
    %v1850 = vadd.f32 %v1818, %v1834
    %v1851 = vadd.f32 %v1819, %v1835
    %v1852 = vadd.f32 %v1820, %v1836
    %v1853 = vadd.f32 %v1821, %v1837
    %v1854 = vadd.f32 %v1822, %v1838
    %v1855 = vadd.f32 %v1823, %v1839
    %v1856 = vadd.f32 %v1824, %v1840
    %v1857 = vadd.f32 %v1825, %v1841
    %v1858 = vadd.f32 %v1826, %v1842
    %v1859 = vadd.f32 %v1827, %v1843
    %v1860 = vadd.f32 %v1828, %v1844
    %v1861 = vadd.f32 %v1829, %v1845
    %v1862 = vadd.f32 %v1830, %v1846
    %v1863 = vld [vmem:[#allocation2 + $0x2] sm:$0xff]
    %v1864 = vld [vmem:[#allocation2 + $0x12] sm:$0xff]
    %v1865 = vld [vmem:[#allocation2 + $0x22] sm:$0xff]
    %v1866 = vld [vmem:[#allocation2 + $0x32] sm:$0xff]
    %v1867 = vld [vmem:[#allocation2 + $0x42] sm:$0xff]
    %v1868 = vld [vmem:[#allocation2 + $0x52] sm:$0xff]
    %v1869 = vld [vmem:[#allocation2 + $0x62] sm:$0xff]
    %v1870 = vld [vmem:[#allocation2 + $0x72] sm:$0xff]
    %v1871 = vld [vmem:[#allocation2 + $0xa2] sm:$0xff]
    %v1872 = vld [vmem:[#allocation2 + $0xb2] sm:$0xff]
    %v1873 = vld [vmem:[#allocation2 + $0xc2] sm:$0xff]
    %v1874 = vld [vmem:[#allocation2 + $0xd2] sm:$0xff]
    %v1875 = vld [vmem:[#allocation2 + $0xe2] sm:$0xff]
    %v1876 = vld [vmem:[#allocation2 + $0xf2] sm:$0xff]
    %v1877 = vld [vmem:[#allocation2 + $0x102] sm:$0xff]
    %v1878 = vld [vmem:[#allocation2 + $0x112] sm:$0xff]
    %v1879 = vadd.f32 %v1847, %v1863
    %v1880 = vadd.f32 %v1848, %v1864
    %v1881 = vadd.f32 %v1849, %v1865
    %v1882 = vadd.f32 %v1850, %v1866
    %v1883 = vadd.f32 %v1851, %v1867
    %v1884 = vadd.f32 %v1852, %v1868
    %v1885 = vadd.f32 %v1853, %v1869
    %v1886 = vadd.f32 %v1854, %v1870
    %v1887 = vadd.f32 %v1855, %v1871
    %v1888 = vadd.f32 %v1856, %v1872
    %v1889 = vadd.f32 %v1857, %v1873
    %v1890 = vadd.f32 %v1858, %v1874
    %v1891 = vadd.f32 %v1859, %v1875
    %v1892 = vadd.f32 %v1860, %v1876
    %v1893 = vadd.f32 %v1861, %v1877
    %v1894 = vadd.f32 %v1862, %v1878
    %v1895 = vld [vmem:[%s141] sm:$0xff]
    %v1896 = vld [vmem:[%s141 + $0x10] sm:$0xff]
    %v1897 = vld [vmem:[%s141 + $0x20] sm:$0xff]
    %v1898 = vld [vmem:[%s141 + $0x30] sm:$0xff]
    %v1899 = vld [vmem:[%s141 + $0x40] sm:$0xff]
    %v1900 = vld [vmem:[%s141 + $0x50] sm:$0xff]
    %v1901 = vld [vmem:[%s141 + $0x60] sm:$0xff]
    %v1902 = vld [vmem:[%s141 + $0x70] sm:$0xff]
    %v1903 = vld [vmem:[%s141 + $0xa0] sm:$0xff]
    %v1904 = vld [vmem:[%s141 + $0xb0] sm:$0xff]
    %v1905 = vld [vmem:[%s141 + $0xc0] sm:$0xff]
    %v1906 = vld [vmem:[%s141 + $0xd0] sm:$0xff]
    %v1907 = vld [vmem:[%s141 + $0xe0] sm:$0xff]
    %v1908 = vld [vmem:[%s141 + $0xf0] sm:$0xff]
    %v1909 = vld [vmem:[%s141 + $0x100] sm:$0xff]
    %v1910 = vld [vmem:[%s141 + $0x110] sm:$0xff]
    %v1911 = vadd.f32 %v1879, %v1895
    %v1912 = vadd.f32 %v1880, %v1896
    %v1913 = vadd.f32 %v1881, %v1897
    %v1914 = vadd.f32 %v1882, %v1898
    %v1915 = vadd.f32 %v1883, %v1899
    %v1916 = vadd.f32 %v1884, %v1900
    %v1917 = vadd.f32 %v1885, %v1901
    %v1918 = vadd.f32 %v1886, %v1902
    %v1919 = vadd.f32 %v1887, %v1903
    %v1920 = vadd.f32 %v1888, %v1904
    %v1921 = vadd.f32 %v1889, %v1905
    %v1922 = vadd.f32 %v1890, %v1906
    %v1923 = vadd.f32 %v1891, %v1907
    %v1924 = vadd.f32 %v1892, %v1908
    %v1925 = vadd.f32 %v1893, %v1909
    %v1926 = vadd.f32 %v1894, %v1910
    %v1927 = vld [vmem:[%s141 + $0x1] sm:$0xff]
    %v1928 = vld [vmem:[%s141 + $0x11] sm:$0xff]
    %v1929 = vld [vmem:[%s141 + $0x21] sm:$0xff]
    %v1930 = vld [vmem:[%s141 + $0x31] sm:$0xff]
    %v1931 = vld [vmem:[%s141 + $0x41] sm:$0xff]
    %v1932 = vld [vmem:[%s141 + $0x51] sm:$0xff]
    %v1933 = vld [vmem:[%s141 + $0x61] sm:$0xff]
    %v1934 = vld [vmem:[%s141 + $0x71] sm:$0xff]
    %v1935 = vld [vmem:[%s141 + $0xa1] sm:$0xff]
    %v1936 = vld [vmem:[%s141 + $0xb1] sm:$0xff]
    %v1937 = vld [vmem:[%s141 + $0xc1] sm:$0xff]
    %v1938 = vld [vmem:[%s141 + $0xd1] sm:$0xff]
    %v1939 = vld [vmem:[%s141 + $0xe1] sm:$0xff]
    %v1940 = vld [vmem:[%s141 + $0xf1] sm:$0xff]
    %v1941 = vld [vmem:[%s141 + $0x101] sm:$0xff]
    %v1942 = vld [vmem:[%s141 + $0x111] sm:$0xff]
    %v1943 = vadd.f32 %v1911, %v1927
    %v1944 = vadd.f32 %v1912, %v1928
    %v1945 = vadd.f32 %v1913, %v1929
    %v1946 = vadd.f32 %v1914, %v1930
    %v1947 = vadd.f32 %v1915, %v1931
    %v1948 = vadd.f32 %v1916, %v1932
    %v1949 = vadd.f32 %v1917, %v1933
    %v1950 = vadd.f32 %v1918, %v1934
    %v1951 = vadd.f32 %v1919, %v1935
    %v1952 = vadd.f32 %v1920, %v1936
    %v1953 = vadd.f32 %v1921, %v1937
    %v1954 = vadd.f32 %v1922, %v1938
    %v1955 = vadd.f32 %v1923, %v1939
    %v1956 = vadd.f32 %v1924, %v1940
    %v1957 = vadd.f32 %v1925, %v1941
    %v1958 = vadd.f32 %v1926, %v1942
    %v1959 = vld [vmem:[%s141 + $0x2] sm:$0xff]
    %v1960 = vld [vmem:[%s141 + $0x12] sm:$0xff]
    %v1961 = vld [vmem:[%s141 + $0x22] sm:$0xff]
    %v1962 = vld [vmem:[%s141 + $0x32] sm:$0xff]
    %v1963 = vld [vmem:[%s141 + $0x42] sm:$0xff]
    %v1964 = vld [vmem:[%s141 + $0x52] sm:$0xff]
    %v1965 = vld [vmem:[%s141 + $0x62] sm:$0xff]
    %v1966 = vld [vmem:[%s141 + $0x72] sm:$0xff]
    %v1967 = vld [vmem:[%s141 + $0xa2] sm:$0xff]
    %v1968 = vld [vmem:[%s141 + $0xb2] sm:$0xff]
    %v1969 = vld [vmem:[%s141 + $0xc2] sm:$0xff]
    %v1970 = vld [vmem:[%s141 + $0xd2] sm:$0xff]
    %v1971 = vld [vmem:[%s141 + $0xe2] sm:$0xff]
    %v1972 = vld [vmem:[%s141 + $0xf2] sm:$0xff]
    %v1973 = vld [vmem:[%s141 + $0x102] sm:$0xff]
    %v1974 = vld [vmem:[%s141 + $0x112] sm:$0xff]
    %v1975 = vadd.f32 %v1943, %v1959
    %v1976 = vadd.f32 %v1944, %v1960
    %v1977 = vadd.f32 %v1945, %v1961
    %v1978 = vadd.f32 %v1946, %v1962
    %v1979 = vadd.f32 %v1947, %v1963
    %v1980 = vadd.f32 %v1948, %v1964
    %v1981 = vadd.f32 %v1949, %v1965
    %v1982 = vadd.f32 %v1950, %v1966
    %v1983 = vadd.f32 %v1951, %v1967
    %v1984 = vadd.f32 %v1952, %v1968
    %v1985 = vadd.f32 %v1953, %v1969
    %v1986 = vadd.f32 %v1954, %v1970
    %v1987 = vadd.f32 %v1955, %v1971
    %v1988 = vadd.f32 %v1956, %v1972
    %v1989 = vadd.f32 %v1957, %v1973
    %v1990 = vadd.f32 %v1958, %v1974
    %v1991 = vld [vmem:[%s1145] sm:$0xff]
    %v1992 = vld [vmem:[%s1145 + $0x10] sm:$0xff]
    %v1993 = vld [vmem:[%s1145 + $0x20] sm:$0xff]
    %v1994 = vld [vmem:[%s1145 + $0x30] sm:$0xff]
    %v1995 = vld [vmem:[%s1145 + $0x40] sm:$0xff]
    %v1996 = vld [vmem:[%s1145 + $0x50] sm:$0xff]
    %v1997 = vld [vmem:[%s1145 + $0x60] sm:$0xff]
    %v1998 = vld [vmem:[%s1145 + $0x70] sm:$0xff]
    %v1999 = vld [vmem:[%s1145 + $0xa0] sm:$0xff]
    %v2000 = vld [vmem:[%s1145 + $0xb0] sm:$0xff]
    %v2001 = vld [vmem:[%s1145 + $0xc0] sm:$0xff]
    %v2002 = vld [vmem:[%s1145 + $0xd0] sm:$0xff]
    %v2003 = vld [vmem:[%s1145 + $0xe0] sm:$0xff]
    %v2004 = vld [vmem:[%s1145 + $0xf0] sm:$0xff]
    %v2005 = vld [vmem:[%s1145 + $0x100] sm:$0xff]
    %v2006 = vld [vmem:[%s1145 + $0x110] sm:$0xff]
    %v2007 = vadd.f32 %v1975, %v1991
    %v2008 = vadd.f32 %v1976, %v1992
    %v2009 = vadd.f32 %v1977, %v1993
    %v2010 = vadd.f32 %v1978, %v1994
    %v2011 = vadd.f32 %v1979, %v1995
    %v2012 = vadd.f32 %v1980, %v1996
    %v2013 = vadd.f32 %v1981, %v1997
    %v2014 = vadd.f32 %v1982, %v1998
    %v2015 = vadd.f32 %v1983, %v1999
    %v2016 = vadd.f32 %v1984, %v2000
    %v2017 = vadd.f32 %v1985, %v2001
    %v2018 = vadd.f32 %v1986, %v2002
    %v2019 = vadd.f32 %v1987, %v2003
    %v2020 = vadd.f32 %v1988, %v2004
    %v2021 = vadd.f32 %v1989, %v2005
    %v2022 = vadd.f32 %v1990, %v2006
    %v2023 = vld [vmem:[%s1145 + $0x1] sm:$0xff]
    %v2024 = vld [vmem:[%s1145 + $0x11] sm:$0xff]
    %v2025 = vld [vmem:[%s1145 + $0x21] sm:$0xff]
    %v2026 = vld [vmem:[%s1145 + $0x31] sm:$0xff]
    %v2027 = vld [vmem:[%s1145 + $0x41] sm:$0xff]
    %v2028 = vld [vmem:[%s1145 + $0x51] sm:$0xff]
    %v2029 = vld [vmem:[%s1145 + $0x61] sm:$0xff]
    %v2030 = vld [vmem:[%s1145 + $0x71] sm:$0xff]
    %v2031 = vld [vmem:[%s1145 + $0xa1] sm:$0xff]
    %v2032 = vld [vmem:[%s1145 + $0xb1] sm:$0xff]
    %v2033 = vld [vmem:[%s1145 + $0xc1] sm:$0xff]
    %v2034 = vld [vmem:[%s1145 + $0xd1] sm:$0xff]
    %v2035 = vld [vmem:[%s1145 + $0xe1] sm:$0xff]
    %v2036 = vld [vmem:[%s1145 + $0xf1] sm:$0xff]
    %v2037 = vld [vmem:[%s1145 + $0x101] sm:$0xff]
    %v2038 = vld [vmem:[%s1145 + $0x111] sm:$0xff]
    %v2039 = vadd.f32 %v2007, %v2023
    %v2040 = vadd.f32 %v2008, %v2024
    %v2041 = vadd.f32 %v2009, %v2025
    %v2042 = vadd.f32 %v2010, %v2026
    %v2043 = vadd.f32 %v2011, %v2027
    %v2044 = vadd.f32 %v2012, %v2028
    %v2045 = vadd.f32 %v2013, %v2029
    %v2046 = vadd.f32 %v2014, %v2030
    %v2047 = vadd.f32 %v2015, %v2031
    %v2048 = vadd.f32 %v2016, %v2032
    %v2049 = vadd.f32 %v2017, %v2033
    %v2050 = vadd.f32 %v2018, %v2034
    %v2051 = vadd.f32 %v2019, %v2035
    %v2052 = vadd.f32 %v2020, %v2036
    %v2053 = vadd.f32 %v2021, %v2037
    %v2054 = vadd.f32 %v2022, %v2038
    %v2055 = vld [vmem:[%s1145 + $0x2] sm:$0xff]
    %v2056 = vld [vmem:[%s1145 + $0x12] sm:$0xff]
    %v2057 = vld [vmem:[%s1145 + $0x22] sm:$0xff]
    %v2058 = vld [vmem:[%s1145 + $0x32] sm:$0xff]
    %v2059 = vld [vmem:[%s1145 + $0x42] sm:$0xff]
    %v2060 = vld [vmem:[%s1145 + $0x52] sm:$0xff]
    %v2061 = vld [vmem:[%s1145 + $0x62] sm:$0xff]
    %v2062 = vld [vmem:[%s1145 + $0x72] sm:$0xff]
    %v2063 = vld [vmem:[%s1145 + $0xa2] sm:$0xff]
    %v2064 = vld [vmem:[%s1145 + $0xb2] sm:$0xff]
    %v2065 = vld [vmem:[%s1145 + $0xc2] sm:$0xff]
    %v2066 = vld [vmem:[%s1145 + $0xd2] sm:$0xff]
    %v2067 = vld [vmem:[%s1145 + $0xe2] sm:$0xff]
    %v2068 = vld [vmem:[%s1145 + $0xf2] sm:$0xff]
    %v2069 = vld [vmem:[%s1145 + $0x102] sm:$0xff]
    %v2070 = vld [vmem:[%s1145 + $0x112] sm:$0xff]
    %v2071 = vadd.f32 %v2039, %v2055
    %v2072 = vadd.f32 %v2040, %v2056
    %v2073 = vadd.f32 %v2041, %v2057
    %v2074 = vadd.f32 %v2042, %v2058
    %v2075 = vadd.f32 %v2043, %v2059
    %v2076 = vadd.f32 %v2044, %v2060
    %v2077 = vadd.f32 %v2045, %v2061
    %v2078 = vadd.f32 %v2046, %v2062
    %v2079 = vadd.f32 %v2047, %v2063
    %v2080 = vadd.f32 %v2048, %v2064
    %v2081 = vadd.f32 %v2049, %v2065
    %v2082 = vadd.f32 %v2050, %v2066
    %v2083 = vadd.f32 %v2051, %v2067
    %v2084 = vadd.f32 %v2052, %v2068
    %v2085 = vadd.f32 %v2053, %v2069
    %v2086 = vadd.f32 %v2054, %v2070
    %v2087 = vmul.f32 %v2071, 0.11111111
    %v2088 = vmul.f32 %v2072, 0.11111111
    %v2089 = vmul.f32 %v2073, 0.11111111
    %v2090 = vmul.f32 %v2074, 0.11111111
    %v2091 = vmul.f32 %v2075, 0.11111111
    %v2092 = vmul.f32 %v2076, 0.11111111
    %v2093 = vmul.f32 %v2077, 0.11111111
    %v2094 = vmul.f32 %v2078, 0.11111111
    %v2095 = vmul.f32 %v2079, 0.11111111
    %v2096 = vmul.f32 %v2080, 0.11111111
    %v2097 = vmul.f32 %v2081, 0.11111111
    %v2098 = vmul.f32 %v2082, 0.11111111
    %v2099 = vmul.f32 %v2083, 0.11111111
    %v2100 = vmul.f32 %v2084, 0.11111111
    %v2101 = vmul.f32 %v2085, 0.11111111
    %v2102 = vmul.f32 %v2086, 0.11111111
    %2119 = vrot.lane.b32.xlu0 %v2087, 16
    %v2120 = vpop.permute.xlu0 %2119
    %2121 = vrot.lane.b32.xlu0 %v2088, 16
    %v2122 = vpop.permute.xlu0 %2121
    %2123 = vrot.lane.b32.xlu0 %v2089, 16
    %v2124 = vpop.permute.xlu0 %2123
    %2125 = vrot.lane.b32.xlu0 %v2090, 16
    %v2126 = vpop.permute.xlu0 %2125
    %2127 = vrot.lane.b32.xlu0 %v2091, 16
    %v2128 = vpop.permute.xlu0 %2127
    %2129 = vrot.lane.b32.xlu0 %v2092, 16
    %v2130 = vpop.permute.xlu0 %2129
    %2131 = vrot.lane.b32.xlu0 %v2093, 16
    %v2132 = vpop.permute.xlu0 %2131
    %2133 = vrot.lane.b32.xlu0 %v2094, 16
    %v2134 = vpop.permute.xlu0 %2133
    %2135 = vrot.lane.b32.xlu0 %v2095, 16
    %v2136 = vpop.permute.xlu0 %2135
    %2137 = vrot.lane.b32.xlu0 %v2096, 16
    %v2138 = vpop.permute.xlu0 %2137
    %2139 = vrot.lane.b32.xlu0 %v2097, 16
    %v2140 = vpop.permute.xlu0 %2139
    %2141 = vrot.lane.b32.xlu0 %v2098, 16
    %v2142 = vpop.permute.xlu0 %2141
    %2143 = vrot.lane.b32.xlu0 %v2099, 16
    %v2144 = vpop.permute.xlu0 %2143
    %2145 = vrot.lane.b32.xlu0 %v2100, 16
    %v2146 = vpop.permute.xlu0 %2145
    %2147 = vrot.lane.b32.xlu0 %v2101, 16
    %v2148 = vpop.permute.xlu0 %2147
    %2149 = vrot.lane.b32.xlu0 %v2102, 16
    %v2150 = vpop.permute.xlu0 %2149
    %v2167 = vadd.f32 %v1767, %v2120
    %v2168 = vadd.f32 %v1768, %v2122
    %v2169 = vadd.f32 %v1769, %v2124
    %v2170 = vadd.f32 %v1770, %v2126
    %v2171 = vadd.f32 %v1771, %v2128
    %v2172 = vadd.f32 %v1772, %v2130
    %v2173 = vadd.f32 %v1773, %v2132
    %v2174 = vadd.f32 %v1774, %v2134
    %v2175 = vadd.f32 %v1775, %v2136
    %v2176 = vadd.f32 %v1776, %v2138
    %v2177 = vadd.f32 %v1777, %v2140
    %v2178 = vadd.f32 %v1778, %v2142
    %v2179 = vadd.f32 %v1779, %v2144
    %v2180 = vadd.f32 %v1780, %v2146
    %v2181 = vadd.f32 %v1781, %v2148
    %v2182 = vadd.f32 %v1782, %v2150
    %v2183 = vmax.f32 %v2167, 0.0
    %v2184 = vmax.f32 %v2168, 0.0
    %v2185 = vmax.f32 %v2169, 0.0
    %v2186 = vmax.f32 %v2170, 0.0
    %v2187 = vmax.f32 %v2171, 0.0
    %v2188 = vmax.f32 %v2172, 0.0
    %v2189 = vmax.f32 %v2173, 0.0
    %v2190 = vmax.f32 %v2174, 0.0
    %v2191 = vmax.f32 %v2175, 0.0
    %v2192 = vmax.f32 %v2176, 0.0
    %v2193 = vmax.f32 %v2177, 0.0
    %v2194 = vmax.f32 %v2178, 0.0
    %v2195 = vmax.f32 %v2179, 0.0
    %v2196 = vmax.f32 %v2180, 0.0
    %v2197 = vmax.f32 %v2181, 0.0
    %v2198 = vmax.f32 %v2182, 0.0
    %2215 = vrot.lane.b32.xlu0 %v2183, 112
    %v2216 = vpop.permute.xlu0 %2215
    %2217 = vrot.lane.b32.xlu0 %v2184, 112
    %v2218 = vpop.permute.xlu0 %2217
    %2219 = vrot.lane.b32.xlu0 %v2185, 112
    %v2220 = vpop.permute.xlu0 %2219
    %2221 = vrot.lane.b32.xlu0 %v2186, 112
    %v2222 = vpop.permute.xlu0 %2221
    %2223 = vrot.lane.b32.xlu0 %v2187, 112
    %v2224 = vpop.permute.xlu0 %2223
    %2225 = vrot.lane.b32.xlu0 %v2188, 112
    %v2226 = vpop.permute.xlu0 %2225
    %2227 = vrot.lane.b32.xlu0 %v2189, 112
    %v2228 = vpop.permute.xlu0 %2227
    %2229 = vrot.lane.b32.xlu0 %v2190, 112
    %v2230 = vpop.permute.xlu0 %2229
    %2231 = vrot.lane.b32.xlu0 %v2191, 112
    %v2232 = vpop.permute.xlu0 %2231
    %2233 = vrot.lane.b32.xlu0 %v2192, 112
    %v2234 = vpop.permute.xlu0 %2233
    %2235 = vrot.lane.b32.xlu0 %v2193, 112
    %v2236 = vpop.permute.xlu0 %2235
    %2237 = vrot.lane.b32.xlu0 %v2194, 112
    %v2238 = vpop.permute.xlu0 %2237
    %2239 = vrot.lane.b32.xlu0 %v2195, 112
    %v2240 = vpop.permute.xlu0 %2239
    %2241 = vrot.lane.b32.xlu0 %v2196, 112
    %v2242 = vpop.permute.xlu0 %2241
    %2243 = vrot.lane.b32.xlu0 %v2197, 112
    %v2244 = vpop.permute.xlu0 %2243
    %2245 = vrot.lane.b32.xlu0 %v2198, 112
    %v2246 = vpop.permute.xlu0 %2245
    %2263 = vst.msk [vmem:[%s141 + $0x1] sm:$0xff] %vm57, %v2216
    %2264 = vst.msk [vmem:[%s141 + $0x11] sm:$0xff] %vm57, %v2218
    %2265 = vst.msk [vmem:[%s141 + $0x21] sm:$0xff] %vm57, %v2220
    %2266 = vst.msk [vmem:[%s141 + $0x31] sm:$0xff] %vm57, %v2222
    %2267 = vst.msk [vmem:[%s141 + $0x41] sm:$0xff] %vm57, %v2224
    %2268 = vst.msk [vmem:[%s141 + $0x51] sm:$0xff] %vm57, %v2226
    %2269 = vst.msk [vmem:[%s141 + $0x61] sm:$0xff] %vm57, %v2228
    %2270 = vst.msk [vmem:[%s141 + $0x71] sm:$0xff] %vm57, %v2230
    %2271 = vst.msk [vmem:[%s141 + $0xa1] sm:$0xff] %vm57, %v2232
    %2272 = vst.msk [vmem:[%s141 + $0xb1] sm:$0xff] %vm57, %v2234
    %2273 = vst.msk [vmem:[%s141 + $0xc1] sm:$0xff] %vm57, %v2236
    %2274 = vst.msk [vmem:[%s141 + $0xd1] sm:$0xff] %vm57, %v2238
    %2275 = vst.msk [vmem:[%s141 + $0xe1] sm:$0xff] %vm57, %v2240
    %2276 = vst.msk [vmem:[%s141 + $0xf1] sm:$0xff] %vm57, %v2242
    %2277 = vst.msk [vmem:[%s141 + $0x101] sm:$0xff] %vm57, %v2244
    %2278 = vst.msk [vmem:[%s141 + $0x111] sm:$0xff] %vm57, %v2246
    %v2279 = vld [vmem:[#allocation2] sm:$0xff]
    %v2280 = vld [vmem:[#allocation2 + $0x10] sm:$0xff]
    %v2281 = vld [vmem:[#allocation2 + $0x20] sm:$0xff]
    %v2282 = vld [vmem:[#allocation2 + $0x30] sm:$0xff]
    %v2283 = vld [vmem:[#allocation2 + $0x40] sm:$0xff]
    %v2284 = vld [vmem:[#allocation2 + $0x50] sm:$0xff]
    %v2285 = vld [vmem:[#allocation2 + $0x60] sm:$0xff]
    %v2286 = vld [vmem:[#allocation2 + $0x70] sm:$0xff]
    %v2287 = vld [vmem:[#allocation2 + $0xa0] sm:$0xff]
    %v2288 = vld [vmem:[#allocation2 + $0xb0] sm:$0xff]
    %v2289 = vld [vmem:[#allocation2 + $0xc0] sm:$0xff]
    %v2290 = vld [vmem:[#allocation2 + $0xd0] sm:$0xff]
    %v2291 = vld [vmem:[#allocation2 + $0xe0] sm:$0xff]
    %v2292 = vld [vmem:[#allocation2 + $0xf0] sm:$0xff]
    %v2293 = vld [vmem:[#allocation2 + $0x100] sm:$0xff]
    %v2294 = vld [vmem:[#allocation2 + $0x110] sm:$0xff]
    %v2295 = vpack.c.bf16 %v2280, %v2279
    %v2296 = vpack.c.bf16 %v2282, %v2281
    %v2297 = vpack.c.bf16 %v2284, %v2283
    %v2298 = vpack.c.bf16 %v2286, %v2285
    %v2299 = vpack.c.bf16 %v2288, %v2287
    %v2300 = vpack.c.bf16 %v2290, %v2289
    %v2301 = vpack.c.bf16 %v2292, %v2291
    %v2302 = vpack.c.bf16 %v2294, %v2293
    %v2303 = vld [vmem:[#allocation8] sm:$0xf]
    %v2304 = vld [vmem:[#allocation8 + $0x4] sm:$0xf]
    %v2305 = vld [vmem:[#allocation2 + $0x1] sm:$0xff]
    %v2306 = vld [vmem:[#allocation2 + $0x11] sm:$0xff]
    %v2307 = vld [vmem:[#allocation2 + $0x21] sm:$0xff]
    %v2308 = vld [vmem:[#allocation2 + $0x31] sm:$0xff]
    %v2309 = vld [vmem:[#allocation2 + $0x41] sm:$0xff]
    %v2310 = vld [vmem:[#allocation2 + $0x51] sm:$0xff]
    %v2311 = vld [vmem:[#allocation2 + $0x61] sm:$0xff]
    %v2312 = vld [vmem:[#allocation2 + $0x71] sm:$0xff]
    %v2313 = vld [vmem:[#allocation2 + $0xa1] sm:$0xff]
    %v2314 = vld [vmem:[#allocation2 + $0xb1] sm:$0xff]
    %v2315 = vld [vmem:[#allocation2 + $0xc1] sm:$0xff]
    %v2316 = vld [vmem:[#allocation2 + $0xd1] sm:$0xff]
    %v2317 = vld [vmem:[#allocation2 + $0xe1] sm:$0xff]
    %v2318 = vld [vmem:[#allocation2 + $0xf1] sm:$0xff]
    %v2319 = vld [vmem:[#allocation2 + $0x101] sm:$0xff]
    %v2320 = vld [vmem:[#allocation2 + $0x111] sm:$0xff]
    %v2321 = vpack.c.bf16 %v2306, %v2305
    %v2322 = vpack.c.bf16 %v2308, %v2307
    %v2323 = vpack.c.bf16 %v2310, %v2309
    %v2324 = vpack.c.bf16 %v2312, %v2311
    %v2325 = vpack.c.bf16 %v2314, %v2313
    %v2326 = vpack.c.bf16 %v2316, %v2315
    %v2327 = vpack.c.bf16 %v2318, %v2317
    %v2328 = vpack.c.bf16 %v2320, %v2319
    %s2329 = scalar_lea.vmem [#allocation8], 8
    %v2330 = vld [vmem:[%s2329] sm:$0xf]
    %v2331 = vld [vmem:[%s2329 + $0x4] sm:$0xf]
    %v2334 = vunpack.c.l.b16 %v2330
    %v2335 = vunpack.c.l.b16 %v2331
    %v2336 = vpack.c.b16 %v2335, %v2334
    %v2339 = vsel %vm57, %v2321, 0
    %v2342 = vsel %vm57, %v2322, 0
    %v2345 = vsel %vm57, %v2323, 0
    %v2348 = vsel %vm57, %v2324, 0
    %v2351 = vsel %vm57, %v2325, 0
    %v2354 = vsel %vm57, %v2326, 0
    %v2357 = vsel %vm57, %v2327, 0
    %v2360 = vsel %vm57, %v2328, 0
    %2362 = vmatprep.subr.bf16.mxu0 0
    %2363 = vmatpush1.bf16.msra.mxu0 %v2336
    %2364 = vmatprep.subr.bf16.mxu0 0
    %2365 = vmatpush1.bf16.msra.mxu0 0
    %2366 = vmatprep.subr.bf16.mxu0 0
    %2367 = vmatpush1.bf16.msra.mxu0 0
    %2368 = vmatprep.subr.bf16.mxu0 0
    %2369 = vmatpush1.bf16.msra.mxu0 0
    %2370 = vmatprep.subr.bf16.mxu0 0
    %2371 = vmatpush1.bf16.msra.mxu0 0
    %2372 = vmatprep.subr.bf16.mxu0 0
    %2373 = vmatpush1.bf16.msra.mxu0 0
    %2374 = vmatprep.subr.bf16.mxu0 0
    %2375 = vmatpush1.bf16.msra.mxu0 0
    %2376 = vmatprep.subr.bf16.mxu0 0
    %2377 = vmatpush1.bf16.msra.mxu0 0
    %2378 = vmatprep.subr.bf16.mxu0 0
    %2379 = vmatpush1.bf16.msra.mxu0 0
    %2380 = vmatprep.subr.bf16.mxu0 0
    %2381 = vmatpush1.bf16.msra.mxu0 0
    %2382 = vmatprep.subr.bf16.mxu0 0
    %2383 = vmatpush1.bf16.msra.mxu0 0
    %2384 = vmatprep.subr.bf16.mxu0 0
    %2385 = vmatpush1.bf16.msra.mxu0 0
    %2386 = vmatprep.subr.bf16.mxu0 0
    %2387 = vmatpush1.bf16.msra.mxu0 0
    %2388 = vmatprep.subr.bf16.mxu0 0
    %2389 = vmatpush1.bf16.msra.mxu0 0
    %2390 = vmatprep.subr.bf16.mxu0 0
    %2391 = vmatpush1.bf16.msra.mxu0 0
    %2392 = vmatprep.subr.bf16.mxu0 0
    %2393 = vmatpush1.bf16.msra.mxu0 0
    %2394 = vmatprep.mubr.bf16.mxu0 0
    %2395 = vmatmul.mubr.bf16.gmra.mrb[0].mxu0 %v2339
    %v2396 = vpop.f32.mrb[0].mxu0
    %v2397 = vadd.f32 0.0, %v2396
    %v2398 = vpop.f32.mrb[0].mxu0
    %v2399 = vpop.f32.mrb[0].mxu0
    %v2400 = vadd.f32 0.0, %v2399
    %v2401 = vpop.f32.mrb[0].mxu0
    %2402 = vmatprep.mubr.bf16.mxu0 0
    %2403 = vmatmul.mubr.bf16.gmra.mrb[0].mxu0 %v2342
    %v2404 = vpop.f32.mrb[0].mxu0
    %v2405 = vadd.f32 0.0, %v2404
    %v2406 = vpop.f32.mrb[0].mxu0
    %v2407 = vpop.f32.mrb[0].mxu0
    %v2408 = vadd.f32 0.0, %v2407
    %v2409 = vpop.f32.mrb[0].mxu0
    %2410 = vmatprep.mubr.bf16.mxu0 0
    %2411 = vmatmul.mubr.bf16.gmra.mrb[0].mxu0 %v2345
    %v2412 = vpop.f32.mrb[0].mxu0
    %v2413 = vadd.f32 0.0, %v2412
    %v2414 = vpop.f32.mrb[0].mxu0
    %v2415 = vpop.f32.mrb[0].mxu0
    %v2416 = vadd.f32 0.0, %v2415
    %v2417 = vpop.f32.mrb[0].mxu0
    %2418 = vmatprep.mubr.bf16.mxu0 0
    %2419 = vmatmul.mubr.bf16.gmra.mrb[0].mxu0 %v2348
    %v2420 = vpop.f32.mrb[0].mxu0
    %v2421 = vadd.f32 0.0, %v2420
    %v2422 = vpop.f32.mrb[0].mxu0
    %v2423 = vpop.f32.mrb[0].mxu0
    %v2424 = vadd.f32 0.0, %v2423
    %v2425 = vpop.f32.mrb[0].mxu0
    %2426 = vmatprep.mubr.bf16.mxu0 0
    %2427 = vmatmul.mubr.bf16.gmra.mrb[0].mxu0 %v2351
    %v2428 = vpop.f32.mrb[0].mxu0
    %v2429 = vadd.f32 0.0, %v2428
    %v2430 = vpop.f32.mrb[0].mxu0
    %v2431 = vpop.f32.mrb[0].mxu0
    %v2432 = vadd.f32 0.0, %v2431
    %v2433 = vpop.f32.mrb[0].mxu0
    %2434 = vmatprep.mubr.bf16.mxu0 0
    %2435 = vmatmul.mubr.bf16.gmra.mrb[0].mxu0 %v2354
    %v2436 = vpop.f32.mrb[0].mxu0
    %v2437 = vadd.f32 0.0, %v2436
    %v2438 = vpop.f32.mrb[0].mxu0
    %v2439 = vpop.f32.mrb[0].mxu0
    %v2440 = vadd.f32 0.0, %v2439
    %v2441 = vpop.f32.mrb[0].mxu0
    %2442 = vmatprep.mubr.bf16.mxu0 0
    %2443 = vmatmul.mubr.bf16.gmra.mrb[0].mxu0 %v2357
    %v2444 = vpop.f32.mrb[0].mxu0
    %v2445 = vadd.f32 0.0, %v2444
    %v2446 = vpop.f32.mrb[0].mxu0
    %v2447 = vpop.f32.mrb[0].mxu0
    %v2448 = vadd.f32 0.0, %v2447
    %v2449 = vpop.f32.mrb[0].mxu0
    %2450 = vmatprep.mubr.bf16.mxu0 0
    %2451 = vmatmul.mubr.bf16.gmra.mrb[0].mxu0 %v2360
    %v2452 = vpop.f32.mrb[0].mxu0
    %v2453 = vadd.f32 0.0, %v2452
    %v2454 = vpop.f32.mrb[0].mxu0
    %v2455 = vpop.f32.mrb[0].mxu0
    %v2456 = vadd.f32 0.0, %v2455
    %v2457 = vpop.f32.mrb[0].mxu0
    %2458 = vdwg.mxu0
    %v2461 = vunpack.c.l.b16 %v2303
    %v2462 = vunpack.c.l.b16 %v2304
    %v2463 = vpack.c.b16 %v2462, %v2461
    %v2466 = vsel %vm57, %v2295, 0
    %v2469 = vsel %vm57, %v2296, 0
    %v2472 = vsel %vm57, %v2297, 0
    %v2475 = vsel %vm57, %v2298, 0
    %v2478 = vsel %vm57, %v2299, 0
    %v2481 = vsel %vm57, %v2300, 0
    %v2484 = vsel %vm57, %v2301, 0
    %v2487 = vsel %vm57, %v2302, 0
    %2489 = vmatprep.subr.bf16.mxu0 0
    %2490 = vmatpush1.bf16.msra.mxu0 %v2463
    %2491 = vmatprep.subr.bf16.mxu0 0
    %2492 = vmatpush1.bf16.msra.mxu0 0
    %2493 = vmatprep.subr.bf16.mxu0 0
    %2494 = vmatpush1.bf16.msra.mxu0 0
    %2495 = vmatprep.subr.bf16.mxu0 0
    %2496 = vmatpush1.bf16.msra.mxu0 0
    %2497 = vmatprep.subr.bf16.mxu0 0
    %2498 = vmatpush1.bf16.msra.mxu0 0
    %2499 = vmatprep.subr.bf16.mxu0 0
    %2500 = vmatpush1.bf16.msra.mxu0 0
    %2501 = vmatprep.subr.bf16.mxu0 0
    %2502 = vmatpush1.bf16.msra.mxu0 0
    %2503 = vmatprep.subr.bf16.mxu0 0
    %2504 = vmatpush1.bf16.msra.mxu0 0
    %2505 = vmatprep.subr.bf16.mxu0 0
    %2506 = vmatpush1.bf16.msra.mxu0 0
    %2507 = vmatprep.subr.bf16.mxu0 0
    %2508 = vmatpush1.bf16.msra.mxu0 0
    %2509 = vmatprep.subr.bf16.mxu0 0
    %2510 = vmatpush1.bf16.msra.mxu0 0
    %2511 = vmatprep.subr.bf16.mxu0 0
    %2512 = vmatpush1.bf16.msra.mxu0 0
    %2513 = vmatprep.subr.bf16.mxu0 0
    %2514 = vmatpush1.bf16.msra.mxu0 0
    %2515 = vmatprep.subr.bf16.mxu0 0
    %2516 = vmatpush1.bf16.msra.mxu0 0
    %2517 = vmatprep.subr.bf16.mxu0 0
    %2518 = vmatpush1.bf16.msra.mxu0 0
    %2519 = vmatprep.subr.bf16.mxu0 0
    %2520 = vmatpush1.bf16.msra.mxu0 0
    %2521 = vmatprep.mubr.bf16.mxu0 0
    %2522 = vmatmul.mubr.bf16.gmra.mrb[0].mxu0 %v2466
    %v2523 = vpop.f32.mrb[0].mxu0
    %v2524 = vadd.f32 %v2397, %v2523
    %v2525 = vpop.f32.mrb[0].mxu0
    %v2526 = vpop.f32.mrb[0].mxu0
    %v2527 = vadd.f32 %v2400, %v2526
    %v2528 = vpop.f32.mrb[0].mxu0
    %2529 = vmatprep.mubr.bf16.mxu0 0
    %2530 = vmatmul.mubr.bf16.gmra.mrb[0].mxu0 %v2469
    %v2531 = vpop.f32.mrb[0].mxu0
    %v2532 = vadd.f32 %v2405, %v2531
    %v2533 = vpop.f32.mrb[0].mxu0
    %v2534 = vpop.f32.mrb[0].mxu0
    %v2535 = vadd.f32 %v2408, %v2534
    %v2536 = vpop.f32.mrb[0].mxu0
    %2537 = vmatprep.mubr.bf16.mxu0 0
    %2538 = vmatmul.mubr.bf16.gmra.mrb[0].mxu0 %v2472
    %v2539 = vpop.f32.mrb[0].mxu0
    %v2540 = vadd.f32 %v2413, %v2539
    %v2541 = vpop.f32.mrb[0].mxu0
    %v2542 = vpop.f32.mrb[0].mxu0
    %v2543 = vadd.f32 %v2416, %v2542
    %v2544 = vpop.f32.mrb[0].mxu0
    %2545 = vmatprep.mubr.bf16.mxu0 0
    %2546 = vmatmul.mubr.bf16.gmra.mrb[0].mxu0 %v2475
    %v2547 = vpop.f32.mrb[0].mxu0
    %v2548 = vadd.f32 %v2421, %v2547
    %v2549 = vpop.f32.mrb[0].mxu0
    %v2550 = vpop.f32.mrb[0].mxu0
    %v2551 = vadd.f32 %v2424, %v2550
    %v2552 = vpop.f32.mrb[0].mxu0
    %2553 = vmatprep.mubr.bf16.mxu0 0
    %2554 = vmatmul.mubr.bf16.gmra.mrb[0].mxu0 %v2478
    %v2555 = vpop.f32.mrb[0].mxu0
    %v2556 = vadd.f32 %v2429, %v2555
    %v2557 = vpop.f32.mrb[0].mxu0
    %v2558 = vpop.f32.mrb[0].mxu0
    %v2559 = vadd.f32 %v2432, %v2558
    %v2560 = vpop.f32.mrb[0].mxu0
    %2561 = vmatprep.mubr.bf16.mxu0 0
    %2562 = vmatmul.mubr.bf16.gmra.mrb[0].mxu0 %v2481
    %v2563 = vpop.f32.mrb[0].mxu0
    %v2564 = vadd.f32 %v2437, %v2563
    %v2565 = vpop.f32.mrb[0].mxu0
    %v2566 = vpop.f32.mrb[0].mxu0
    %v2567 = vadd.f32 %v2440, %v2566
    %v2568 = vpop.f32.mrb[0].mxu0
    %2569 = vmatprep.mubr.bf16.mxu0 0
    %2570 = vmatmul.mubr.bf16.gmra.mrb[0].mxu0 %v2484
    %v2571 = vpop.f32.mrb[0].mxu0
    %v2572 = vadd.f32 %v2445, %v2571
    %v2573 = vpop.f32.mrb[0].mxu0
    %v2574 = vpop.f32.mrb[0].mxu0
    %v2575 = vadd.f32 %v2448, %v2574
    %v2576 = vpop.f32.mrb[0].mxu0
    %2577 = vmatprep.mubr.bf16.mxu0 0
    %2578 = vmatmul.mubr.bf16.gmra.mrb[0].mxu0 %v2487
    %v2579 = vpop.f32.mrb[0].mxu0
    %v2580 = vadd.f32 %v2453, %v2579
    %v2581 = vpop.f32.mrb[0].mxu0
    %v2582 = vpop.f32.mrb[0].mxu0
    %v2583 = vadd.f32 %v2456, %v2582
    %v2584 = vpop.f32.mrb[0].mxu0
    %2585 = vdwg.mxu0
    %v2586 = vld [vmem:[#allocation2 + $0x2] sm:$0xff]
    %v2587 = vld [vmem:[#allocation2 + $0x12] sm:$0xff]
    %v2588 = vld [vmem:[#allocation2 + $0x22] sm:$0xff]
    %v2589 = vld [vmem:[#allocation2 + $0x32] sm:$0xff]
    %v2590 = vld [vmem:[#allocation2 + $0x42] sm:$0xff]
    %v2591 = vld [vmem:[#allocation2 + $0x52] sm:$0xff]
    %v2592 = vld [vmem:[#allocation2 + $0x62] sm:$0xff]
    %v2593 = vld [vmem:[#allocation2 + $0x72] sm:$0xff]
    %v2594 = vld [vmem:[#allocation2 + $0xa2] sm:$0xff]
    %v2595 = vld [vmem:[#allocation2 + $0xb2] sm:$0xff]
    %v2596 = vld [vmem:[#allocation2 + $0xc2] sm:$0xff]
    %v2597 = vld [vmem:[#allocation2 + $0xd2] sm:$0xff]
    %v2598 = vld [vmem:[#allocation2 + $0xe2] sm:$0xff]
    %v2599 = vld [vmem:[#allocation2 + $0xf2] sm:$0xff]
    %v2600 = vld [vmem:[#allocation2 + $0x102] sm:$0xff]
    %v2601 = vld [vmem:[#allocation2 + $0x112] sm:$0xff]
    %v2602 = vpack.c.bf16 %v2587, %v2586
    %v2603 = vpack.c.bf16 %v2589, %v2588
    %v2604 = vpack.c.bf16 %v2591, %v2590
    %v2605 = vpack.c.bf16 %v2593, %v2592
    %v2606 = vpack.c.bf16 %v2595, %v2594
    %v2607 = vpack.c.bf16 %v2597, %v2596
    %v2608 = vpack.c.bf16 %v2599, %v2598
    %v2609 = vpack.c.bf16 %v2601, %v2600
    %s2610 = scalar_lea.vmem [#allocation8], 16
    %v2611 = vld [vmem:[%s2610] sm:$0xf]
    %v2612 = vld [vmem:[%s2610 + $0x4] sm:$0xf]
    %v2615 = vunpack.c.l.b16 %v2611
    %v2616 = vunpack.c.l.b16 %v2612
    %v2617 = vpack.c.b16 %v2616, %v2615
    %v2620 = vsel %vm57, %v2602, 0
    %v2623 = vsel %vm57, %v2603, 0
    %v2626 = vsel %vm57, %v2604, 0
    %v2629 = vsel %vm57, %v2605, 0
    %v2632 = vsel %vm57, %v2606, 0
    %v2635 = vsel %vm57, %v2607, 0
    %v2638 = vsel %vm57, %v2608, 0
    %v2641 = vsel %vm57, %v2609, 0
    %2643 = vmatprep.subr.bf16.mxu0 0
    %2644 = vmatpush1.bf16.msra.mxu0 %v2617
    %2645 = vmatprep.subr.bf16.mxu0 0
    %2646 = vmatpush1.bf16.msra.mxu0 0
    %2647 = vmatprep.subr.bf16.mxu0 0
    %2648 = vmatpush1.bf16.msra.mxu0 0
    %2649 = vmatprep.subr.bf16.mxu0 0
    %2650 = vmatpush1.bf16.msra.mxu0 0
    %2651 = vmatprep.subr.bf16.mxu0 0
    %2652 = vmatpush1.bf16.msra.mxu0 0
    %2653 = vmatprep.subr.bf16.mxu0 0
    %2654 = vmatpush1.bf16.msra.mxu0 0
    %2655 = vmatprep.subr.bf16.mxu0 0
    %2656 = vmatpush1.bf16.msra.mxu0 0
    %2657 = vmatprep.subr.bf16.mxu0 0
    %2658 = vmatpush1.bf16.msra.mxu0 0
    %2659 = vmatprep.subr.bf16.mxu0 0
    %2660 = vmatpush1.bf16.msra.mxu0 0
    %2661 = vmatprep.subr.bf16.mxu0 0
    %2662 = vmatpush1.bf16.msra.mxu0 0
    %2663 = vmatprep.subr.bf16.mxu0 0
    %2664 = vmatpush1.bf16.msra.mxu0 0
    %2665 = vmatprep.subr.bf16.mxu0 0
    %2666 = vmatpush1.bf16.msra.mxu0 0
    %2667 = vmatprep.subr.bf16.mxu0 0
    %2668 = vmatpush1.bf16.msra.mxu0 0
    %2669 = vmatprep.subr.bf16.mxu0 0
    %2670 = vmatpush1.bf16.msra.mxu0 0
    %2671 = vmatprep.subr.bf16.mxu0 0
    %2672 = vmatpush1.bf16.msra.mxu0 0
    %2673 = vmatprep.subr.bf16.mxu0 0
    %2674 = vmatpush1.bf16.msra.mxu0 0
    %2675 = vmatprep.mubr.bf16.mxu0 0
    %2676 = vmatmul.mubr.bf16.gmra.mrb[0].mxu0 %v2620
    %v2677 = vpop.f32.mrb[0].mxu0
    %v2678 = vadd.f32 0.0, %v2677
    %v2679 = vpop.f32.mrb[0].mxu0
    %v2680 = vpop.f32.mrb[0].mxu0
    %v2681 = vadd.f32 0.0, %v2680
    %v2682 = vpop.f32.mrb[0].mxu0
    %2683 = vmatprep.mubr.bf16.mxu0 0
    %2684 = vmatmul.mubr.bf16.gmra.mrb[0].mxu0 %v2623
    %v2685 = vpop.f32.mrb[0].mxu0
    %v2686 = vadd.f32 0.0, %v2685
    %v2687 = vpop.f32.mrb[0].mxu0
    %v2688 = vpop.f32.mrb[0].mxu0
    %v2689 = vadd.f32 0.0, %v2688
    %v2690 = vpop.f32.mrb[0].mxu0
    %2691 = vmatprep.mubr.bf16.mxu0 0
    %2692 = vmatmul.mubr.bf16.gmra.mrb[0].mxu0 %v2626
    %v2693 = vpop.f32.mrb[0].mxu0
    %v2694 = vadd.f32 0.0, %v2693
    %v2695 = vpop.f32.mrb[0].mxu0
    %v2696 = vpop.f32.mrb[0].mxu0
    %v2697 = vadd.f32 0.0, %v2696
    %v2698 = vpop.f32.mrb[0].mxu0
    %2699 = vmatprep.mubr.bf16.mxu0 0
    %2700 = vmatmul.mubr.bf16.gmra.mrb[0].mxu0 %v2629
    %v2701 = vpop.f32.mrb[0].mxu0
    %v2702 = vadd.f32 0.0, %v2701
    %v2703 = vpop.f32.mrb[0].mxu0
    %v2704 = vpop.f32.mrb[0].mxu0
    %v2705 = vadd.f32 0.0, %v2704
    %v2706 = vpop.f32.mrb[0].mxu0
    %2707 = vmatprep.mubr.bf16.mxu0 0
    %2708 = vmatmul.mubr.bf16.gmra.mrb[0].mxu0 %v2632
    %v2709 = vpop.f32.mrb[0].mxu0
    %v2710 = vadd.f32 0.0, %v2709
    %v2711 = vpop.f32.mrb[0].mxu0
    %v2712 = vpop.f32.mrb[0].mxu0
    %v2713 = vadd.f32 0.0, %v2712
    %v2714 = vpop.f32.mrb[0].mxu0
    %2715 = vmatprep.mubr.bf16.mxu0 0
    %2716 = vmatmul.mubr.bf16.gmra.mrb[0].mxu0 %v2635
    %v2717 = vpop.f32.mrb[0].mxu0
    %v2718 = vadd.f32 0.0, %v2717
    %v2719 = vpop.f32.mrb[0].mxu0
    %v2720 = vpop.f32.mrb[0].mxu0
    %v2721 = vadd.f32 0.0, %v2720
    %v2722 = vpop.f32.mrb[0].mxu0
    %2723 = vmatprep.mubr.bf16.mxu0 0
    %2724 = vmatmul.mubr.bf16.gmra.mrb[0].mxu0 %v2638
    %v2725 = vpop.f32.mrb[0].mxu0
    %v2726 = vadd.f32 0.0, %v2725
    %v2727 = vpop.f32.mrb[0].mxu0
    %v2728 = vpop.f32.mrb[0].mxu0
    %v2729 = vadd.f32 0.0, %v2728
    %v2730 = vpop.f32.mrb[0].mxu0
    %2731 = vmatprep.mubr.bf16.mxu0 0
    %2732 = vmatmul.mubr.bf16.gmra.mrb[0].mxu0 %v2641
    %v2733 = vpop.f32.mrb[0].mxu0
    %v2734 = vadd.f32 0.0, %v2733
    %v2735 = vpop.f32.mrb[0].mxu0
    %v2736 = vpop.f32.mrb[0].mxu0
    %v2737 = vadd.f32 0.0, %v2736
    %v2738 = vpop.f32.mrb[0].mxu0
    %2739 = vdwg.mxu0
    %v2740 = vadd.f32 %v2524, %v2678
    %v2741 = vadd.f32 %v2527, %v2681
    %v2742 = vadd.f32 %v2532, %v2686
    %v2743 = vadd.f32 %v2535, %v2689
    %v2744 = vadd.f32 %v2540, %v2694
    %v2745 = vadd.f32 %v2543, %v2697
    %v2746 = vadd.f32 %v2548, %v2702
    %v2747 = vadd.f32 %v2551, %v2705
    %v2748 = vadd.f32 %v2556, %v2710
    %v2749 = vadd.f32 %v2559, %v2713
    %v2750 = vadd.f32 %v2564, %v2718
    %v2751 = vadd.f32 %v2567, %v2721
    %v2752 = vadd.f32 %v2572, %v2726
    %v2753 = vadd.f32 %v2575, %v2729
    %v2754 = vadd.f32 %v2580, %v2734
    %v2755 = vadd.f32 %v2583, %v2737
    %v2756 = vld [vmem:[%s141] sm:$0xff]
    %v2757 = vld [vmem:[%s141 + $0x10] sm:$0xff]
    %v2758 = vld [vmem:[%s141 + $0x20] sm:$0xff]
    %v2759 = vld [vmem:[%s141 + $0x30] sm:$0xff]
    %v2760 = vld [vmem:[%s141 + $0x40] sm:$0xff]
    %v2761 = vld [vmem:[%s141 + $0x50] sm:$0xff]
    %v2762 = vld [vmem:[%s141 + $0x60] sm:$0xff]
    %v2763 = vld [vmem:[%s141 + $0x70] sm:$0xff]
    %v2764 = vld [vmem:[%s141 + $0xa0] sm:$0xff]
    %v2765 = vld [vmem:[%s141 + $0xb0] sm:$0xff]
    %v2766 = vld [vmem:[%s141 + $0xc0] sm:$0xff]
    %v2767 = vld [vmem:[%s141 + $0xd0] sm:$0xff]
    %v2768 = vld [vmem:[%s141 + $0xe0] sm:$0xff]
    %v2769 = vld [vmem:[%s141 + $0xf0] sm:$0xff]
    %v2770 = vld [vmem:[%s141 + $0x100] sm:$0xff]
    %v2771 = vld [vmem:[%s141 + $0x110] sm:$0xff]
    %v2772 = vpack.c.bf16 %v2757, %v2756
    %v2773 = vpack.c.bf16 %v2759, %v2758
    %v2774 = vpack.c.bf16 %v2761, %v2760
    %v2775 = vpack.c.bf16 %v2763, %v2762
    %v2776 = vpack.c.bf16 %v2765, %v2764
    %v2777 = vpack.c.bf16 %v2767, %v2766
    %v2778 = vpack.c.bf16 %v2769, %v2768
    %v2779 = vpack.c.bf16 %v2771, %v2770
    %s2780 = scalar_lea.vmem [#allocation8], 24
    %v2781 = vld [vmem:[%s2780] sm:$0xf]
    %v2782 = vld [vmem:[%s2780 + $0x4] sm:$0xf]
    %v2785 = vunpack.c.l.b16 %v2781
    %v2786 = vunpack.c.l.b16 %v2782
    %v2787 = vpack.c.b16 %v2786, %v2785
    %v2790 = vsel %vm57, %v2772, 0
    %v2793 = vsel %vm57, %v2773, 0
    %v2796 = vsel %vm57, %v2774, 0
    %v2799 = vsel %vm57, %v2775, 0
    %v2802 = vsel %vm57, %v2776, 0
    %v2805 = vsel %vm57, %v2777, 0
    %v2808 = vsel %vm57, %v2778, 0
    %v2811 = vsel %vm57, %v2779, 0
    %2813 = vmatprep.subr.bf16.mxu0 0
    %2814 = vmatpush1.bf16.msra.mxu0 %v2787
    %2815 = vmatprep.subr.bf16.mxu0 0
    %2816 = vmatpush1.bf16.msra.mxu0 0
    %2817 = vmatprep.subr.bf16.mxu0 0
    %2818 = vmatpush1.bf16.msra.mxu0 0
    %2819 = vmatprep.subr.bf16.mxu0 0
    %2820 = vmatpush1.bf16.msra.mxu0 0
    %2821 = vmatprep.subr.bf16.mxu0 0
    %2822 = vmatpush1.bf16.msra.mxu0 0
    %2823 = vmatprep.subr.bf16.mxu0 0
    %2824 = vmatpush1.bf16.msra.mxu0 0
    %2825 = vmatprep.subr.bf16.mxu0 0
    %2826 = vmatpush1.bf16.msra.mxu0 0
    %2827 = vmatprep.subr.bf16.mxu0 0
    %2828 = vmatpush1.bf16.msra.mxu0 0
    %2829 = vmatprep.subr.bf16.mxu0 0
    %2830 = vmatpush1.bf16.msra.mxu0 0
    %2831 = vmatprep.subr.bf16.mxu0 0
    %2832 = vmatpush1.bf16.msra.mxu0 0
    %2833 = vmatprep.subr.bf16.mxu0 0
    %2834 = vmatpush1.bf16.msra.mxu0 0
    %2835 = vmatprep.subr.bf16.mxu0 0
    %2836 = vmatpush1.bf16.msra.mxu0 0
    %2837 = vmatprep.subr.bf16.mxu0 0
    %2838 = vmatpush1.bf16.msra.mxu0 0
    %2839 = vmatprep.subr.bf16.mxu0 0
    %2840 = vmatpush1.bf16.msra.mxu0 0
    %2841 = vmatprep.subr.bf16.mxu0 0
    %2842 = vmatpush1.bf16.msra.mxu0 0
    %2843 = vmatprep.subr.bf16.mxu0 0
    %2844 = vmatpush1.bf16.msra.mxu0 0
    %2845 = vmatprep.mubr.bf16.mxu0 0
    %2846 = vmatmul.mubr.bf16.gmra.mrb[0].mxu0 %v2790
    %v2847 = vpop.f32.mrb[0].mxu0
    %v2848 = vadd.f32 0.0, %v2847
    %v2849 = vpop.f32.mrb[0].mxu0
    %v2850 = vpop.f32.mrb[0].mxu0
    %v2851 = vadd.f32 0.0, %v2850
    %v2852 = vpop.f32.mrb[0].mxu0
    %2853 = vmatprep.mubr.bf16.mxu0 0
    %2854 = vmatmul.mubr.bf16.gmra.mrb[0].mxu0 %v2793
    %v2855 = vpop.f32.mrb[0].mxu0
    %v2856 = vadd.f32 0.0, %v2855
    %v2857 = vpop.f32.mrb[0].mxu0
    %v2858 = vpop.f32.mrb[0].mxu0
    %v2859 = vadd.f32 0.0, %v2858
    %v2860 = vpop.f32.mrb[0].mxu0
    %2861 = vmatprep.mubr.bf16.mxu0 0
    %2862 = vmatmul.mubr.bf16.gmra.mrb[0].mxu0 %v2796
    %v2863 = vpop.f32.mrb[0].mxu0
    %v2864 = vadd.f32 0.0, %v2863
    %v2865 = vpop.f32.mrb[0].mxu0
    %v2866 = vpop.f32.mrb[0].mxu0
    %v2867 = vadd.f32 0.0, %v2866
    %v2868 = vpop.f32.mrb[0].mxu0
    %2869 = vmatprep.mubr.bf16.mxu0 0
    %2870 = vmatmul.mubr.bf16.gmra.mrb[0].mxu0 %v2799
    %v2871 = vpop.f32.mrb[0].mxu0
    %v2872 = vadd.f32 0.0, %v2871
    %v2873 = vpop.f32.mrb[0].mxu0
    %v2874 = vpop.f32.mrb[0].mxu0
    %v2875 = vadd.f32 0.0, %v2874
    %v2876 = vpop.f32.mrb[0].mxu0
    %2877 = vmatprep.mubr.bf16.mxu0 0
    %2878 = vmatmul.mubr.bf16.gmra.mrb[0].mxu0 %v2802
    %v2879 = vpop.f32.mrb[0].mxu0
    %v2880 = vadd.f32 0.0, %v2879
    %v2881 = vpop.f32.mrb[0].mxu0
    %v2882 = vpop.f32.mrb[0].mxu0
    %v2883 = vadd.f32 0.0, %v2882
    %v2884 = vpop.f32.mrb[0].mxu0
    %2885 = vmatprep.mubr.bf16.mxu0 0
    %2886 = vmatmul.mubr.bf16.gmra.mrb[0].mxu0 %v2805
    %v2887 = vpop.f32.mrb[0].mxu0
    %v2888 = vadd.f32 0.0, %v2887
    %v2889 = vpop.f32.mrb[0].mxu0
    %v2890 = vpop.f32.mrb[0].mxu0
    %v2891 = vadd.f32 0.0, %v2890
    %v2892 = vpop.f32.mrb[0].mxu0
    %2893 = vmatprep.mubr.bf16.mxu0 0
    %2894 = vmatmul.mubr.bf16.gmra.mrb[0].mxu0 %v2808
    %v2895 = vpop.f32.mrb[0].mxu0
    %v2896 = vadd.f32 0.0, %v2895
    %v2897 = vpop.f32.mrb[0].mxu0
    %v2898 = vpop.f32.mrb[0].mxu0
    %v2899 = vadd.f32 0.0, %v2898
    %v2900 = vpop.f32.mrb[0].mxu0
    %2901 = vmatprep.mubr.bf16.mxu0 0
    %2902 = vmatmul.mubr.bf16.gmra.mrb[0].mxu0 %v2811
    %v2903 = vpop.f32.mrb[0].mxu0
    %v2904 = vadd.f32 0.0, %v2903
    %v2905 = vpop.f32.mrb[0].mxu0
    %v2906 = vpop.f32.mrb[0].mxu0
    %v2907 = vadd.f32 0.0, %v2906
    %v2908 = vpop.f32.mrb[0].mxu0
    %2909 = vdwg.mxu0
    %v2910 = vadd.f32 %v2740, %v2848
    %v2911 = vadd.f32 %v2741, %v2851
    %v2912 = vadd.f32 %v2742, %v2856
    %v2913 = vadd.f32 %v2743, %v2859
    %v2914 = vadd.f32 %v2744, %v2864
    %v2915 = vadd.f32 %v2745, %v2867
    %v2916 = vadd.f32 %v2746, %v2872
    %v2917 = vadd.f32 %v2747, %v2875
    %v2918 = vadd.f32 %v2748, %v2880
    %v2919 = vadd.f32 %v2749, %v2883
    %v2920 = vadd.f32 %v2750, %v2888
    %v2921 = vadd.f32 %v2751, %v2891
    %v2922 = vadd.f32 %v2752, %v2896
    %v2923 = vadd.f32 %v2753, %v2899
    %v2924 = vadd.f32 %v2754, %v2904
    %v2925 = vadd.f32 %v2755, %v2907
    %v2926 = vld [vmem:[%s141 + $0x1] sm:$0xff]
    %v2927 = vld [vmem:[%s141 + $0x11] sm:$0xff]
    %v2928 = vld [vmem:[%s141 + $0x21] sm:$0xff]
    %v2929 = vld [vmem:[%s141 + $0x31] sm:$0xff]
    %v2930 = vld [vmem:[%s141 + $0x41] sm:$0xff]
    %v2931 = vld [vmem:[%s141 + $0x51] sm:$0xff]
    %v2932 = vld [vmem:[%s141 + $0x61] sm:$0xff]
    %v2933 = vld [vmem:[%s141 + $0x71] sm:$0xff]
    %v2934 = vld [vmem:[%s141 + $0xa1] sm:$0xff]
    %v2935 = vld [vmem:[%s141 + $0xb1] sm:$0xff]
    %v2936 = vld [vmem:[%s141 + $0xc1] sm:$0xff]
    %v2937 = vld [vmem:[%s141 + $0xd1] sm:$0xff]
    %v2938 = vld [vmem:[%s141 + $0xe1] sm:$0xff]
    %v2939 = vld [vmem:[%s141 + $0xf1] sm:$0xff]
    %v2940 = vld [vmem:[%s141 + $0x101] sm:$0xff]
    %v2941 = vld [vmem:[%s141 + $0x111] sm:$0xff]
    %v2942 = vpack.c.bf16 %v2927, %v2926
    %v2943 = vpack.c.bf16 %v2929, %v2928
    %v2944 = vpack.c.bf16 %v2931, %v2930
    %v2945 = vpack.c.bf16 %v2933, %v2932
    %v2946 = vpack.c.bf16 %v2935, %v2934
    %v2947 = vpack.c.bf16 %v2937, %v2936
    %v2948 = vpack.c.bf16 %v2939, %v2938
    %v2949 = vpack.c.bf16 %v2941, %v2940
    %s2950 = scalar_lea.vmem [#allocation8], 32
    %v2951 = vld [vmem:[%s2950] sm:$0xf]
    %v2952 = vld [vmem:[%s2950 + $0x4] sm:$0xf]
    %v2955 = vunpack.c.l.b16 %v2951
    %v2956 = vunpack.c.l.b16 %v2952
    %v2957 = vpack.c.b16 %v2956, %v2955
    %v2960 = vsel %vm57, %v2942, 0
    %v2963 = vsel %vm57, %v2943, 0
    %v2966 = vsel %vm57, %v2944, 0
    %v2969 = vsel %vm57, %v2945, 0
    %v2972 = vsel %vm57, %v2946, 0
    %v2975 = vsel %vm57, %v2947, 0
    %v2978 = vsel %vm57, %v2948, 0
    %v2981 = vsel %vm57, %v2949, 0
    %2983 = vmatprep.subr.bf16.mxu0 0
    %2984 = vmatpush1.bf16.msra.mxu0 %v2957
    %2985 = vmatprep.subr.bf16.mxu0 0
    %2986 = vmatpush1.bf16.msra.mxu0 0
    %2987 = vmatprep.subr.bf16.mxu0 0
    %2988 = vmatpush1.bf16.msra.mxu0 0
    %2989 = vmatprep.subr.bf16.mxu0 0
    %2990 = vmatpush1.bf16.msra.mxu0 0
    %2991 = vmatprep.subr.bf16.mxu0 0
    %2992 = vmatpush1.bf16.msra.mxu0 0
    %2993 = vmatprep.subr.bf16.mxu0 0
    %2994 = vmatpush1.bf16.msra.mxu0 0
    %2995 = vmatprep.subr.bf16.mxu0 0
    %2996 = vmatpush1.bf16.msra.mxu0 0
    %2997 = vmatprep.subr.bf16.mxu0 0
    %2998 = vmatpush1.bf16.msra.mxu0 0
    %2999 = vmatprep.subr.bf16.mxu0 0
    %3000 = vmatpush1.bf16.msra.mxu0 0
    %3001 = vmatprep.subr.bf16.mxu0 0
    %3002 = vmatpush1.bf16.msra.mxu0 0
    %3003 = vmatprep.subr.bf16.mxu0 0
    %3004 = vmatpush1.bf16.msra.mxu0 0
    %3005 = vmatprep.subr.bf16.mxu0 0
    %3006 = vmatpush1.bf16.msra.mxu0 0
    %3007 = vmatprep.subr.bf16.mxu0 0
    %3008 = vmatpush1.bf16.msra.mxu0 0
    %3009 = vmatprep.subr.bf16.mxu0 0
    %3010 = vmatpush1.bf16.msra.mxu0 0
    %3011 = vmatprep.subr.bf16.mxu0 0
    %3012 = vmatpush1.bf16.msra.mxu0 0
    %3013 = vmatprep.subr.bf16.mxu0 0
    %3014 = vmatpush1.bf16.msra.mxu0 0
    %3015 = vmatprep.mubr.bf16.mxu0 0
    %3016 = vmatmul.mubr.bf16.gmra.mrb[0].mxu0 %v2960
    %v3017 = vpop.f32.mrb[0].mxu0
    %v3018 = vadd.f32 0.0, %v3017
    %v3019 = vpop.f32.mrb[0].mxu0
    %v3020 = vpop.f32.mrb[0].mxu0
    %v3021 = vadd.f32 0.0, %v3020
    %v3022 = vpop.f32.mrb[0].mxu0
    %3023 = vmatprep.mubr.bf16.mxu0 0
    %3024 = vmatmul.mubr.bf16.gmra.mrb[0].mxu0 %v2963
    %v3025 = vpop.f32.mrb[0].mxu0
    %v3026 = vadd.f32 0.0, %v3025
    %v3027 = vpop.f32.mrb[0].mxu0
    %v3028 = vpop.f32.mrb[0].mxu0
    %v3029 = vadd.f32 0.0, %v3028
    %v3030 = vpop.f32.mrb[0].mxu0
    %3031 = vmatprep.mubr.bf16.mxu0 0
    %3032 = vmatmul.mubr.bf16.gmra.mrb[0].mxu0 %v2966
    %v3033 = vpop.f32.mrb[0].mxu0
    %v3034 = vadd.f32 0.0, %v3033
    %v3035 = vpop.f32.mrb[0].mxu0
    %v3036 = vpop.f32.mrb[0].mxu0
    %v3037 = vadd.f32 0.0, %v3036
    %v3038 = vpop.f32.mrb[0].mxu0
    %3039 = vmatprep.mubr.bf16.mxu0 0
    %3040 = vmatmul.mubr.bf16.gmra.mrb[0].mxu0 %v2969
    %v3041 = vpop.f32.mrb[0].mxu0
    %v3042 = vadd.f32 0.0, %v3041
    %v3043 = vpop.f32.mrb[0].mxu0
    %v3044 = vpop.f32.mrb[0].mxu0
    %v3045 = vadd.f32 0.0, %v3044
    %v3046 = vpop.f32.mrb[0].mxu0
    %3047 = vmatprep.mubr.bf16.mxu0 0
    %3048 = vmatmul.mubr.bf16.gmra.mrb[0].mxu0 %v2972
    %v3049 = vpop.f32.mrb[0].mxu0
    %v3050 = vadd.f32 0.0, %v3049
    %v3051 = vpop.f32.mrb[0].mxu0
    %v3052 = vpop.f32.mrb[0].mxu0
    %v3053 = vadd.f32 0.0, %v3052
    %v3054 = vpop.f32.mrb[0].mxu0
    %3055 = vmatprep.mubr.bf16.mxu0 0
    %3056 = vmatmul.mubr.bf16.gmra.mrb[0].mxu0 %v2975
    %v3057 = vpop.f32.mrb[0].mxu0
    %v3058 = vadd.f32 0.0, %v3057
    %v3059 = vpop.f32.mrb[0].mxu0
    %v3060 = vpop.f32.mrb[0].mxu0
    %v3061 = vadd.f32 0.0, %v3060
    %v3062 = vpop.f32.mrb[0].mxu0
    %3063 = vmatprep.mubr.bf16.mxu0 0
    %3064 = vmatmul.mubr.bf16.gmra.mrb[0].mxu0 %v2978
    %v3065 = vpop.f32.mrb[0].mxu0
    %v3066 = vadd.f32 0.0, %v3065
    %v3067 = vpop.f32.mrb[0].mxu0
    %v3068 = vpop.f32.mrb[0].mxu0
    %v3069 = vadd.f32 0.0, %v3068
    %v3070 = vpop.f32.mrb[0].mxu0
    %3071 = vmatprep.mubr.bf16.mxu0 0
    %3072 = vmatmul.mubr.bf16.gmra.mrb[0].mxu0 %v2981
    %v3073 = vpop.f32.mrb[0].mxu0
    %v3074 = vadd.f32 0.0, %v3073
    %v3075 = vpop.f32.mrb[0].mxu0
    %v3076 = vpop.f32.mrb[0].mxu0
    %v3077 = vadd.f32 0.0, %v3076
    %v3078 = vpop.f32.mrb[0].mxu0
    %3079 = vdwg.mxu0
    %v3080 = vadd.f32 %v2910, %v3018
    %v3081 = vadd.f32 %v2911, %v3021
    %v3082 = vadd.f32 %v2912, %v3026
    %v3083 = vadd.f32 %v2913, %v3029
    %v3084 = vadd.f32 %v2914, %v3034
    %v3085 = vadd.f32 %v2915, %v3037
    %v3086 = vadd.f32 %v2916, %v3042
    %v3087 = vadd.f32 %v2917, %v3045
    %v3088 = vadd.f32 %v2918, %v3050
    %v3089 = vadd.f32 %v2919, %v3053
    %v3090 = vadd.f32 %v2920, %v3058
    %v3091 = vadd.f32 %v2921, %v3061
    %v3092 = vadd.f32 %v2922, %v3066
    %v3093 = vadd.f32 %v2923, %v3069
    %v3094 = vadd.f32 %v2924, %v3074
    %v3095 = vadd.f32 %v2925, %v3077
    %v3096 = vld [vmem:[%s141 + $0x2] sm:$0xff]
    %v3097 = vld [vmem:[%s141 + $0x12] sm:$0xff]
    %v3098 = vld [vmem:[%s141 + $0x22] sm:$0xff]
    %v3099 = vld [vmem:[%s141 + $0x32] sm:$0xff]
    %v3100 = vld [vmem:[%s141 + $0x42] sm:$0xff]
    %v3101 = vld [vmem:[%s141 + $0x52] sm:$0xff]
    %v3102 = vld [vmem:[%s141 + $0x62] sm:$0xff]
    %v3103 = vld [vmem:[%s141 + $0x72] sm:$0xff]
    %v3104 = vld [vmem:[%s141 + $0xa2] sm:$0xff]
    %v3105 = vld [vmem:[%s141 + $0xb2] sm:$0xff]
    %v3106 = vld [vmem:[%s141 + $0xc2] sm:$0xff]
    %v3107 = vld [vmem:[%s141 + $0xd2] sm:$0xff]
    %v3108 = vld [vmem:[%s141 + $0xe2] sm:$0xff]
    %v3109 = vld [vmem:[%s141 + $0xf2] sm:$0xff]
    %v3110 = vld [vmem:[%s141 + $0x102] sm:$0xff]
    %v3111 = vld [vmem:[%s141 + $0x112] sm:$0xff]
    %v3112 = vpack.c.bf16 %v3097, %v3096
    %v3113 = vpack.c.bf16 %v3099, %v3098
    %v3114 = vpack.c.bf16 %v3101, %v3100
    %v3115 = vpack.c.bf16 %v3103, %v3102
    %v3116 = vpack.c.bf16 %v3105, %v3104
    %v3117 = vpack.c.bf16 %v3107, %v3106
    %v3118 = vpack.c.bf16 %v3109, %v3108
    %v3119 = vpack.c.bf16 %v3111, %v3110
    %s3120 = scalar_lea.vmem [#allocation8], 40
    %v3121 = vld [vmem:[%s3120] sm:$0xf]
    %v3122 = vld [vmem:[%s3120 + $0x4] sm:$0xf]
    %v3125 = vunpack.c.l.b16 %v3121
    %v3126 = vunpack.c.l.b16 %v3122
    %v3127 = vpack.c.b16 %v3126, %v3125
    %v3130 = vsel %vm57, %v3112, 0
    %v3133 = vsel %vm57, %v3113, 0
    %v3136 = vsel %vm57, %v3114, 0
    %v3139 = vsel %vm57, %v3115, 0
    %v3142 = vsel %vm57, %v3116, 0
    %v3145 = vsel %vm57, %v3117, 0
    %v3148 = vsel %vm57, %v3118, 0
    %v3151 = vsel %vm57, %v3119, 0
    %3153 = vmatprep.subr.bf16.mxu0 0
    %3154 = vmatpush1.bf16.msra.mxu0 %v3127
    %3155 = vmatprep.subr.bf16.mxu0 0
    %3156 = vmatpush1.bf16.msra.mxu0 0
    %3157 = vmatprep.subr.bf16.mxu0 0
    %3158 = vmatpush1.bf16.msra.mxu0 0
    %3159 = vmatprep.subr.bf16.mxu0 0
    %3160 = vmatpush1.bf16.msra.mxu0 0
    %3161 = vmatprep.subr.bf16.mxu0 0
    %3162 = vmatpush1.bf16.msra.mxu0 0
    %3163 = vmatprep.subr.bf16.mxu0 0
    %3164 = vmatpush1.bf16.msra.mxu0 0
    %3165 = vmatprep.subr.bf16.mxu0 0
    %3166 = vmatpush1.bf16.msra.mxu0 0
    %3167 = vmatprep.subr.bf16.mxu0 0
    %3168 = vmatpush1.bf16.msra.mxu0 0
    %3169 = vmatprep.subr.bf16.mxu0 0
    %3170 = vmatpush1.bf16.msra.mxu0 0
    %3171 = vmatprep.subr.bf16.mxu0 0
    %3172 = vmatpush1.bf16.msra.mxu0 0
    %3173 = vmatprep.subr.bf16.mxu0 0
    %3174 = vmatpush1.bf16.msra.mxu0 0
    %3175 = vmatprep.subr.bf16.mxu0 0
    %3176 = vmatpush1.bf16.msra.mxu0 0
    %3177 = vmatprep.subr.bf16.mxu0 0
    %3178 = vmatpush1.bf16.msra.mxu0 0
    %3179 = vmatprep.subr.bf16.mxu0 0
    %3180 = vmatpush1.bf16.msra.mxu0 0
    %3181 = vmatprep.subr.bf16.mxu0 0
    %3182 = vmatpush1.bf16.msra.mxu0 0
    %3183 = vmatprep.subr.bf16.mxu0 0
    %3184 = vmatpush1.bf16.msra.mxu0 0
    %3185 = vmatprep.mubr.bf16.mxu0 0
    %3186 = vmatmul.mubr.bf16.gmra.mrb[0].mxu0 %v3130
    %v3187 = vpop.f32.mrb[0].mxu0
    %v3188 = vadd.f32 0.0, %v3187
    %v3189 = vpop.f32.mrb[0].mxu0
    %v3190 = vpop.f32.mrb[0].mxu0
    %v3191 = vadd.f32 0.0, %v3190
    %v3192 = vpop.f32.mrb[0].mxu0
    %3193 = vmatprep.mubr.bf16.mxu0 0
    %3194 = vmatmul.mubr.bf16.gmra.mrb[0].mxu0 %v3133
    %v3195 = vpop.f32.mrb[0].mxu0
    %v3196 = vadd.f32 0.0, %v3195
    %v3197 = vpop.f32.mrb[0].mxu0
    %v3198 = vpop.f32.mrb[0].mxu0
    %v3199 = vadd.f32 0.0, %v3198
    %v3200 = vpop.f32.mrb[0].mxu0
    %3201 = vmatprep.mubr.bf16.mxu0 0
    %3202 = vmatmul.mubr.bf16.gmra.mrb[0].mxu0 %v3136
    %v3203 = vpop.f32.mrb[0].mxu0
    %v3204 = vadd.f32 0.0, %v3203
    %v3205 = vpop.f32.mrb[0].mxu0
    %v3206 = vpop.f32.mrb[0].mxu0
    %v3207 = vadd.f32 0.0, %v3206
    %v3208 = vpop.f32.mrb[0].mxu0
    %3209 = vmatprep.mubr.bf16.mxu0 0
    %3210 = vmatmul.mubr.bf16.gmra.mrb[0].mxu0 %v3139
    %v3211 = vpop.f32.mrb[0].mxu0
    %v3212 = vadd.f32 0.0, %v3211
    %v3213 = vpop.f32.mrb[0].mxu0
    %v3214 = vpop.f32.mrb[0].mxu0
    %v3215 = vadd.f32 0.0, %v3214
    %v3216 = vpop.f32.mrb[0].mxu0
    %3217 = vmatprep.mubr.bf16.mxu0 0
    %3218 = vmatmul.mubr.bf16.gmra.mrb[0].mxu0 %v3142
    %v3219 = vpop.f32.mrb[0].mxu0
    %v3220 = vadd.f32 0.0, %v3219
    %v3221 = vpop.f32.mrb[0].mxu0
    %v3222 = vpop.f32.mrb[0].mxu0
    %v3223 = vadd.f32 0.0, %v3222
    %v3224 = vpop.f32.mrb[0].mxu0
    %3225 = vmatprep.mubr.bf16.mxu0 0
    %3226 = vmatmul.mubr.bf16.gmra.mrb[0].mxu0 %v3145
    %v3227 = vpop.f32.mrb[0].mxu0
    %v3228 = vadd.f32 0.0, %v3227
    %v3229 = vpop.f32.mrb[0].mxu0
    %v3230 = vpop.f32.mrb[0].mxu0
    %v3231 = vadd.f32 0.0, %v3230
    %v3232 = vpop.f32.mrb[0].mxu0
    %3233 = vmatprep.mubr.bf16.mxu0 0
    %3234 = vmatmul.mubr.bf16.gmra.mrb[0].mxu0 %v3148
    %v3235 = vpop.f32.mrb[0].mxu0
    %v3236 = vadd.f32 0.0, %v3235
    %v3237 = vpop.f32.mrb[0].mxu0
    %v3238 = vpop.f32.mrb[0].mxu0
    %v3239 = vadd.f32 0.0, %v3238
    %v3240 = vpop.f32.mrb[0].mxu0
    %3241 = vmatprep.mubr.bf16.mxu0 0
    %3242 = vmatmul.mubr.bf16.gmra.mrb[0].mxu0 %v3151
    %v3243 = vpop.f32.mrb[0].mxu0
    %v3244 = vadd.f32 0.0, %v3243
    %v3245 = vpop.f32.mrb[0].mxu0
    %v3246 = vpop.f32.mrb[0].mxu0
    %v3247 = vadd.f32 0.0, %v3246
    %v3248 = vpop.f32.mrb[0].mxu0
    %3249 = vdwg.mxu0
    %v3250 = vadd.f32 %v3080, %v3188
    %v3251 = vadd.f32 %v3081, %v3191
    %v3252 = vadd.f32 %v3082, %v3196
    %v3253 = vadd.f32 %v3083, %v3199
    %v3254 = vadd.f32 %v3084, %v3204
    %v3255 = vadd.f32 %v3085, %v3207
    %v3256 = vadd.f32 %v3086, %v3212
    %v3257 = vadd.f32 %v3087, %v3215
    %v3258 = vadd.f32 %v3088, %v3220
    %v3259 = vadd.f32 %v3089, %v3223
    %v3260 = vadd.f32 %v3090, %v3228
    %v3261 = vadd.f32 %v3091, %v3231
    %v3262 = vadd.f32 %v3092, %v3236
    %v3263 = vadd.f32 %v3093, %v3239
    %v3264 = vadd.f32 %v3094, %v3244
    %v3265 = vadd.f32 %v3095, %v3247
    %v3266 = vld [vmem:[%s1145] sm:$0xff]
    %v3267 = vld [vmem:[%s1145 + $0x10] sm:$0xff]
    %v3268 = vld [vmem:[%s1145 + $0x20] sm:$0xff]
    %v3269 = vld [vmem:[%s1145 + $0x30] sm:$0xff]
    %v3270 = vld [vmem:[%s1145 + $0x40] sm:$0xff]
    %v3271 = vld [vmem:[%s1145 + $0x50] sm:$0xff]
    %v3272 = vld [vmem:[%s1145 + $0x60] sm:$0xff]
    %v3273 = vld [vmem:[%s1145 + $0x70] sm:$0xff]
    %v3274 = vld [vmem:[%s1145 + $0xa0] sm:$0xff]
    %v3275 = vld [vmem:[%s1145 + $0xb0] sm:$0xff]
    %v3276 = vld [vmem:[%s1145 + $0xc0] sm:$0xff]
    %v3277 = vld [vmem:[%s1145 + $0xd0] sm:$0xff]
    %v3278 = vld [vmem:[%s1145 + $0xe0] sm:$0xff]
    %v3279 = vld [vmem:[%s1145 + $0xf0] sm:$0xff]
    %v3280 = vld [vmem:[%s1145 + $0x100] sm:$0xff]
    %v3281 = vld [vmem:[%s1145 + $0x110] sm:$0xff]
    %v3282 = vpack.c.bf16 %v3267, %v3266
    %v3283 = vpack.c.bf16 %v3269, %v3268
    %v3284 = vpack.c.bf16 %v3271, %v3270
    %v3285 = vpack.c.bf16 %v3273, %v3272
    %v3286 = vpack.c.bf16 %v3275, %v3274
    %v3287 = vpack.c.bf16 %v3277, %v3276
    %v3288 = vpack.c.bf16 %v3279, %v3278
    %v3289 = vpack.c.bf16 %v3281, %v3280
    %s3290 = scalar_lea.vmem [#allocation8], 48
    %v3291 = vld [vmem:[%s3290] sm:$0xf]
    %v3292 = vld [vmem:[%s3290 + $0x4] sm:$0xf]
    %v3295 = vunpack.c.l.b16 %v3291
    %v3296 = vunpack.c.l.b16 %v3292
    %v3297 = vpack.c.b16 %v3296, %v3295
    %v3300 = vsel %vm57, %v3282, 0
    %v3303 = vsel %vm57, %v3283, 0
    %v3306 = vsel %vm57, %v3284, 0
    %v3309 = vsel %vm57, %v3285, 0
    %v3312 = vsel %vm57, %v3286, 0
    %v3315 = vsel %vm57, %v3287, 0
    %v3318 = vsel %vm57, %v3288, 0
    %v3321 = vsel %vm57, %v3289, 0
    %3323 = vmatprep.subr.bf16.mxu0 0
    %3324 = vmatpush1.bf16.msra.mxu0 %v3297
    %3325 = vmatprep.subr.bf16.mxu0 0
    %3326 = vmatpush1.bf16.msra.mxu0 0
    %3327 = vmatprep.subr.bf16.mxu0 0
    %3328 = vmatpush1.bf16.msra.mxu0 0
    %3329 = vmatprep.subr.bf16.mxu0 0
    %3330 = vmatpush1.bf16.msra.mxu0 0
    %3331 = vmatprep.subr.bf16.mxu0 0
    %3332 = vmatpush1.bf16.msra.mxu0 0
    %3333 = vmatprep.subr.bf16.mxu0 0
    %3334 = vmatpush1.bf16.msra.mxu0 0
    %3335 = vmatprep.subr.bf16.mxu0 0
    %3336 = vmatpush1.bf16.msra.mxu0 0
    %3337 = vmatprep.subr.bf16.mxu0 0
    %3338 = vmatpush1.bf16.msra.mxu0 0
    %3339 = vmatprep.subr.bf16.mxu0 0
    %3340 = vmatpush1.bf16.msra.mxu0 0
    %3341 = vmatprep.subr.bf16.mxu0 0
    %3342 = vmatpush1.bf16.msra.mxu0 0
    %3343 = vmatprep.subr.bf16.mxu0 0
    %3344 = vmatpush1.bf16.msra.mxu0 0
    %3345 = vmatprep.subr.bf16.mxu0 0
    %3346 = vmatpush1.bf16.msra.mxu0 0
    %3347 = vmatprep.subr.bf16.mxu0 0
    %3348 = vmatpush1.bf16.msra.mxu0 0
    %3349 = vmatprep.subr.bf16.mxu0 0
    %3350 = vmatpush1.bf16.msra.mxu0 0
    %3351 = vmatprep.subr.bf16.mxu0 0
    %3352 = vmatpush1.bf16.msra.mxu0 0
    %3353 = vmatprep.subr.bf16.mxu0 0
    %3354 = vmatpush1.bf16.msra.mxu0 0
    %3355 = vmatprep.mubr.bf16.mxu0 0
    %3356 = vmatmul.mubr.bf16.gmra.mrb[0].mxu0 %v3300
    %v3357 = vpop.f32.mrb[0].mxu0
    %v3358 = vadd.f32 0.0, %v3357
    %v3359 = vpop.f32.mrb[0].mxu0
    %v3360 = vpop.f32.mrb[0].mxu0
    %v3361 = vadd.f32 0.0, %v3360
    %v3362 = vpop.f32.mrb[0].mxu0
    %3363 = vmatprep.mubr.bf16.mxu0 0
    %3364 = vmatmul.mubr.bf16.gmra.mrb[0].mxu0 %v3303
    %v3365 = vpop.f32.mrb[0].mxu0
    %v3366 = vadd.f32 0.0, %v3365
    %v3367 = vpop.f32.mrb[0].mxu0
    %v3368 = vpop.f32.mrb[0].mxu0
    %v3369 = vadd.f32 0.0, %v3368
    %v3370 = vpop.f32.mrb[0].mxu0
    %3371 = vmatprep.mubr.bf16.mxu0 0
    %3372 = vmatmul.mubr.bf16.gmra.mrb[0].mxu0 %v3306
    %v3373 = vpop.f32.mrb[0].mxu0
    %v3374 = vadd.f32 0.0, %v3373
    %v3375 = vpop.f32.mrb[0].mxu0
    %v3376 = vpop.f32.mrb[0].mxu0
    %v3377 = vadd.f32 0.0, %v3376
    %v3378 = vpop.f32.mrb[0].mxu0
    %3379 = vmatprep.mubr.bf16.mxu0 0
    %3380 = vmatmul.mubr.bf16.gmra.mrb[0].mxu0 %v3309
    %v3381 = vpop.f32.mrb[0].mxu0
    %v3382 = vadd.f32 0.0, %v3381
    %v3383 = vpop.f32.mrb[0].mxu0
    %v3384 = vpop.f32.mrb[0].mxu0
    %v3385 = vadd.f32 0.0, %v3384
    %v3386 = vpop.f32.mrb[0].mxu0
    %3387 = vmatprep.mubr.bf16.mxu0 0
    %3388 = vmatmul.mubr.bf16.gmra.mrb[0].mxu0 %v3312
    %v3389 = vpop.f32.mrb[0].mxu0
    %v3390 = vadd.f32 0.0, %v3389
    %v3391 = vpop.f32.mrb[0].mxu0
    %v3392 = vpop.f32.mrb[0].mxu0
    %v3393 = vadd.f32 0.0, %v3392
    %v3394 = vpop.f32.mrb[0].mxu0
    %3395 = vmatprep.mubr.bf16.mxu0 0
    %3396 = vmatmul.mubr.bf16.gmra.mrb[0].mxu0 %v3315
    %v3397 = vpop.f32.mrb[0].mxu0
    %v3398 = vadd.f32 0.0, %v3397
    %v3399 = vpop.f32.mrb[0].mxu0
    %v3400 = vpop.f32.mrb[0].mxu0
    %v3401 = vadd.f32 0.0, %v3400
    %v3402 = vpop.f32.mrb[0].mxu0
    %3403 = vmatprep.mubr.bf16.mxu0 0
    %3404 = vmatmul.mubr.bf16.gmra.mrb[0].mxu0 %v3318
    %v3405 = vpop.f32.mrb[0].mxu0
    %v3406 = vadd.f32 0.0, %v3405
    %v3407 = vpop.f32.mrb[0].mxu0
    %v3408 = vpop.f32.mrb[0].mxu0
    %v3409 = vadd.f32 0.0, %v3408
    %v3410 = vpop.f32.mrb[0].mxu0
    %3411 = vmatprep.mubr.bf16.mxu0 0
    %3412 = vmatmul.mubr.bf16.gmra.mrb[0].mxu0 %v3321
    %v3413 = vpop.f32.mrb[0].mxu0
    %v3414 = vadd.f32 0.0, %v3413
    %v3415 = vpop.f32.mrb[0].mxu0
    %v3416 = vpop.f32.mrb[0].mxu0
    %v3417 = vadd.f32 0.0, %v3416
    %v3418 = vpop.f32.mrb[0].mxu0
    %3419 = vdwg.mxu0
    %v3420 = vadd.f32 %v3250, %v3358
    %v3421 = vadd.f32 %v3251, %v3361
    %v3422 = vadd.f32 %v3252, %v3366
    %v3423 = vadd.f32 %v3253, %v3369
    %v3424 = vadd.f32 %v3254, %v3374
    %v3425 = vadd.f32 %v3255, %v3377
    %v3426 = vadd.f32 %v3256, %v3382
    %v3427 = vadd.f32 %v3257, %v3385
    %v3428 = vadd.f32 %v3258, %v3390
    %v3429 = vadd.f32 %v3259, %v3393
    %v3430 = vadd.f32 %v3260, %v3398
    %v3431 = vadd.f32 %v3261, %v3401
    %v3432 = vadd.f32 %v3262, %v3406
    %v3433 = vadd.f32 %v3263, %v3409
    %v3434 = vadd.f32 %v3264, %v3414
    %v3435 = vadd.f32 %v3265, %v3417
    %v3436 = vld [vmem:[%s1145 + $0x1] sm:$0xff]
    %v3437 = vld [vmem:[%s1145 + $0x11] sm:$0xff]
    %v3438 = vld [vmem:[%s1145 + $0x21] sm:$0xff]
    %v3439 = vld [vmem:[%s1145 + $0x31] sm:$0xff]
    %v3440 = vld [vmem:[%s1145 + $0x41] sm:$0xff]
    %v3441 = vld [vmem:[%s1145 + $0x51] sm:$0xff]
    %v3442 = vld [vmem:[%s1145 + $0x61] sm:$0xff]
    %v3443 = vld [vmem:[%s1145 + $0x71] sm:$0xff]
    %v3444 = vld [vmem:[%s1145 + $0xa1] sm:$0xff]
    %v3445 = vld [vmem:[%s1145 + $0xb1] sm:$0xff]
    %v3446 = vld [vmem:[%s1145 + $0xc1] sm:$0xff]
    %v3447 = vld [vmem:[%s1145 + $0xd1] sm:$0xff]
    %v3448 = vld [vmem:[%s1145 + $0xe1] sm:$0xff]
    %v3449 = vld [vmem:[%s1145 + $0xf1] sm:$0xff]
    %v3450 = vld [vmem:[%s1145 + $0x101] sm:$0xff]
    %v3451 = vld [vmem:[%s1145 + $0x111] sm:$0xff]
    %v3452 = vpack.c.bf16 %v3437, %v3436
    %v3453 = vpack.c.bf16 %v3439, %v3438
    %v3454 = vpack.c.bf16 %v3441, %v3440
    %v3455 = vpack.c.bf16 %v3443, %v3442
    %v3456 = vpack.c.bf16 %v3445, %v3444
    %v3457 = vpack.c.bf16 %v3447, %v3446
    %v3458 = vpack.c.bf16 %v3449, %v3448
    %v3459 = vpack.c.bf16 %v3451, %v3450
    %s3460 = scalar_lea.vmem [#allocation8], 56
    %v3461 = vld [vmem:[%s3460] sm:$0xf]
    %v3462 = vld [vmem:[%s3460 + $0x4] sm:$0xf]
    %v3465 = vunpack.c.l.b16 %v3461
    %v3466 = vunpack.c.l.b16 %v3462
    %v3467 = vpack.c.b16 %v3466, %v3465
    %v3470 = vsel %vm57, %v3452, 0
    %v3473 = vsel %vm57, %v3453, 0
    %v3476 = vsel %vm57, %v3454, 0
    %v3479 = vsel %vm57, %v3455, 0
    %v3482 = vsel %vm57, %v3456, 0
    %v3485 = vsel %vm57, %v3457, 0
    %v3488 = vsel %vm57, %v3458, 0
    %v3491 = vsel %vm57, %v3459, 0
    %3493 = vmatprep.subr.bf16.mxu0 0
    %3494 = vmatpush1.bf16.msra.mxu0 %v3467
    %3495 = vmatprep.subr.bf16.mxu0 0
    %3496 = vmatpush1.bf16.msra.mxu0 0
    %3497 = vmatprep.subr.bf16.mxu0 0
    %3498 = vmatpush1.bf16.msra.mxu0 0
    %3499 = vmatprep.subr.bf16.mxu0 0
    %3500 = vmatpush1.bf16.msra.mxu0 0
    %3501 = vmatprep.subr.bf16.mxu0 0
    %3502 = vmatpush1.bf16.msra.mxu0 0
    %3503 = vmatprep.subr.bf16.mxu0 0
    %3504 = vmatpush1.bf16.msra.mxu0 0
    %3505 = vmatprep.subr.bf16.mxu0 0
    %3506 = vmatpush1.bf16.msra.mxu0 0
    %3507 = vmatprep.subr.bf16.mxu0 0
    %3508 = vmatpush1.bf16.msra.mxu0 0
    %3509 = vmatprep.subr.bf16.mxu0 0
    %3510 = vmatpush1.bf16.msra.mxu0 0
    %3511 = vmatprep.subr.bf16.mxu0 0
    %3512 = vmatpush1.bf16.msra.mxu0 0
    %3513 = vmatprep.subr.bf16.mxu0 0
    %3514 = vmatpush1.bf16.msra.mxu0 0
    %3515 = vmatprep.subr.bf16.mxu0 0
    %3516 = vmatpush1.bf16.msra.mxu0 0
    %3517 = vmatprep.subr.bf16.mxu0 0
    %3518 = vmatpush1.bf16.msra.mxu0 0
    %3519 = vmatprep.subr.bf16.mxu0 0
    %3520 = vmatpush1.bf16.msra.mxu0 0
    %3521 = vmatprep.subr.bf16.mxu0 0
    %3522 = vmatpush1.bf16.msra.mxu0 0
    %3523 = vmatprep.subr.bf16.mxu0 0
    %3524 = vmatpush1.bf16.msra.mxu0 0
    %3525 = vmatprep.mubr.bf16.mxu0 0
    %3526 = vmatmul.mubr.bf16.gmra.mrb[0].mxu0 %v3470
    %v3527 = vpop.f32.mrb[0].mxu0
    %v3528 = vadd.f32 0.0, %v3527
    %v3529 = vpop.f32.mrb[0].mxu0
    %v3530 = vpop.f32.mrb[0].mxu0
    %v3531 = vadd.f32 0.0, %v3530
    %v3532 = vpop.f32.mrb[0].mxu0
    %3533 = vmatprep.mubr.bf16.mxu0 0
    %3534 = vmatmul.mubr.bf16.gmra.mrb[0].mxu0 %v3473
    %v3535 = vpop.f32.mrb[0].mxu0
    %v3536 = vadd.f32 0.0, %v3535
    %v3537 = vpop.f32.mrb[0].mxu0
    %v3538 = vpop.f32.mrb[0].mxu0
    %v3539 = vadd.f32 0.0, %v3538
    %v3540 = vpop.f32.mrb[0].mxu0
    %3541 = vmatprep.mubr.bf16.mxu0 0
    %3542 = vmatmul.mubr.bf16.gmra.mrb[0].mxu0 %v3476
    %v3543 = vpop.f32.mrb[0].mxu0
    %v3544 = vadd.f32 0.0, %v3543
    %v3545 = vpop.f32.mrb[0].mxu0
    %v3546 = vpop.f32.mrb[0].mxu0
    %v3547 = vadd.f32 0.0, %v3546
    %v3548 = vpop.f32.mrb[0].mxu0
    %3549 = vmatprep.mubr.bf16.mxu0 0
    %3550 = vmatmul.mubr.bf16.gmra.mrb[0].mxu0 %v3479
    %v3551 = vpop.f32.mrb[0].mxu0
    %v3552 = vadd.f32 0.0, %v3551
    %v3553 = vpop.f32.mrb[0].mxu0
    %v3554 = vpop.f32.mrb[0].mxu0
    %v3555 = vadd.f32 0.0, %v3554
    %v3556 = vpop.f32.mrb[0].mxu0
    %3557 = vmatprep.mubr.bf16.mxu0 0
    %3558 = vmatmul.mubr.bf16.gmra.mrb[0].mxu0 %v3482
    %v3559 = vpop.f32.mrb[0].mxu0
    %v3560 = vadd.f32 0.0, %v3559
    %v3561 = vpop.f32.mrb[0].mxu0
    %v3562 = vpop.f32.mrb[0].mxu0
    %v3563 = vadd.f32 0.0, %v3562
    %v3564 = vpop.f32.mrb[0].mxu0
    %3565 = vmatprep.mubr.bf16.mxu0 0
    %3566 = vmatmul.mubr.bf16.gmra.mrb[0].mxu0 %v3485
    %v3567 = vpop.f32.mrb[0].mxu0
    %v3568 = vadd.f32 0.0, %v3567
    %v3569 = vpop.f32.mrb[0].mxu0
    %v3570 = vpop.f32.mrb[0].mxu0
    %v3571 = vadd.f32 0.0, %v3570
    %v3572 = vpop.f32.mrb[0].mxu0
    %3573 = vmatprep.mubr.bf16.mxu0 0
    %3574 = vmatmul.mubr.bf16.gmra.mrb[0].mxu0 %v3488
    %v3575 = vpop.f32.mrb[0].mxu0
    %v3576 = vadd.f32 0.0, %v3575
    %v3577 = vpop.f32.mrb[0].mxu0
    %v3578 = vpop.f32.mrb[0].mxu0
    %v3579 = vadd.f32 0.0, %v3578
    %v3580 = vpop.f32.mrb[0].mxu0
    %3581 = vmatprep.mubr.bf16.mxu0 0
    %3582 = vmatmul.mubr.bf16.gmra.mrb[0].mxu0 %v3491
    %v3583 = vpop.f32.mrb[0].mxu0
    %v3584 = vadd.f32 0.0, %v3583
    %v3585 = vpop.f32.mrb[0].mxu0
    %v3586 = vpop.f32.mrb[0].mxu0
    %v3587 = vadd.f32 0.0, %v3586
    %v3588 = vpop.f32.mrb[0].mxu0
    %3589 = vdwg.mxu0
    %v3590 = vadd.f32 %v3420, %v3528
    %v3591 = vadd.f32 %v3421, %v3531
    %v3592 = vadd.f32 %v3422, %v3536
    %v3593 = vadd.f32 %v3423, %v3539
    %v3594 = vadd.f32 %v3424, %v3544
    %v3595 = vadd.f32 %v3425, %v3547
    %v3596 = vadd.f32 %v3426, %v3552
    %v3597 = vadd.f32 %v3427, %v3555
    %v3598 = vadd.f32 %v3428, %v3560
    %v3599 = vadd.f32 %v3429, %v3563
    %v3600 = vadd.f32 %v3430, %v3568
    %v3601 = vadd.f32 %v3431, %v3571
    %v3602 = vadd.f32 %v3432, %v3576
    %v3603 = vadd.f32 %v3433, %v3579
    %v3604 = vadd.f32 %v3434, %v3584
    %v3605 = vadd.f32 %v3435, %v3587
    %v3606 = vld [vmem:[%s1145 + $0x2] sm:$0xff]
    %v3607 = vld [vmem:[%s1145 + $0x12] sm:$0xff]
    %v3608 = vld [vmem:[%s1145 + $0x22] sm:$0xff]
    %v3609 = vld [vmem:[%s1145 + $0x32] sm:$0xff]
    %v3610 = vld [vmem:[%s1145 + $0x42] sm:$0xff]
    %v3611 = vld [vmem:[%s1145 + $0x52] sm:$0xff]
    %v3612 = vld [vmem:[%s1145 + $0x62] sm:$0xff]
    %v3613 = vld [vmem:[%s1145 + $0x72] sm:$0xff]
    %v3614 = vld [vmem:[%s1145 + $0xa2] sm:$0xff]
    %v3615 = vld [vmem:[%s1145 + $0xb2] sm:$0xff]
    %v3616 = vld [vmem:[%s1145 + $0xc2] sm:$0xff]
    %v3617 = vld [vmem:[%s1145 + $0xd2] sm:$0xff]
    %v3618 = vld [vmem:[%s1145 + $0xe2] sm:$0xff]
    %v3619 = vld [vmem:[%s1145 + $0xf2] sm:$0xff]
    %v3620 = vld [vmem:[%s1145 + $0x102] sm:$0xff]
    %v3621 = vld [vmem:[%s1145 + $0x112] sm:$0xff]
    %v3622 = vpack.c.bf16 %v3607, %v3606
    %v3623 = vpack.c.bf16 %v3609, %v3608
    %v3624 = vpack.c.bf16 %v3611, %v3610
    %v3625 = vpack.c.bf16 %v3613, %v3612
    %v3626 = vpack.c.bf16 %v3615, %v3614
    %v3627 = vpack.c.bf16 %v3617, %v3616
    %v3628 = vpack.c.bf16 %v3619, %v3618
    %v3629 = vpack.c.bf16 %v3621, %v3620
    %s3630 = scalar_lea.vmem [#allocation8], 64
    %v3631 = vld [vmem:[%s3630] sm:$0xf]
    %v3632 = vld [vmem:[%s3630 + $0x4] sm:$0xf]
    %v3635 = vunpack.c.l.b16 %v3631
    %v3636 = vunpack.c.l.b16 %v3632
    %v3637 = vpack.c.b16 %v3636, %v3635
    %v3640 = vsel %vm57, %v3622, 0
    %v3643 = vsel %vm57, %v3623, 0
    %v3646 = vsel %vm57, %v3624, 0
    %v3649 = vsel %vm57, %v3625, 0
    %v3652 = vsel %vm57, %v3626, 0
    %v3655 = vsel %vm57, %v3627, 0
    %v3658 = vsel %vm57, %v3628, 0
    %v3661 = vsel %vm57, %v3629, 0
    %3663 = vmatprep.subr.bf16.mxu0 0
    %3664 = vmatpush1.bf16.msra.mxu0 %v3637
    %3665 = vmatprep.subr.bf16.mxu0 0
    %3666 = vmatpush1.bf16.msra.mxu0 0
    %3667 = vmatprep.subr.bf16.mxu0 0
    %3668 = vmatpush1.bf16.msra.mxu0 0
    %3669 = vmatprep.subr.bf16.mxu0 0
    %3670 = vmatpush1.bf16.msra.mxu0 0
    %3671 = vmatprep.subr.bf16.mxu0 0
    %3672 = vmatpush1.bf16.msra.mxu0 0
    %3673 = vmatprep.subr.bf16.mxu0 0
    %3674 = vmatpush1.bf16.msra.mxu0 0
    %3675 = vmatprep.subr.bf16.mxu0 0
    %3676 = vmatpush1.bf16.msra.mxu0 0
    %3677 = vmatprep.subr.bf16.mxu0 0
    %3678 = vmatpush1.bf16.msra.mxu0 0
    %3679 = vmatprep.subr.bf16.mxu0 0
    %3680 = vmatpush1.bf16.msra.mxu0 0
    %3681 = vmatprep.subr.bf16.mxu0 0
    %3682 = vmatpush1.bf16.msra.mxu0 0
    %3683 = vmatprep.subr.bf16.mxu0 0
    %3684 = vmatpush1.bf16.msra.mxu0 0
    %3685 = vmatprep.subr.bf16.mxu0 0
    %3686 = vmatpush1.bf16.msra.mxu0 0
    %3687 = vmatprep.subr.bf16.mxu0 0
    %3688 = vmatpush1.bf16.msra.mxu0 0
    %3689 = vmatprep.subr.bf16.mxu0 0
    %3690 = vmatpush1.bf16.msra.mxu0 0
    %3691 = vmatprep.subr.bf16.mxu0 0
    %3692 = vmatpush1.bf16.msra.mxu0 0
    %3693 = vmatprep.subr.bf16.mxu0 0
    %3694 = vmatpush1.bf16.msra.mxu0 0
    %3695 = vmatprep.mubr.bf16.mxu0 0
    %3696 = vmatmul.mubr.bf16.gmra.mrb[0].mxu0 %v3640
    %v3697 = vpop.f32.mrb[0].mxu0
    %v3698 = vadd.f32 0.0, %v3697
    %v3699 = vpop.f32.mrb[0].mxu0
    %v3700 = vpop.f32.mrb[0].mxu0
    %v3701 = vadd.f32 0.0, %v3700
    %v3702 = vpop.f32.mrb[0].mxu0
    %3703 = vmatprep.mubr.bf16.mxu0 0
    %3704 = vmatmul.mubr.bf16.gmra.mrb[0].mxu0 %v3643
    %v3705 = vpop.f32.mrb[0].mxu0
    %v3706 = vadd.f32 0.0, %v3705
    %v3707 = vpop.f32.mrb[0].mxu0
    %v3708 = vpop.f32.mrb[0].mxu0
    %v3709 = vadd.f32 0.0, %v3708
    %v3710 = vpop.f32.mrb[0].mxu0
    %3711 = vmatprep.mubr.bf16.mxu0 0
    %3712 = vmatmul.mubr.bf16.gmra.mrb[0].mxu0 %v3646
    %v3713 = vpop.f32.mrb[0].mxu0
    %v3714 = vadd.f32 0.0, %v3713
    %v3715 = vpop.f32.mrb[0].mxu0
    %v3716 = vpop.f32.mrb[0].mxu0
    %v3717 = vadd.f32 0.0, %v3716
    %v3718 = vpop.f32.mrb[0].mxu0
    %3719 = vmatprep.mubr.bf16.mxu0 0
    %3720 = vmatmul.mubr.bf16.gmra.mrb[0].mxu0 %v3649
    %v3721 = vpop.f32.mrb[0].mxu0
    %v3722 = vadd.f32 0.0, %v3721
    %v3723 = vpop.f32.mrb[0].mxu0
    %v3724 = vpop.f32.mrb[0].mxu0
    %v3725 = vadd.f32 0.0, %v3724
    %v3726 = vpop.f32.mrb[0].mxu0
    %3727 = vmatprep.mubr.bf16.mxu0 0
    %3728 = vmatmul.mubr.bf16.gmra.mrb[0].mxu0 %v3652
    %v3729 = vpop.f32.mrb[0].mxu0
    %v3730 = vadd.f32 0.0, %v3729
    %v3731 = vpop.f32.mrb[0].mxu0
    %v3732 = vpop.f32.mrb[0].mxu0
    %v3733 = vadd.f32 0.0, %v3732
    %v3734 = vpop.f32.mrb[0].mxu0
    %3735 = vmatprep.mubr.bf16.mxu0 0
    %3736 = vmatmul.mubr.bf16.gmra.mrb[0].mxu0 %v3655
    %v3737 = vpop.f32.mrb[0].mxu0
    %v3738 = vadd.f32 0.0, %v3737
    %v3739 = vpop.f32.mrb[0].mxu0
    %v3740 = vpop.f32.mrb[0].mxu0
    %v3741 = vadd.f32 0.0, %v3740
    %v3742 = vpop.f32.mrb[0].mxu0
    %3743 = vmatprep.mubr.bf16.mxu0 0
    %3744 = vmatmul.mubr.bf16.gmra.mrb[0].mxu0 %v3658
    %v3745 = vpop.f32.mrb[0].mxu0
    %v3746 = vadd.f32 0.0, %v3745
    %v3747 = vpop.f32.mrb[0].mxu0
    %v3748 = vpop.f32.mrb[0].mxu0
    %v3749 = vadd.f32 0.0, %v3748
    %v3750 = vpop.f32.mrb[0].mxu0
    %3751 = vmatprep.mubr.bf16.mxu0 0
    %3752 = vmatmul.mubr.bf16.gmra.mrb[0].mxu0 %v3661
    %v3753 = vpop.f32.mrb[0].mxu0
    %v3754 = vadd.f32 0.0, %v3753
    %v3755 = vpop.f32.mrb[0].mxu0
    %v3756 = vpop.f32.mrb[0].mxu0
    %v3757 = vadd.f32 0.0, %v3756
    %v3758 = vpop.f32.mrb[0].mxu0
    %3759 = vdwg.mxu0
    %v3760 = vadd.f32 %v3590, %v3698
    %v3761 = vadd.f32 %v3591, %v3701
    %v3762 = vadd.f32 %v3592, %v3706
    %v3763 = vadd.f32 %v3593, %v3709
    %v3764 = vadd.f32 %v3594, %v3714
    %v3765 = vadd.f32 %v3595, %v3717
    %v3766 = vadd.f32 %v3596, %v3722
    %v3767 = vadd.f32 %v3597, %v3725
    %v3768 = vadd.f32 %v3598, %v3730
    %v3769 = vadd.f32 %v3599, %v3733
    %v3770 = vadd.f32 %v3600, %v3738
    %v3771 = vadd.f32 %v3601, %v3741
    %v3772 = vadd.f32 %v3602, %v3746
    %v3773 = vadd.f32 %v3603, %v3749
    %v3774 = vadd.f32 %v3604, %v3754
    %v3775 = vadd.f32 %v3605, %v3757
    %v3776 = vsel %vm57, %v3760, 0.0
    %v3777 = vsel %vm57, %v3761, 0.0
    %v3778 = vadd.f32 %v3776, %v3777
    %v3779 = vsel %vm57, %v3762, 0.0
    %v3780 = vadd.f32 %v3778, %v3779
    %v3781 = vsel %vm57, %v3763, 0.0
    %v3782 = vadd.f32 %v3780, %v3781
    %v3783 = vsel %vm57, %v3764, 0.0
    %v3784 = vadd.f32 %v3782, %v3783
    %v3785 = vsel %vm57, %v3765, 0.0
    %v3786 = vadd.f32 %v3784, %v3785
    %v3787 = vsel %vm57, %v3766, 0.0
    %v3788 = vadd.f32 %v3786, %v3787
    %v3789 = vsel %vm57, %v3767, 0.0
    %v3790 = vadd.f32 %v3788, %v3789
    %v3791 = vsel %vm57, %v3768, 0.0
    %v3792 = vadd.f32 %v3790, %v3791
    %v3793 = vsel %vm57, %v3769, 0.0
    %v3794 = vadd.f32 %v3792, %v3793
    %v3795 = vsel %vm57, %v3770, 0.0
    %v3796 = vadd.f32 %v3794, %v3795
    %v3797 = vsel %vm57, %v3771, 0.0
    %v3798 = vadd.f32 %v3796, %v3797
    %v3799 = vsel %vm57, %v3772, 0.0
    %v3800 = vadd.f32 %v3798, %v3799
    %v3801 = vsel %vm57, %v3773, 0.0
    %v3802 = vadd.f32 %v3800, %v3801
    %v3803 = vsel %vm57, %v3774, 0.0
    %v3804 = vadd.f32 %v3802, %v3803
    %v3805 = vsel %vm57, %v3775, 0.0
    %v3806 = vadd.f32 %v3804, %v3805
    %v3807 = vrot.slane %v3806, 4
    %v3808 = vadd.f32 %v3806, %v3807
    %v3809 = vrot.slane %v3808, 2
    %v3810 = vadd.f32 %v3808, %v3809
    %v3811 = vrot.slane %v3810, 1
    %v3812 = vadd.f32 %v3810, %v3811
    %v3813 = vmul.f32 %v3812, 0.0078125
    %v3814 = vsub.f32 %v3760, %v3813
    %v3815 = vsub.f32 %v3761, %v3813
    %v3816 = vsub.f32 %v3762, %v3813
    %v3817 = vsub.f32 %v3763, %v3813
    %v3818 = vsub.f32 %v3764, %v3813
    %v3819 = vsub.f32 %v3765, %v3813
    %v3820 = vsub.f32 %v3766, %v3813
    %v3821 = vsub.f32 %v3767, %v3813
    %v3822 = vsub.f32 %v3768, %v3813
    %v3823 = vsub.f32 %v3769, %v3813
    %v3824 = vsub.f32 %v3770, %v3813
    %v3825 = vsub.f32 %v3771, %v3813
    %v3826 = vsub.f32 %v3772, %v3813
    %v3827 = vsub.f32 %v3773, %v3813
    %v3828 = vsub.f32 %v3774, %v3813
    %v3829 = vsub.f32 %v3775, %v3813
    %v3830 = vmul.f32 %v3814, %v3814
    %v3831 = vmul.f32 %v3815, %v3815
    %v3832 = vmul.f32 %v3816, %v3816
    %v3833 = vmul.f32 %v3817, %v3817
    %v3834 = vmul.f32 %v3818, %v3818
    %v3835 = vmul.f32 %v3819, %v3819
    %v3836 = vmul.f32 %v3820, %v3820
    %v3837 = vmul.f32 %v3821, %v3821
    %v3838 = vmul.f32 %v3822, %v3822
    %v3839 = vmul.f32 %v3823, %v3823
    %v3840 = vmul.f32 %v3824, %v3824
    %v3841 = vmul.f32 %v3825, %v3825
    %v3842 = vmul.f32 %v3826, %v3826
    %v3843 = vmul.f32 %v3827, %v3827
    %v3844 = vmul.f32 %v3828, %v3828
    %v3845 = vmul.f32 %v3829, %v3829
    %v3846 = vsel %vm57, %v3830, 0.0
    %v3847 = vsel %vm57, %v3831, 0.0
    %v3848 = vadd.f32 %v3846, %v3847
    %v3849 = vsel %vm57, %v3832, 0.0
    %v3850 = vadd.f32 %v3848, %v3849
    %v3851 = vsel %vm57, %v3833, 0.0
    %v3852 = vadd.f32 %v3850, %v3851
    %v3853 = vsel %vm57, %v3834, 0.0
    %v3854 = vadd.f32 %v3852, %v3853
    %v3855 = vsel %vm57, %v3835, 0.0
    %v3856 = vadd.f32 %v3854, %v3855
    %v3857 = vsel %vm57, %v3836, 0.0
    %v3858 = vadd.f32 %v3856, %v3857
    %v3859 = vsel %vm57, %v3837, 0.0
    %v3860 = vadd.f32 %v3858, %v3859
    %v3861 = vsel %vm57, %v3838, 0.0
    %v3862 = vadd.f32 %v3860, %v3861
    %v3863 = vsel %vm57, %v3839, 0.0
    %v3864 = vadd.f32 %v3862, %v3863
    %v3865 = vsel %vm57, %v3840, 0.0
    %v3866 = vadd.f32 %v3864, %v3865
    %v3867 = vsel %vm57, %v3841, 0.0
    %v3868 = vadd.f32 %v3866, %v3867
    %v3869 = vsel %vm57, %v3842, 0.0
    %v3870 = vadd.f32 %v3868, %v3869
    %v3871 = vsel %vm57, %v3843, 0.0
    %v3872 = vadd.f32 %v3870, %v3871
    %v3873 = vsel %vm57, %v3844, 0.0
    %v3874 = vadd.f32 %v3872, %v3873
    %v3875 = vsel %vm57, %v3845, 0.0
    %v3876 = vadd.f32 %v3874, %v3875
    %v3877 = vrot.slane %v3876, 4
    %v3878 = vadd.f32 %v3876, %v3877
    %v3879 = vrot.slane %v3878, 2
    %v3880 = vadd.f32 %v3878, %v3879
    %v3881 = vrot.slane %v3880, 1
    %v3882 = vadd.f32 %v3880, %v3881
    %v3883 = vmul.f32 %v3882, 0.0078125
    %v3884 = vadd.f32 %v3883, 1e-05
    %v3885 = vrsqrt.pop %v3884
    %v3886 = vmul.f32 %v3814, %v3885
    %v3887 = vmul.f32 %v3815, %v3885
    %v3888 = vmul.f32 %v3816, %v3885
    %v3889 = vmul.f32 %v3817, %v3885
    %v3890 = vmul.f32 %v3818, %v3885
    %v3891 = vmul.f32 %v3819, %v3885
    %v3892 = vmul.f32 %v3820, %v3885
    %v3893 = vmul.f32 %v3821, %v3885
    %v3894 = vmul.f32 %v3822, %v3885
    %v3895 = vmul.f32 %v3823, %v3885
    %v3896 = vmul.f32 %v3824, %v3885
    %v3897 = vmul.f32 %v3825, %v3885
    %v3898 = vmul.f32 %v3826, %v3885
    %v3899 = vmul.f32 %v3827, %v3885
    %v3900 = vmul.f32 %v3828, %v3885
    %v3901 = vmul.f32 %v3829, %v3885
    %v3902 = vadd.f32 %v109, %v3886
    %v3903 = vadd.f32 %v110, %v3887
    %v3904 = vadd.f32 %v111, %v3888
    %v3905 = vadd.f32 %v112, %v3889
    %v3906 = vadd.f32 %v113, %v3890
    %v3907 = vadd.f32 %v114, %v3891
    %v3908 = vadd.f32 %v115, %v3892
    %v3909 = vadd.f32 %v116, %v3893
    %v3910 = vadd.f32 %v117, %v3894
    %v3911 = vadd.f32 %v118, %v3895
    %v3912 = vadd.f32 %v119, %v3896
    %v3913 = vadd.f32 %v120, %v3897
    %v3914 = vadd.f32 %v121, %v3898
    %v3915 = vadd.f32 %v122, %v3899
    %v3916 = vadd.f32 %v123, %v3900
    %v3917 = vadd.f32 %v124, %v3901
    %3918 = vst.msk [vmem:[#allocation9] sm:$0xff] %vm57, %v3902
    %3919 = vst.msk [vmem:[#allocation9 + $0x8] sm:$0xff] %vm57, %v3903
    %3920 = vst.msk [vmem:[#allocation9 + $0x10] sm:$0xff] %vm57, %v3904
    %3921 = vst.msk [vmem:[#allocation9 + $0x18] sm:$0xff] %vm57, %v3905
    %3922 = vst.msk [vmem:[#allocation9 + $0x20] sm:$0xff] %vm57, %v3906
    %3923 = vst.msk [vmem:[#allocation9 + $0x28] sm:$0xff] %vm57, %v3907
    %3924 = vst.msk [vmem:[#allocation9 + $0x30] sm:$0xff] %vm57, %v3908
    %3925 = vst.msk [vmem:[#allocation9 + $0x38] sm:$0xff] %vm57, %v3909
    %3926 = vst.msk [vmem:[#allocation9 + $0x40] sm:$0xff] %vm57, %v3910
    %3927 = vst.msk [vmem:[#allocation9 + $0x48] sm:$0xff] %vm57, %v3911
    %3928 = vst.msk [vmem:[#allocation9 + $0x50] sm:$0xff] %vm57, %v3912
    %3929 = vst.msk [vmem:[#allocation9 + $0x58] sm:$0xff] %vm57, %v3913
    %3930 = vst.msk [vmem:[#allocation9 + $0x60] sm:$0xff] %vm57, %v3914
    %3931 = vst.msk [vmem:[#allocation9 + $0x68] sm:$0xff] %vm57, %v3915
    %3932 = vst.msk [vmem:[#allocation9 + $0x70] sm:$0xff] %vm57, %v3916
    %3933 = vst.msk [vmem:[#allocation9 + $0x78] sm:$0xff] %vm57, %v3917
    // Predicated region
    $region26: #{_forward_impl.1} parent=1 // pred_check
      _
    $region27: #{_forward_impl.1} parent=1 // pred_check_branch
      %3935 = sbr.rel (0) target = $region29
    $region28: #{_forward_impl.1} parent=1 // pred_region
      %s3937 = ssub.s32 2048, 2048
      %3938 = vsyncadd [#allocation5], %s3937
      %s3939 = sshll.u32 [#allocation9], 4
      %s3940 = int_to_ptr.vmem [resolvable:$true] %s3939
      %3945 = dma.vmem_to_hbm [thread:$0]  %s3940, 2048, %s3, [#allocation5], 128, 128, 8
    $region29: #{_forward_impl.1} parent=1 // pred_fallthru
      _
    // Predicated region
    $region30: #{_forward_impl.1} parent=1 // pred_check
      _
    $region31: #{_forward_impl.1} parent=1 // pred_check_branch
      %3947 = sbr.rel (0) target = $region33
    $region32: #{_forward_impl.1} parent=1 // pred_region
      %3948 = dma.done [#allocation5], 2048
    $region33: #{_forward_impl.1} parent=1 // pred_fallthru
      _
    %3949 = vsyncpa [#allocation4], 1
    %3950 = vsyncpa [#allocation7], 1
    %3951 = vsyncpa [#allocation5], 1

</llo_original>
